<compile_context>
chip_gen: v7x
topology: tpu7x:2x2x1
jax: 0.10.0
libtpu: 0.0.40
codegen_flags: <defaults>
</compile_context>

<pallas_src>
import numpy as np
import jax
import jax.numpy as jnp
from jax import lax
from jax.experimental import pallas as pl
from jax.experimental.pallas import tpu as pltpu

K_SIZE = 201             # signal / kernel length (fixed by the module)
ALPHA = 2 ** 4           # 16
HALF = K_SIZE // 2       # 100
STRIP = 8                # sublanes per streamed strip
M_PAD = 208              # 201 -> multiple of 8   (input positions, sublanes)
N_STRIPS = M_PAD // STRIP
K_PAD = 256              # 201 -> multiple of 128 (output positions, lanes)
B_TILE = 8               # signals processed per grid step
NEG_INF = float("-inf")  # Python float -> literal, never a captured jax const


def _flat_dilation_kernel(scale_ref, x_ref, o_ref):
    # scale_ref: (1,) f32 in SMEM
    # x_ref:     (B_TILE, M_PAD, 1) f32 in VMEM, -inf padded past position 200
    #            and for batch-padding signals
    # o_ref:     (B_TILE, K_PAD) f32 in VMEM
    inv_s = 1.0 / scale_ref[0]                       # one scalar divide, hoisted

    # df0[m, k] = m - k for the first strip; one-time int iota + convert.
    mi = lax.broadcasted_iota(jnp.int32, (STRIP, K_PAD), 0)
    ki = lax.broadcasted_iota(jnp.int32, (STRIP, K_PAD), 1)
    df0 = (mi - ki).astype(jnp.float32)

    # per-signal running max accumulators, (STRIP, K_PAD) each (2 vregs)
    accs = [jnp.full((STRIP, K_PAD), NEG_INF, dtype=jnp.float32)
            for _ in range(B_TILE)]

    for strip in range(N_STRIPS):
        # structuring-function tile for this strip of input rows,
        # shared by all B_TILE signals in the batch tile.
        df = df0 + float(strip * STRIP)              # d = m - k
        t = df * inv_s
        t2 = t * t
        t4 = t2 * t2
        t8 = t4 * t4                                 # squaring chain -> t^16
        g = jnp.where(jnp.abs(df) <= float(HALF), -(t8 * t8), NEG_INF)

        lo = strip * STRIP
        for b in range(B_TILE):
            xs = x_ref[b, lo:lo + STRIP, :]          # (STRIP, 1) -> lane broadcast
            accs[b] = jnp.maximum(accs[b], xs + g)

    for b in range(B_TILE):
        # final 8 -> 1 sublane max, lane-dense (256-wide) output row
        o_ref[b:b + 1, :] = jnp.max(accs[b], axis=0, keepdims=True)
    # TODO(synk): the PyTorch module also prints "Meerdere PoC ..." under
    # no_grad when the argmax is non-unique (diagnostic only, output-neutral);
    # the unused `padded` tensor in forward is likewise not reproduced.


def flat_dilation_1d_batched(x, scale):
    """x: (B, 201) float32 signals; scale: scalar `s`. Returns (B, 201)."""
    x = jnp.asarray(x, jnp.float32)
    assert x.ndim == 2 and x.shape[1] == K_SIZE, \
        "module broadcasting requires signal length == k_size == 201"
    b = x.shape[0]
    nb = pl.cdiv(b, B_TILE)
    b_pad = nb * B_TILE

    # each signal as a (M_PAD, 1) column: positions on sublanes, -inf padding
    x_cols = jnp.full((b_pad, M_PAD, 1), NEG_INF, dtype=jnp.float32)
    x_cols = x_cols.at[:b, :K_SIZE, 0].set(x)
    scale_arr = jnp.asarray(scale, jnp.float32).reshape((1,))

    out = pl.pallas_call(
        _flat_dilation_kernel,
        out_shape=jax.ShapeDtypeStruct((b_pad, K_PAD), jnp.float32),
        grid=(nb,),
        in_specs=[
            pl.BlockSpec(memory_space=pltpu.MemorySpace.SMEM),        # scale
            pl.BlockSpec((B_TILE, M_PAD, 1), lambda i: (i, 0, 0)),    # signals
        ],
        out_specs=pl.BlockSpec((B_TILE, K_PAD), lambda i: (i, 0)),
        compiler_params=pltpu.CompilerParams(
            dimension_semantics=("parallel",)),
    )(scale_arr, x_cols)

    return out[:b, :K_SIZE]


def flat_dilation_1d(x, scale):
    """Single-signal forward matching FlatDilation1D.forward (x: (201,))."""
    x = jnp.asarray(x, jnp.float32)
    assert x.shape == (K_SIZE,)
    return flat_dilation_1d_batched(x[None, :], scale)[0]


def _reference(x_np, s):
    """Pure NumPy (float64) re-implementation of FlatDilation1D.forward."""
    x_np = np.asarray(x_np, np.float64)
    n = x_np.shape[0]
    z = np.arange(-HALF, HALF + 1, dtype=np.float64)
    h = -((z / s) ** ALPHA)
    xp = np.full(n + 2 * HALF, -np.inf)
    xp[HALF:HALF + n] = x_np
    out = np.empty(n, np.float64)
    for k in range(n):
        out[k] = np.max(xp[k:k + K_SIZE] + h)
    return out


if __name__ == "__main__":
    key = jax.random.PRNGKey(0)
    B = 4
    x = jax.random.normal(key, (B, K_SIZE), dtype=jnp.float32)
    scale = 20.0   # deterministic init of the `scale` Parameter (constructor arg s)

    out = flat_dilation_1d_batched(x, scale)
    out = jax.block_until_ready(out)
    assert out.shape == (B, K_SIZE)

    x_np = np.asarray(x)
    for bi in range(B):
        ref = _reference(x_np[bi], scale)
        np.testing.assert_allclose(np.asarray(out[bi]), ref, rtol=1e-4, atol=1e-5)

    # single-signal path (the exact module API: 1-D input of length 201)
    out1 = jax.block_until_ready(flat_dilation_1d(x[0], scale))
    np.testing.assert_allclose(np.asarray(out1), _reference(x_np[0], scale),
                               rtol=1e-4, atol=1e-5)

    print("KERNEL_OK")
</pallas_src>

<mosaic_0001>
module attributes {stable_mosaic.version = 11 : i64} {
  func.func @_flat_dilation_kernel(%arg0: i32, %arg1: memref<1xf32, #tpu.memory_space<smem>>, %arg2: memref<8x208x1xf32, #tpu.memory_space<vmem>>, %arg3: memref<8x256xf32, #tpu.memory_space<vmem>>) attributes {dimension_semantics = [#tpu.dimension_semantics<parallel>], iteration_bounds = array<i64: 1>, scalar_prefetch = 0 : i64, scratch_operands = 0 : i64, tpu.core_type = #tpu.core_type<tc>, window_params = [{transform_indices = @transform_0, window_bounds = array<i64: 1>}, {transform_indices = @transform_1, window_bounds = array<i64: 8, 208, 1>}, {transform_indices = @transform_2, window_bounds = array<i64: 8, 256>}]} {
    %c0 = arith.constant 0 : index
    %0 = memref.load %arg1[%c0] : memref<1xf32, #tpu.memory_space<smem>>
    %cst = arith.constant 1.000000e+00 : f32
    %1 = arith.divf %cst, %0 : f32
    %2 = tpu.iota {dimensions = array<i32: 0>} : vector<8x256xi32>
    %3 = tpu.iota {dimensions = array<i32: 1>} : vector<8x256xi32>
    %4 = arith.subi %2, %3 : vector<8x256xi32>
    %5 = arith.sitofp %4 : vector<8x256xi32> to vector<8x256xf32>
    %cst_0 = arith.constant 0xFF800000 : f32
    %6 = vector.broadcast %cst_0 : f32 to vector<8x256xf32>
    %cst_1 = arith.constant 0xFF800000 : f32
    %7 = vector.broadcast %cst_1 : f32 to vector<8x256xf32>
    %cst_2 = arith.constant 0xFF800000 : f32
    %8 = vector.broadcast %cst_2 : f32 to vector<8x256xf32>
    %cst_3 = arith.constant 0xFF800000 : f32
    %9 = vector.broadcast %cst_3 : f32 to vector<8x256xf32>
    %cst_4 = arith.constant 0xFF800000 : f32
    %10 = vector.broadcast %cst_4 : f32 to vector<8x256xf32>
    %cst_5 = arith.constant 0xFF800000 : f32
    %11 = vector.broadcast %cst_5 : f32 to vector<8x256xf32>
    %cst_6 = arith.constant 0xFF800000 : f32
    %12 = vector.broadcast %cst_6 : f32 to vector<8x256xf32>
    %cst_7 = arith.constant 0xFF800000 : f32
    %13 = vector.broadcast %cst_7 : f32 to vector<8x256xf32>
    %cst_8 = arith.constant 0.000000e+00 : f32
    %14 = vector.broadcast %cst_8 : f32 to vector<8x256xf32>
    %15 = arith.addf %5, %14 : vector<8x256xf32>
    %16 = vector.broadcast %1 : f32 to vector<8x256xf32>
    %17 = arith.mulf %15, %16 : vector<8x256xf32>
    %18 = arith.mulf %17, %17 : vector<8x256xf32>
    %19 = arith.mulf %18, %18 : vector<8x256xf32>
    %20 = arith.mulf %19, %19 : vector<8x256xf32>
    %21 = math.absf %15 : vector<8x256xf32>
    %cst_9 = arith.constant 1.000000e+02 : f32
    %22 = vector.broadcast %cst_9 : f32 to vector<8x256xf32>
    %23 = arith.cmpf ole, %21, %22 : vector<8x256xf32>
    %24 = arith.mulf %20, %20 : vector<8x256xf32>
    %cst_10 = arith.constant 0.000000e+00 : f32
    %25 = vector.broadcast %cst_10 : f32 to vector<8x256xf32>
    %26 = arith.subf %25, %24 : vector<8x256xf32>
    %cst_11 = arith.constant 0xFF800000 : f32
    %27 = vector.broadcast %cst_11 : f32 to vector<8x256xf32>
    %28 = arith.select %23, %26, %27 : vector<8x256xi1>, vector<8x256xf32>
    %c0_12 = arith.constant 0 : index
    %c0_13 = arith.constant 0 : index
    %c0_14 = arith.constant 0 : index
    %29 = vector.load %arg2[%c0_12, %c0_13, %c0_14] : memref<8x208x1xf32, #tpu.memory_space<vmem>>, vector<1x8x1xf32>
    %30 = vector.shape_cast %29 : vector<1x8x1xf32> to vector<8x1xf32>
    %31 = vector.broadcast %30 : vector<8x1xf32> to vector<8x256xf32>
    %32 = arith.addf %31, %28 : vector<8x256xf32>
    %33 = arith.maximumf %6, %32 : vector<8x256xf32>
    %c1 = arith.constant 1 : index
    %c0_15 = arith.constant 0 : index
    %c0_16 = arith.constant 0 : index
    %34 = vector.load %arg2[%c1, %c0_15, %c0_16] : memref<8x208x1xf32, #tpu.memory_space<vmem>>, vector<1x8x1xf32>
    %35 = vector.shape_cast %34 : vector<1x8x1xf32> to vector<8x1xf32>
    %36 = vector.broadcast %35 : vector<8x1xf32> to vector<8x256xf32>
    %37 = arith.addf %36, %28 : vector<8x256xf32>
    %38 = arith.maximumf %7, %37 : vector<8x256xf32>
    %c2 = arith.constant 2 : index
    %c0_17 = arith.constant 0 : index
    %c0_18 = arith.constant 0 : index
    %39 = vector.load %arg2[%c2, %c0_17, %c0_18] : memref<8x208x1xf32, #tpu.memory_space<vmem>>, vector<1x8x1xf32>
    %40 = vector.shape_cast %39 : vector<1x8x1xf32> to vector<8x1xf32>
    %41 = vector.broadcast %40 : vector<8x1xf32> to vector<8x256xf32>
    %42 = arith.addf %41, %28 : vector<8x256xf32>
    %43 = arith.maximumf %8, %42 : vector<8x256xf32>
    %c3 = arith.constant 3 : index
    %c0_19 = arith.constant 0 : index
    %c0_20 = arith.constant 0 : index
    %44 = vector.load %arg2[%c3, %c0_19, %c0_20] : memref<8x208x1xf32, #tpu.memory_space<vmem>>, vector<1x8x1xf32>
    %45 = vector.shape_cast %44 : vector<1x8x1xf32> to vector<8x1xf32>
    %46 = vector.broadcast %45 : vector<8x1xf32> to vector<8x256xf32>
    %47 = arith.addf %46, %28 : vector<8x256xf32>
    %48 = arith.maximumf %9, %47 : vector<8x256xf32>
    %c4 = arith.constant 4 : index
    %c0_21 = arith.constant 0 : index
    %c0_22 = arith.constant 0 : index
    %49 = vector.load %arg2[%c4, %c0_21, %c0_22] : memref<8x208x1xf32, #tpu.memory_space<vmem>>, vector<1x8x1xf32>
    %50 = vector.shape_cast %49 : vector<1x8x1xf32> to vector<8x1xf32>
    %51 = vector.broadcast %50 : vector<8x1xf32> to vector<8x256xf32>
    %52 = arith.addf %51, %28 : vector<8x256xf32>
    %53 = arith.maximumf %10, %52 : vector<8x256xf32>
    %c5 = arith.constant 5 : index
    %c0_23 = arith.constant 0 : index
    %c0_24 = arith.constant 0 : index
    %54 = vector.load %arg2[%c5, %c0_23, %c0_24] : memref<8x208x1xf32, #tpu.memory_space<vmem>>, vector<1x8x1xf32>
    %55 = vector.shape_cast %54 : vector<1x8x1xf32> to vector<8x1xf32>
    %56 = vector.broadcast %55 : vector<8x1xf32> to vector<8x256xf32>
    %57 = arith.addf %56, %28 : vector<8x256xf32>
    %58 = arith.maximumf %11, %57 : vector<8x256xf32>
    %c6 = arith.constant 6 : index
    %c0_25 = arith.constant 0 : index
    %c0_26 = arith.constant 0 : index
    %59 = vector.load %arg2[%c6, %c0_25, %c0_26] : memref<8x208x1xf32, #tpu.memory_space<vmem>>, vector<1x8x1xf32>
    %60 = vector.shape_cast %59 : vector<1x8x1xf32> to vector<8x1xf32>
    %61 = vector.broadcast %60 : vector<8x1xf32> to vector<8x256xf32>
    %62 = arith.addf %61, %28 : vector<8x256xf32>
    %63 = arith.maximumf %12, %62 : vector<8x256xf32>
    %c7 = arith.constant 7 : index
    %c0_27 = arith.constant 0 : index
    %c0_28 = arith.constant 0 : index
    %64 = vector.load %arg2[%c7, %c0_27, %c0_28] : memref<8x208x1xf32, #tpu.memory_space<vmem>>, vector<1x8x1xf32>
    %65 = vector.shape_cast %64 : vector<1x8x1xf32> to vector<8x1xf32>
    %66 = vector.broadcast %65 : vector<8x1xf32> to vector<8x256xf32>
    %67 = arith.addf %66, %28 : vector<8x256xf32>
    %68 = arith.maximumf %13, %67 : vector<8x256xf32>
    %cst_29 = arith.constant 8.000000e+00 : f32
    %69 = vector.broadcast %cst_29 : f32 to vector<8x256xf32>
    %70 = arith.addf %5, %69 : vector<8x256xf32>
    %71 = vector.broadcast %1 : f32 to vector<8x256xf32>
    %72 = arith.mulf %70, %71 : vector<8x256xf32>
    %73 = arith.mulf %72, %72 : vector<8x256xf32>
    %74 = arith.mulf %73, %73 : vector<8x256xf32>
    %75 = arith.mulf %74, %74 : vector<8x256xf32>
    %76 = math.absf %70 : vector<8x256xf32>
    %cst_30 = arith.constant 1.000000e+02 : f32
    %77 = vector.broadcast %cst_30 : f32 to vector<8x256xf32>
    %78 = arith.cmpf ole, %76, %77 : vector<8x256xf32>
    %79 = arith.mulf %75, %75 : vector<8x256xf32>
    %cst_31 = arith.constant 0.000000e+00 : f32
    %80 = vector.broadcast %cst_31 : f32 to vector<8x256xf32>
    %81 = arith.subf %80, %79 : vector<8x256xf32>
    %cst_32 = arith.constant 0xFF800000 : f32
    %82 = vector.broadcast %cst_32 : f32 to vector<8x256xf32>
    %83 = arith.select %78, %81, %82 : vector<8x256xi1>, vector<8x256xf32>
    %c0_33 = arith.constant 0 : index
    %c8 = arith.constant 8 : index
    %c0_34 = arith.constant 0 : index
    %84 = vector.load %arg2[%c0_33, %c8, %c0_34] : memref<8x208x1xf32, #tpu.memory_space<vmem>>, vector<1x8x1xf32>
    %85 = vector.shape_cast %84 : vector<1x8x1xf32> to vector<8x1xf32>
    %86 = vector.broadcast %85 : vector<8x1xf32> to vector<8x256xf32>
    %87 = arith.addf %86, %83 : vector<8x256xf32>
    %88 = arith.maximumf %33, %87 : vector<8x256xf32>
    %c1_35 = arith.constant 1 : index
    %c8_36 = arith.constant 8 : index
    %c0_37 = arith.constant 0 : index
    %89 = vector.load %arg2[%c1_35, %c8_36, %c0_37] : memref<8x208x1xf32, #tpu.memory_space<vmem>>, vector<1x8x1xf32>
    %90 = vector.shape_cast %89 : vector<1x8x1xf32> to vector<8x1xf32>
    %91 = vector.broadcast %90 : vector<8x1xf32> to vector<8x256xf32>
    %92 = arith.addf %91, %83 : vector<8x256xf32>
    %93 = arith.maximumf %38, %92 : vector<8x256xf32>
    %c2_38 = arith.constant 2 : index
    %c8_39 = arith.constant 8 : index
    %c0_40 = arith.constant 0 : index
    %94 = vector.load %arg2[%c2_38, %c8_39, %c0_40] : memref<8x208x1xf32, #tpu.memory_space<vmem>>, vector<1x8x1xf32>
    %95 = vector.shape_cast %94 : vector<1x8x1xf32> to vector<8x1xf32>
    %96 = vector.broadcast %95 : vector<8x1xf32> to vector<8x256xf32>
    %97 = arith.addf %96, %83 : vector<8x256xf32>
    %98 = arith.maximumf %43, %97 : vector<8x256xf32>
    %c3_41 = arith.constant 3 : index
    %c8_42 = arith.constant 8 : index
    %c0_43 = arith.constant 0 : index
    %99 = vector.load %arg2[%c3_41, %c8_42, %c0_43] : memref<8x208x1xf32, #tpu.memory_space<vmem>>, vector<1x8x1xf32>
    %100 = vector.shape_cast %99 : vector<1x8x1xf32> to vector<8x1xf32>
    %101 = vector.broadcast %100 : vector<8x1xf32> to vector<8x256xf32>
    %102 = arith.addf %101, %83 : vector<8x256xf32>
    %103 = arith.maximumf %48, %102 : vector<8x256xf32>
    %c4_44 = arith.constant 4 : index
    %c8_45 = arith.constant 8 : index
    %c0_46 = arith.constant 0 : index
    %104 = vector.load %arg2[%c4_44, %c8_45, %c0_46] : memref<8x208x1xf32, #tpu.memory_space<vmem>>, vector<1x8x1xf32>
    %105 = vector.shape_cast %104 : vector<1x8x1xf32> to vector<8x1xf32>
    %106 = vector.broadcast %105 : vector<8x1xf32> to vector<8x256xf32>
    %107 = arith.addf %106, %83 : vector<8x256xf32>
    %108 = arith.maximumf %53, %107 : vector<8x256xf32>
    %c5_47 = arith.constant 5 : index
    %c8_48 = arith.constant 8 : index
    %c0_49 = arith.constant 0 : index
    %109 = vector.load %arg2[%c5_47, %c8_48, %c0_49] : memref<8x208x1xf32, #tpu.memory_space<vmem>>, vector<1x8x1xf32>
    %110 = vector.shape_cast %109 : vector<1x8x1xf32> to vector<8x1xf32>
    %111 = vector.broadcast %110 : vector<8x1xf32> to vector<8x256xf32>
    %112 = arith.addf %111, %83 : vector<8x256xf32>
    %113 = arith.maximumf %58, %112 : vector<8x256xf32>
    %c6_50 = arith.constant 6 : index
    %c8_51 = arith.constant 8 : index
    %c0_52 = arith.constant 0 : index
    %114 = vector.load %arg2[%c6_50, %c8_51, %c0_52] : memref<8x208x1xf32, #tpu.memory_space<vmem>>, vector<1x8x1xf32>
    %115 = vector.shape_cast %114 : vector<1x8x1xf32> to vector<8x1xf32>
    %116 = vector.broadcast %115 : vector<8x1xf32> to vector<8x256xf32>
    %117 = arith.addf %116, %83 : vector<8x256xf32>
    %118 = arith.maximumf %63, %117 : vector<8x256xf32>
    %c7_53 = arith.constant 7 : index
    %c8_54 = arith.constant 8 : index
    %c0_55 = arith.constant 0 : index
    %119 = vector.load %arg2[%c7_53, %c8_54, %c0_55] : memref<8x208x1xf32, #tpu.memory_space<vmem>>, vector<1x8x1xf32>
    %120 = vector.shape_cast %119 : vector<1x8x1xf32> to vector<8x1xf32>
    %121 = vector.broadcast %120 : vector<8x1xf32> to vector<8x256xf32>
    %122 = arith.addf %121, %83 : vector<8x256xf32>
    %123 = arith.maximumf %68, %122 : vector<8x256xf32>
    %cst_56 = arith.constant 1.600000e+01 : f32
    %124 = vector.broadcast %cst_56 : f32 to vector<8x256xf32>
    %125 = arith.addf %5, %124 : vector<8x256xf32>
    %126 = vector.broadcast %1 : f32 to vector<8x256xf32>
    %127 = arith.mulf %125, %126 : vector<8x256xf32>
    %128 = arith.mulf %127, %127 : vector<8x256xf32>
    %129 = arith.mulf %128, %128 : vector<8x256xf32>
    %130 = arith.mulf %129, %129 : vector<8x256xf32>
    %131 = math.absf %125 : vector<8x256xf32>
    %cst_57 = arith.constant 1.000000e+02 : f32
    %132 = vector.broadcast %cst_57 : f32 to vector<8x256xf32>
    %133 = arith.cmpf ole, %131, %132 : vector<8x256xf32>
    %134 = arith.mulf %130, %130 : vector<8x256xf32>
    %cst_58 = arith.constant 0.000000e+00 : f32
    %135 = vector.broadcast %cst_58 : f32 to vector<8x256xf32>
    %136 = arith.subf %135, %134 : vector<8x256xf32>
    %cst_59 = arith.constant 0xFF800000 : f32
    %137 = vector.broadcast %cst_59 : f32 to vector<8x256xf32>
    %138 = arith.select %133, %136, %137 : vector<8x256xi1>, vector<8x256xf32>
    %c0_60 = arith.constant 0 : index
    %c16 = arith.constant 16 : index
    %c0_61 = arith.constant 0 : index
    %139 = vector.load %arg2[%c0_60, %c16, %c0_61] : memref<8x208x1xf32, #tpu.memory_space<vmem>>, vector<1x8x1xf32>
    %140 = vector.shape_cast %139 : vector<1x8x1xf32> to vector<8x1xf32>
    %141 = vector.broadcast %140 : vector<8x1xf32> to vector<8x256xf32>
    %142 = arith.addf %141, %138 : vector<8x256xf32>
    %143 = arith.maximumf %88, %142 : vector<8x256xf32>
    %c1_62 = arith.constant 1 : index
    %c16_63 = arith.constant 16 : index
    %c0_64 = arith.constant 0 : index
    %144 = vector.load %arg2[%c1_62, %c16_63, %c0_64] : memref<8x208x1xf32, #tpu.memory_space<vmem>>, vector<1x8x1xf32>
    %145 = vector.shape_cast %144 : vector<1x8x1xf32> to vector<8x1xf32>
    %146 = vector.broadcast %145 : vector<8x1xf32> to vector<8x256xf32>
    %147 = arith.addf %146, %138 : vector<8x256xf32>
    %148 = arith.maximumf %93, %147 : vector<8x256xf32>
    %c2_65 = arith.constant 2 : index
    %c16_66 = arith.constant 16 : index
    %c0_67 = arith.constant 0 : index
    %149 = vector.load %arg2[%c2_65, %c16_66, %c0_67] : memref<8x208x1xf32, #tpu.memory_space<vmem>>, vector<1x8x1xf32>
    %150 = vector.shape_cast %149 : vector<1x8x1xf32> to vector<8x1xf32>
    %151 = vector.broadcast %150 : vector<8x1xf32> to vector<8x256xf32>
    %152 = arith.addf %151, %138 : vector<8x256xf32>
    %153 = arith.maximumf %98, %152 : vector<8x256xf32>
    %c3_68 = arith.constant 3 : index
    %c16_69 = arith.constant 16 : index
    %c0_70 = arith.constant 0 : index
    %154 = vector.load %arg2[%c3_68, %c16_69, %c0_70] : memref<8x208x1xf32, #tpu.memory_space<vmem>>, vector<1x8x1xf32>
    %155 = vector.shape_cast %154 : vector<1x8x1xf32> to vector<8x1xf32>
    %156 = vector.broadcast %155 : vector<8x1xf32> to vector<8x256xf32>
    %157 = arith.addf %156, %138 : vector<8x256xf32>
    %158 = arith.maximumf %103, %157 : vector<8x256xf32>
    %c4_71 = arith.constant 4 : index
    %c16_72 = arith.constant 16 : index
    %c0_73 = arith.constant 0 : index
    %159 = vector.load %arg2[%c4_71, %c16_72, %c0_73] : memref<8x208x1xf32, #tpu.memory_space<vmem>>, vector<1x8x1xf32>
    %160 = vector.shape_cast %159 : vector<1x8x1xf32> to vector<8x1xf32>
    %161 = vector.broadcast %160 : vector<8x1xf32> to vector<8x256xf32>
    %162 = arith.addf %161, %138 : vector<8x256xf32>
    %163 = arith.maximumf %108, %162 : vector<8x256xf32>
    %c5_74 = arith.constant 5 : index
    %c16_75 = arith.constant 16 : index
    %c0_76 = arith.constant 0 : index
    %164 = vector.load %arg2[%c5_74, %c16_75, %c0_76] : memref<8x208x1xf32, #tpu.memory_space<vmem>>, vector<1x8x1xf32>
    %165 = vector.shape_cast %164 : vector<1x8x1xf32> to vector<8x1xf32>
    %166 = vector.broadcast %165 : vector<8x1xf32> to vector<8x256xf32>
    %167 = arith.addf %166, %138 : vector<8x256xf32>
    %168 = arith.maximumf %113, %167 : vector<8x256xf32>
    %c6_77 = arith.constant 6 : index
    %c16_78 = arith.constant 16 : index
    %c0_79 = arith.constant 0 : index
    %169 = vector.load %arg2[%c6_77, %c16_78, %c0_79] : memref<8x208x1xf32, #tpu.memory_space<vmem>>, vector<1x8x1xf32>
    %170 = vector.shape_cast %169 : vector<1x8x1xf32> to vector<8x1xf32>
    %171 = vector.broadcast %170 : vector<8x1xf32> to vector<8x256xf32>
    %172 = arith.addf %171, %138 : vector<8x256xf32>
    %173 = arith.maximumf %118, %172 : vector<8x256xf32>
    %c7_80 = arith.constant 7 : index
    %c16_81 = arith.constant 16 : index
    %c0_82 = arith.constant 0 : index
    %174 = vector.load %arg2[%c7_80, %c16_81, %c0_82] : memref<8x208x1xf32, #tpu.memory_space<vmem>>, vector<1x8x1xf32>
    %175 = vector.shape_cast %174 : vector<1x8x1xf32> to vector<8x1xf32>
    %176 = vector.broadcast %175 : vector<8x1xf32> to vector<8x256xf32>
    %177 = arith.addf %176, %138 : vector<8x256xf32>
    %178 = arith.maximumf %123, %177 : vector<8x256xf32>
    %cst_83 = arith.constant 2.400000e+01 : f32
    %179 = vector.broadcast %cst_83 : f32 to vector<8x256xf32>
    %180 = arith.addf %5, %179 : vector<8x256xf32>
    %181 = vector.broadcast %1 : f32 to vector<8x256xf32>
    %182 = arith.mulf %180, %181 : vector<8x256xf32>
    %183 = arith.mulf %182, %182 : vector<8x256xf32>
    %184 = arith.mulf %183, %183 : vector<8x256xf32>
    %185 = arith.mulf %184, %184 : vector<8x256xf32>
    %186 = math.absf %180 : vector<8x256xf32>
    %cst_84 = arith.constant 1.000000e+02 : f32
    %187 = vector.broadcast %cst_84 : f32 to vector<8x256xf32>
    %188 = arith.cmpf ole, %186, %187 : vector<8x256xf32>
    %189 = arith.mulf %185, %185 : vector<8x256xf32>
    %cst_85 = arith.constant 0.000000e+00 : f32
    %190 = vector.broadcast %cst_85 : f32 to vector<8x256xf32>
    %191 = arith.subf %190, %189 : vector<8x256xf32>
    %cst_86 = arith.constant 0xFF800000 : f32
    %192 = vector.broadcast %cst_86 : f32 to vector<8x256xf32>
    %193 = arith.select %188, %191, %192 : vector<8x256xi1>, vector<8x256xf32>
    %c0_87 = arith.constant 0 : index
    %c24 = arith.constant 24 : index
    %c0_88 = arith.constant 0 : index
    %194 = vector.load %arg2[%c0_87, %c24, %c0_88] : memref<8x208x1xf32, #tpu.memory_space<vmem>>, vector<1x8x1xf32>
    %195 = vector.shape_cast %194 : vector<1x8x1xf32> to vector<8x1xf32>
    %196 = vector.broadcast %195 : vector<8x1xf32> to vector<8x256xf32>
    %197 = arith.addf %196, %193 : vector<8x256xf32>
    %198 = arith.maximumf %143, %197 : vector<8x256xf32>
    %c1_89 = arith.constant 1 : index
    %c24_90 = arith.constant 24 : index
    %c0_91 = arith.constant 0 : index
    %199 = vector.load %arg2[%c1_89, %c24_90, %c0_91] : memref<8x208x1xf32, #tpu.memory_space<vmem>>, vector<1x8x1xf32>
    %200 = vector.shape_cast %199 : vector<1x8x1xf32> to vector<8x1xf32>
    %201 = vector.broadcast %200 : vector<8x1xf32> to vector<8x256xf32>
    %202 = arith.addf %201, %193 : vector<8x256xf32>
    %203 = arith.maximumf %148, %202 : vector<8x256xf32>
    %c2_92 = arith.constant 2 : index
    %c24_93 = arith.constant 24 : index
    %c0_94 = arith.constant 0 : index
    %204 = vector.load %arg2[%c2_92, %c24_93, %c0_94] : memref<8x208x1xf32, #tpu.memory_space<vmem>>, vector<1x8x1xf32>
    %205 = vector.shape_cast %204 : vector<1x8x1xf32> to vector<8x1xf32>
    %206 = vector.broadcast %205 : vector<8x1xf32> to vector<8x256xf32>
    %207 = arith.addf %206, %193 : vector<8x256xf32>
    %208 = arith.maximumf %153, %207 : vector<8x256xf32>
    %c3_95 = arith.constant 3 : index
    %c24_96 = arith.constant 24 : index
    %c0_97 = arith.constant 0 : index
    %209 = vector.load %arg2[%c3_95, %c24_96, %c0_97] : memref<8x208x1xf32, #tpu.memory_space<vmem>>, vector<1x8x1xf32>
    %210 = vector.shape_cast %209 : vector<1x8x1xf32> to vector<8x1xf32>
    %211 = vector.broadcast %210 : vector<8x1xf32> to vector<8x256xf32>
    %212 = arith.addf %211, %193 : vector<8x256xf32>
    %213 = arith.maximumf %158, %212 : vector<8x256xf32>
    %c4_98 = arith.constant 4 : index
    %c24_99 = arith.constant 24 : index
    %c0_100 = arith.constant 0 : index
    %214 = vector.load %arg2[%c4_98, %c24_99, %c0_100] : memref<8x208x1xf32, #tpu.memory_space<vmem>>, vector<1x8x1xf32>
    %215 = vector.shape_cast %214 : vector<1x8x1xf32> to vector<8x1xf32>
    %216 = vector.broadcast %215 : vector<8x1xf32> to vector<8x256xf32>
    %217 = arith.addf %216, %193 : vector<8x256xf32>
    %218 = arith.maximumf %163, %217 : vector<8x256xf32>
    %c5_101 = arith.constant 5 : index
    %c24_102 = arith.constant 24 : index
    %c0_103 = arith.constant 0 : index
    %219 = vector.load %arg2[%c5_101, %c24_102, %c0_103] : memref<8x208x1xf32, #tpu.memory_space<vmem>>, vector<1x8x1xf32>
    %220 = vector.shape_cast %219 : vector<1x8x1xf32> to vector<8x1xf32>
    %221 = vector.broadcast %220 : vector<8x1xf32> to vector<8x256xf32>
    %222 = arith.addf %221, %193 : vector<8x256xf32>
    %223 = arith.maximumf %168, %222 : vector<8x256xf32>
    %c6_104 = arith.constant 6 : index
    %c24_105 = arith.constant 24 : index
    %c0_106 = arith.constant 0 : index
    %224 = vector.load %arg2[%c6_104, %c24_105, %c0_106] : memref<8x208x1xf32, #tpu.memory_space<vmem>>, vector<1x8x1xf32>
    %225 = vector.shape_cast %224 : vector<1x8x1xf32> to vector<8x1xf32>
    %226 = vector.broadcast %225 : vector<8x1xf32> to vector<8x256xf32>
    %227 = arith.addf %226, %193 : vector<8x256xf32>
    %228 = arith.maximumf %173, %227 : vector<8x256xf32>
    %c7_107 = arith.constant 7 : index
    %c24_108 = arith.constant 24 : index
    %c0_109 = arith.constant 0 : index
    %229 = vector.load %arg2[%c7_107, %c24_108, %c0_109] : memref<8x208x1xf32, #tpu.memory_space<vmem>>, vector<1x8x1xf32>
    %230 = vector.shape_cast %229 : vector<1x8x1xf32> to vector<8x1xf32>
    %231 = vector.broadcast %230 : vector<8x1xf32> to vector<8x256xf32>
    %232 = arith.addf %231, %193 : vector<8x256xf32>
    %233 = arith.maximumf %178, %232 : vector<8x256xf32>
    %cst_110 = arith.constant 3.200000e+01 : f32
    %234 = vector.broadcast %cst_110 : f32 to vector<8x256xf32>
    %235 = arith.addf %5, %234 : vector<8x256xf32>
    %236 = vector.broadcast %1 : f32 to vector<8x256xf32>
    %237 = arith.mulf %235, %236 : vector<8x256xf32>
    %238 = arith.mulf %237, %237 : vector<8x256xf32>
    %239 = arith.mulf %238, %238 : vector<8x256xf32>
    %240 = arith.mulf %239, %239 : vector<8x256xf32>
    %241 = math.absf %235 : vector<8x256xf32>
    %cst_111 = arith.constant 1.000000e+02 : f32
    %242 = vector.broadcast %cst_111 : f32 to vector<8x256xf32>
    %243 = arith.cmpf ole, %241, %242 : vector<8x256xf32>
    %244 = arith.mulf %240, %240 : vector<8x256xf32>
    %cst_112 = arith.constant 0.000000e+00 : f32
    %245 = vector.broadcast %cst_112 : f32 to vector<8x256xf32>
    %246 = arith.subf %245, %244 : vector<8x256xf32>
    %cst_113 = arith.constant 0xFF800000 : f32
    %247 = vector.broadcast %cst_113 : f32 to vector<8x256xf32>
    %248 = arith.select %243, %246, %247 : vector<8x256xi1>, vector<8x256xf32>
    %c0_114 = arith.constant 0 : index
    %c32 = arith.constant 32 : index
    %c0_115 = arith.constant 0 : index
    %249 = vector.load %arg2[%c0_114, %c32, %c0_115] : memref<8x208x1xf32, #tpu.memory_space<vmem>>, vector<1x8x1xf32>
    %250 = vector.shape_cast %249 : vector<1x8x1xf32> to vector<8x1xf32>
    %251 = vector.broadcast %250 : vector<8x1xf32> to vector<8x256xf32>
    %252 = arith.addf %251, %248 : vector<8x256xf32>
    %253 = arith.maximumf %198, %252 : vector<8x256xf32>
    %c1_116 = arith.constant 1 : index
    %c32_117 = arith.constant 32 : index
    %c0_118 = arith.constant 0 : index
    %254 = vector.load %arg2[%c1_116, %c32_117, %c0_118] : memref<8x208x1xf32, #tpu.memory_space<vmem>>, vector<1x8x1xf32>
    %255 = vector.shape_cast %254 : vector<1x8x1xf32> to vector<8x1xf32>
    %256 = vector.broadcast %255 : vector<8x1xf32> to vector<8x256xf32>
    %257 = arith.addf %256, %248 : vector<8x256xf32>
    %258 = arith.maximumf %203, %257 : vector<8x256xf32>
    %c2_119 = arith.constant 2 : index
    %c32_120 = arith.constant 32 : index
    %c0_121 = arith.constant 0 : index
    %259 = vector.load %arg2[%c2_119, %c32_120, %c0_121] : memref<8x208x1xf32, #tpu.memory_space<vmem>>, vector<1x8x1xf32>
    %260 = vector.shape_cast %259 : vector<1x8x1xf32> to vector<8x1xf32>
    %261 = vector.broadcast %260 : vector<8x1xf32> to vector<8x256xf32>
    %262 = arith.addf %261, %248 : vector<8x256xf32>
    %263 = arith.maximumf %208, %262 : vector<8x256xf32>
    %c3_122 = arith.constant 3 : index
    %c32_123 = arith.constant 32 : index
    %c0_124 = arith.constant 0 : index
    %264 = vector.load %arg2[%c3_122, %c32_123, %c0_124] : memref<8x208x1xf32, #tpu.memory_space<vmem>>, vector<1x8x1xf32>
    %265 = vector.shape_cast %264 : vector<1x8x1xf32> to vector<8x1xf32>
    %266 = vector.broadcast %265 : vector<8x1xf32> to vector<8x256xf32>
    %267 = arith.addf %266, %248 : vector<8x256xf32>
    %268 = arith.maximumf %213, %267 : vector<8x256xf32>
    %c4_125 = arith.constant 4 : index
    %c32_126 = arith.constant 32 : index
    %c0_127 = arith.constant 0 : index
    %269 = vector.load %arg2[%c4_125, %c32_126, %c0_127] : memref<8x208x1xf32, #tpu.memory_space<vmem>>, vector<1x8x1xf32>
    %270 = vector.shape_cast %269 : vector<1x8x1xf32> to vector<8x1xf32>
    %271 = vector.broadcast %270 : vector<8x1xf32> to vector<8x256xf32>
    %272 = arith.addf %271, %248 : vector<8x256xf32>
    %273 = arith.maximumf %218, %272 : vector<8x256xf32>
    %c5_128 = arith.constant 5 : index
    %c32_129 = arith.constant 32 : index
    %c0_130 = arith.constant 0 : index
    %274 = vector.load %arg2[%c5_128, %c32_129, %c0_130] : memref<8x208x1xf32, #tpu.memory_space<vmem>>, vector<1x8x1xf32>
    %275 = vector.shape_cast %274 : vector<1x8x1xf32> to vector<8x1xf32>
    %276 = vector.broadcast %275 : vector<8x1xf32> to vector<8x256xf32>
    %277 = arith.addf %276, %248 : vector<8x256xf32>
    %278 = arith.maximumf %223, %277 : vector<8x256xf32>
    %c6_131 = arith.constant 6 : index
    %c32_132 = arith.constant 32 : index
    %c0_133 = arith.constant 0 : index
    %279 = vector.load %arg2[%c6_131, %c32_132, %c0_133] : memref<8x208x1xf32, #tpu.memory_space<vmem>>, vector<1x8x1xf32>
    %280 = vector.shape_cast %279 : vector<1x8x1xf32> to vector<8x1xf32>
    %281 = vector.broadcast %280 : vector<8x1xf32> to vector<8x256xf32>
    %282 = arith.addf %281, %248 : vector<8x256xf32>
    %283 = arith.maximumf %228, %282 : vector<8x256xf32>
    %c7_134 = arith.constant 7 : index
    %c32_135 = arith.constant 32 : index
    %c0_136 = arith.constant 0 : index
    %284 = vector.load %arg2[%c7_134, %c32_135, %c0_136] : memref<8x208x1xf32, #tpu.memory_space<vmem>>, vector<1x8x1xf32>
    %285 = vector.shape_cast %284 : vector<1x8x1xf32> to vector<8x1xf32>
    %286 = vector.broadcast %285 : vector<8x1xf32> to vector<8x256xf32>
    %287 = arith.addf %286, %248 : vector<8x256xf32>
    %288 = arith.maximumf %233, %287 : vector<8x256xf32>
    %cst_137 = arith.constant 4.000000e+01 : f32
    %289 = vector.broadcast %cst_137 : f32 to vector<8x256xf32>
    %290 = arith.addf %5, %289 : vector<8x256xf32>
    %291 = vector.broadcast %1 : f32 to vector<8x256xf32>
    %292 = arith.mulf %290, %291 : vector<8x256xf32>
    %293 = arith.mulf %292, %292 : vector<8x256xf32>
    %294 = arith.mulf %293, %293 : vector<8x256xf32>
    %295 = arith.mulf %294, %294 : vector<8x256xf32>
    %296 = math.absf %290 : vector<8x256xf32>
    %cst_138 = arith.constant 1.000000e+02 : f32
    %297 = vector.broadcast %cst_138 : f32 to vector<8x256xf32>
    %298 = arith.cmpf ole, %296, %297 : vector<8x256xf32>
    %299 = arith.mulf %295, %295 : vector<8x256xf32>
    %cst_139 = arith.constant 0.000000e+00 : f32
    %300 = vector.broadcast %cst_139 : f32 to vector<8x256xf32>
    %301 = arith.subf %300, %299 : vector<8x256xf32>
    %cst_140 = arith.constant 0xFF800000 : f32
    %302 = vector.broadcast %cst_140 : f32 to vector<8x256xf32>
    %303 = arith.select %298, %301, %302 : vector<8x256xi1>, vector<8x256xf32>
    %c0_141 = arith.constant 0 : index
    %c40 = arith.constant 40 : index
    %c0_142 = arith.constant 0 : index
    %304 = vector.load %arg2[%c0_141, %c40, %c0_142] : memref<8x208x1xf32, #tpu.memory_space<vmem>>, vector<1x8x1xf32>
    %305 = vector.shape_cast %304 : vector<1x8x1xf32> to vector<8x1xf32>
    %306 = vector.broadcast %305 : vector<8x1xf32> to vector<8x256xf32>
    %307 = arith.addf %306, %303 : vector<8x256xf32>
    %308 = arith.maximumf %253, %307 : vector<8x256xf32>
    %c1_143 = arith.constant 1 : index
    %c40_144 = arith.constant 40 : index
    %c0_145 = arith.constant 0 : index
    %309 = vector.load %arg2[%c1_143, %c40_144, %c0_145] : memref<8x208x1xf32, #tpu.memory_space<vmem>>, vector<1x8x1xf32>
    %310 = vector.shape_cast %309 : vector<1x8x1xf32> to vector<8x1xf32>
    %311 = vector.broadcast %310 : vector<8x1xf32> to vector<8x256xf32>
    %312 = arith.addf %311, %303 : vector<8x256xf32>
    %313 = arith.maximumf %258, %312 : vector<8x256xf32>
    %c2_146 = arith.constant 2 : index
    %c40_147 = arith.constant 40 : index
    %c0_148 = arith.constant 0 : index
    %314 = vector.load %arg2[%c2_146, %c40_147, %c0_148] : memref<8x208x1xf32, #tpu.memory_space<vmem>>, vector<1x8x1xf32>
    %315 = vector.shape_cast %314 : vector<1x8x1xf32> to vector<8x1xf32>
    %316 = vector.broadcast %315 : vector<8x1xf32> to vector<8x256xf32>
    %317 = arith.addf %316, %303 : vector<8x256xf32>
    %318 = arith.maximumf %263, %317 : vector<8x256xf32>
    %c3_149 = arith.constant 3 : index
    %c40_150 = arith.constant 40 : index
    %c0_151 = arith.constant 0 : index
    %319 = vector.load %arg2[%c3_149, %c40_150, %c0_151] : memref<8x208x1xf32, #tpu.memory_space<vmem>>, vector<1x8x1xf32>
    %320 = vector.shape_cast %319 : vector<1x8x1xf32> to vector<8x1xf32>
    %321 = vector.broadcast %320 : vector<8x1xf32> to vector<8x256xf32>
    %322 = arith.addf %321, %303 : vector<8x256xf32>
    %323 = arith.maximumf %268, %322 : vector<8x256xf32>
    %c4_152 = arith.constant 4 : index
    %c40_153 = arith.constant 40 : index
    %c0_154 = arith.constant 0 : index
    %324 = vector.load %arg2[%c4_152, %c40_153, %c0_154] : memref<8x208x1xf32, #tpu.memory_space<vmem>>, vector<1x8x1xf32>
    %325 = vector.shape_cast %324 : vector<1x8x1xf32> to vector<8x1xf32>
    %326 = vector.broadcast %325 : vector<8x1xf32> to vector<8x256xf32>
    %327 = arith.addf %326, %303 : vector<8x256xf32>
    %328 = arith.maximumf %273, %327 : vector<8x256xf32>
    %c5_155 = arith.constant 5 : index
    %c40_156 = arith.constant 40 : index
    %c0_157 = arith.constant 0 : index
    %329 = vector.load %arg2[%c5_155, %c40_156, %c0_157] : memref<8x208x1xf32, #tpu.memory_space<vmem>>, vector<1x8x1xf32>
    %330 = vector.shape_cast %329 : vector<1x8x1xf32> to vector<8x1xf32>
    %331 = vector.broadcast %330 : vector<8x1xf32> to vector<8x256xf32>
    %332 = arith.addf %331, %303 : vector<8x256xf32>
    %333 = arith.maximumf %278, %332 : vector<8x256xf32>
    %c6_158 = arith.constant 6 : index
    %c40_159 = arith.constant 40 : index
    %c0_160 = arith.constant 0 : index
    %334 = vector.load %arg2[%c6_158, %c40_159, %c0_160] : memref<8x208x1xf32, #tpu.memory_space<vmem>>, vector<1x8x1xf32>
    %335 = vector.shape_cast %334 : vector<1x8x1xf32> to vector<8x1xf32>
    %336 = vector.broadcast %335 : vector<8x1xf32> to vector<8x256xf32>
    %337 = arith.addf %336, %303 : vector<8x256xf32>
    %338 = arith.maximumf %283, %337 : vector<8x256xf32>
    %c7_161 = arith.constant 7 : index
    %c40_162 = arith.constant 40 : index
    %c0_163 = arith.constant 0 : index
    %339 = vector.load %arg2[%c7_161, %c40_162, %c0_163] : memref<8x208x1xf32, #tpu.memory_space<vmem>>, vector<1x8x1xf32>
    %340 = vector.shape_cast %339 : vector<1x8x1xf32> to vector<8x1xf32>
    %341 = vector.broadcast %340 : vector<8x1xf32> to vector<8x256xf32>
    %342 = arith.addf %341, %303 : vector<8x256xf32>
    %343 = arith.maximumf %288, %342 : vector<8x256xf32>
    %cst_164 = arith.constant 4.800000e+01 : f32
    %344 = vector.broadcast %cst_164 : f32 to vector<8x256xf32>
    %345 = arith.addf %5, %344 : vector<8x256xf32>
    %346 = vector.broadcast %1 : f32 to vector<8x256xf32>
    %347 = arith.mulf %345, %346 : vector<8x256xf32>
    %348 = arith.mulf %347, %347 : vector<8x256xf32>
    %349 = arith.mulf %348, %348 : vector<8x256xf32>
    %350 = arith.mulf %349, %349 : vector<8x256xf32>
    %351 = math.absf %345 : vector<8x256xf32>
    %cst_165 = arith.constant 1.000000e+02 : f32
    %352 = vector.broadcast %cst_165 : f32 to vector<8x256xf32>
    %353 = arith.cmpf ole, %351, %352 : vector<8x256xf32>
    %354 = arith.mulf %350, %350 : vector<8x256xf32>
    %cst_166 = arith.constant 0.000000e+00 : f32
    %355 = vector.broadcast %cst_166 : f32 to vector<8x256xf32>
    %356 = arith.subf %355, %354 : vector<8x256xf32>
    %cst_167 = arith.constant 0xFF800000 : f32
    %357 = vector.broadcast %cst_167 : f32 to vector<8x256xf32>
    %358 = arith.select %353, %356, %357 : vector<8x256xi1>, vector<8x256xf32>
    %c0_168 = arith.constant 0 : index
    %c48 = arith.constant 48 : index
    %c0_169 = arith.constant 0 : index
    %359 = vector.load %arg2[%c0_168, %c48, %c0_169] : memref<8x208x1xf32, #tpu.memory_space<vmem>>, vector<1x8x1xf32>
    %360 = vector.shape_cast %359 : vector<1x8x1xf32> to vector<8x1xf32>
    %361 = vector.broadcast %360 : vector<8x1xf32> to vector<8x256xf32>
    %362 = arith.addf %361, %358 : vector<8x256xf32>
    %363 = arith.maximumf %308, %362 : vector<8x256xf32>
    %c1_170 = arith.constant 1 : index
    %c48_171 = arith.constant 48 : index
    %c0_172 = arith.constant 0 : index
    %364 = vector.load %arg2[%c1_170, %c48_171, %c0_172] : memref<8x208x1xf32, #tpu.memory_space<vmem>>, vector<1x8x1xf32>
    %365 = vector.shape_cast %364 : vector<1x8x1xf32> to vector<8x1xf32>
    %366 = vector.broadcast %365 : vector<8x1xf32> to vector<8x256xf32>
    %367 = arith.addf %366, %358 : vector<8x256xf32>
    %368 = arith.maximumf %313, %367 : vector<8x256xf32>
    %c2_173 = arith.constant 2 : index
    %c48_174 = arith.constant 48 : index
    %c0_175 = arith.constant 0 : index
    %369 = vector.load %arg2[%c2_173, %c48_174, %c0_175] : memref<8x208x1xf32, #tpu.memory_space<vmem>>, vector<1x8x1xf32>
    %370 = vector.shape_cast %369 : vector<1x8x1xf32> to vector<8x1xf32>
    %371 = vector.broadcast %370 : vector<8x1xf32> to vector<8x256xf32>
    %372 = arith.addf %371, %358 : vector<8x256xf32>
    %373 = arith.maximumf %318, %372 : vector<8x256xf32>
    %c3_176 = arith.constant 3 : index
    %c48_177 = arith.constant 48 : index
    %c0_178 = arith.constant 0 : index
    %374 = vector.load %arg2[%c3_176, %c48_177, %c0_178] : memref<8x208x1xf32, #tpu.memory_space<vmem>>, vector<1x8x1xf32>
    %375 = vector.shape_cast %374 : vector<1x8x1xf32> to vector<8x1xf32>
    %376 = vector.broadcast %375 : vector<8x1xf32> to vector<8x256xf32>
    %377 = arith.addf %376, %358 : vector<8x256xf32>
    %378 = arith.maximumf %323, %377 : vector<8x256xf32>
    %c4_179 = arith.constant 4 : index
    %c48_180 = arith.constant 48 : index
    %c0_181 = arith.constant 0 : index
    %379 = vector.load %arg2[%c4_179, %c48_180, %c0_181] : memref<8x208x1xf32, #tpu.memory_space<vmem>>, vector<1x8x1xf32>
    %380 = vector.shape_cast %379 : vector<1x8x1xf32> to vector<8x1xf32>
    %381 = vector.broadcast %380 : vector<8x1xf32> to vector<8x256xf32>
    %382 = arith.addf %381, %358 : vector<8x256xf32>
    %383 = arith.maximumf %328, %382 : vector<8x256xf32>
    %c5_182 = arith.constant 5 : index
    %c48_183 = arith.constant 48 : index
    %c0_184 = arith.constant 0 : index
    %384 = vector.load %arg2[%c5_182, %c48_183, %c0_184] : memref<8x208x1xf32, #tpu.memory_space<vmem>>, vector<1x8x1xf32>
    %385 = vector.shape_cast %384 : vector<1x8x1xf32> to vector<8x1xf32>
    %386 = vector.broadcast %385 : vector<8x1xf32> to vector<8x256xf32>
    %387 = arith.addf %386, %358 : vector<8x256xf32>
    %388 = arith.maximumf %333, %387 : vector<8x256xf32>
    %c6_185 = arith.constant 6 : index
    %c48_186 = arith.constant 48 : index
    %c0_187 = arith.constant 0 : index
    %389 = vector.load %arg2[%c6_185, %c48_186, %c0_187] : memref<8x208x1xf32, #tpu.memory_space<vmem>>, vector<1x8x1xf32>
    %390 = vector.shape_cast %389 : vector<1x8x1xf32> to vector<8x1xf32>
    %391 = vector.broadcast %390 : vector<8x1xf32> to vector<8x256xf32>
    %392 = arith.addf %391, %358 : vector<8x256xf32>
    %393 = arith.maximumf %338, %392 : vector<8x256xf32>
    %c7_188 = arith.constant 7 : index
    %c48_189 = arith.constant 48 : index
    %c0_190 = arith.constant 0 : index
    %394 = vector.load %arg2[%c7_188, %c48_189, %c0_190] : memref<8x208x1xf32, #tpu.memory_space<vmem>>, vector<1x8x1xf32>
    %395 = vector.shape_cast %394 : vector<1x8x1xf32> to vector<8x1xf32>
    %396 = vector.broadcast %395 : vector<8x1xf32> to vector<8x256xf32>
    %397 = arith.addf %396, %358 : vector<8x256xf32>
    %398 = arith.maximumf %343, %397 : vector<8x256xf32>
    %cst_191 = arith.constant 5.600000e+01 : f32
    %399 = vector.broadcast %cst_191 : f32 to vector<8x256xf32>
    %400 = arith.addf %5, %399 : vector<8x256xf32>
    %401 = vector.broadcast %1 : f32 to vector<8x256xf32>
    %402 = arith.mulf %400, %401 : vector<8x256xf32>
    %403 = arith.mulf %402, %402 : vector<8x256xf32>
    %404 = arith.mulf %403, %403 : vector<8x256xf32>
    %405 = arith.mulf %404, %404 : vector<8x256xf32>
    %406 = math.absf %400 : vector<8x256xf32>
    %cst_192 = arith.constant 1.000000e+02 : f32
    %407 = vector.broadcast %cst_192 : f32 to vector<8x256xf32>
    %408 = arith.cmpf ole, %406, %407 : vector<8x256xf32>
    %409 = arith.mulf %405, %405 : vector<8x256xf32>
    %cst_193 = arith.constant 0.000000e+00 : f32
    %410 = vector.broadcast %cst_193 : f32 to vector<8x256xf32>
    %411 = arith.subf %410, %409 : vector<8x256xf32>
    %cst_194 = arith.constant 0xFF800000 : f32
    %412 = vector.broadcast %cst_194 : f32 to vector<8x256xf32>
    %413 = arith.select %408, %411, %412 : vector<8x256xi1>, vector<8x256xf32>
    %c0_195 = arith.constant 0 : index
    %c56 = arith.constant 56 : index
    %c0_196 = arith.constant 0 : index
    %414 = vector.load %arg2[%c0_195, %c56, %c0_196] : memref<8x208x1xf32, #tpu.memory_space<vmem>>, vector<1x8x1xf32>
    %415 = vector.shape_cast %414 : vector<1x8x1xf32> to vector<8x1xf32>
    %416 = vector.broadcast %415 : vector<8x1xf32> to vector<8x256xf32>
    %417 = arith.addf %416, %413 : vector<8x256xf32>
    %418 = arith.maximumf %363, %417 : vector<8x256xf32>
    %c1_197 = arith.constant 1 : index
    %c56_198 = arith.constant 56 : index
    %c0_199 = arith.constant 0 : index
    %419 = vector.load %arg2[%c1_197, %c56_198, %c0_199] : memref<8x208x1xf32, #tpu.memory_space<vmem>>, vector<1x8x1xf32>
    %420 = vector.shape_cast %419 : vector<1x8x1xf32> to vector<8x1xf32>
    %421 = vector.broadcast %420 : vector<8x1xf32> to vector<8x256xf32>
    %422 = arith.addf %421, %413 : vector<8x256xf32>
    %423 = arith.maximumf %368, %422 : vector<8x256xf32>
    %c2_200 = arith.constant 2 : index
    %c56_201 = arith.constant 56 : index
    %c0_202 = arith.constant 0 : index
    %424 = vector.load %arg2[%c2_200, %c56_201, %c0_202] : memref<8x208x1xf32, #tpu.memory_space<vmem>>, vector<1x8x1xf32>
    %425 = vector.shape_cast %424 : vector<1x8x1xf32> to vector<8x1xf32>
    %426 = vector.broadcast %425 : vector<8x1xf32> to vector<8x256xf32>
    %427 = arith.addf %426, %413 : vector<8x256xf32>
    %428 = arith.maximumf %373, %427 : vector<8x256xf32>
    %c3_203 = arith.constant 3 : index
    %c56_204 = arith.constant 56 : index
    %c0_205 = arith.constant 0 : index
    %429 = vector.load %arg2[%c3_203, %c56_204, %c0_205] : memref<8x208x1xf32, #tpu.memory_space<vmem>>, vector<1x8x1xf32>
    %430 = vector.shape_cast %429 : vector<1x8x1xf32> to vector<8x1xf32>
    %431 = vector.broadcast %430 : vector<8x1xf32> to vector<8x256xf32>
    %432 = arith.addf %431, %413 : vector<8x256xf32>
    %433 = arith.maximumf %378, %432 : vector<8x256xf32>
    %c4_206 = arith.constant 4 : index
    %c56_207 = arith.constant 56 : index
    %c0_208 = arith.constant 0 : index
    %434 = vector.load %arg2[%c4_206, %c56_207, %c0_208] : memref<8x208x1xf32, #tpu.memory_space<vmem>>, vector<1x8x1xf32>
    %435 = vector.shape_cast %434 : vector<1x8x1xf32> to vector<8x1xf32>
    %436 = vector.broadcast %435 : vector<8x1xf32> to vector<8x256xf32>
    %437 = arith.addf %436, %413 : vector<8x256xf32>
    %438 = arith.maximumf %383, %437 : vector<8x256xf32>
    %c5_209 = arith.constant 5 : index
    %c56_210 = arith.constant 56 : index
    %c0_211 = arith.constant 0 : index
    %439 = vector.load %arg2[%c5_209, %c56_210, %c0_211] : memref<8x208x1xf32, #tpu.memory_space<vmem>>, vector<1x8x1xf32>
    %440 = vector.shape_cast %439 : vector<1x8x1xf32> to vector<8x1xf32>
    %441 = vector.broadcast %440 : vector<8x1xf32> to vector<8x256xf32>
    %442 = arith.addf %441, %413 : vector<8x256xf32>
    %443 = arith.maximumf %388, %442 : vector<8x256xf32>
    %c6_212 = arith.constant 6 : index
    %c56_213 = arith.constant 56 : index
    %c0_214 = arith.constant 0 : index
    %444 = vector.load %arg2[%c6_212, %c56_213, %c0_214] : memref<8x208x1xf32, #tpu.memory_space<vmem>>, vector<1x8x1xf32>
    %445 = vector.shape_cast %444 : vector<1x8x1xf32> to vector<8x1xf32>
    %446 = vector.broadcast %445 : vector<8x1xf32> to vector<8x256xf32>
    %447 = arith.addf %446, %413 : vector<8x256xf32>
    %448 = arith.maximumf %393, %447 : vector<8x256xf32>
    %c7_215 = arith.constant 7 : index
    %c56_216 = arith.constant 56 : index
    %c0_217 = arith.constant 0 : index
    %449 = vector.load %arg2[%c7_215, %c56_216, %c0_217] : memref<8x208x1xf32, #tpu.memory_space<vmem>>, vector<1x8x1xf32>
    %450 = vector.shape_cast %449 : vector<1x8x1xf32> to vector<8x1xf32>
    %451 = vector.broadcast %450 : vector<8x1xf32> to vector<8x256xf32>
    %452 = arith.addf %451, %413 : vector<8x256xf32>
    %453 = arith.maximumf %398, %452 : vector<8x256xf32>
    %cst_218 = arith.constant 6.400000e+01 : f32
    %454 = vector.broadcast %cst_218 : f32 to vector<8x256xf32>
    %455 = arith.addf %5, %454 : vector<8x256xf32>
    %456 = vector.broadcast %1 : f32 to vector<8x256xf32>
    %457 = arith.mulf %455, %456 : vector<8x256xf32>
    %458 = arith.mulf %457, %457 : vector<8x256xf32>
    %459 = arith.mulf %458, %458 : vector<8x256xf32>
    %460 = arith.mulf %459, %459 : vector<8x256xf32>
    %461 = math.absf %455 : vector<8x256xf32>
    %cst_219 = arith.constant 1.000000e+02 : f32
    %462 = vector.broadcast %cst_219 : f32 to vector<8x256xf32>
    %463 = arith.cmpf ole, %461, %462 : vector<8x256xf32>
    %464 = arith.mulf %460, %460 : vector<8x256xf32>
    %cst_220 = arith.constant 0.000000e+00 : f32
    %465 = vector.broadcast %cst_220 : f32 to vector<8x256xf32>
    %466 = arith.subf %465, %464 : vector<8x256xf32>
    %cst_221 = arith.constant 0xFF800000 : f32
    %467 = vector.broadcast %cst_221 : f32 to vector<8x256xf32>
    %468 = arith.select %463, %466, %467 : vector<8x256xi1>, vector<8x256xf32>
    %c0_222 = arith.constant 0 : index
    %c64 = arith.constant 64 : index
    %c0_223 = arith.constant 0 : index
    %469 = vector.load %arg2[%c0_222, %c64, %c0_223] : memref<8x208x1xf32, #tpu.memory_space<vmem>>, vector<1x8x1xf32>
    %470 = vector.shape_cast %469 : vector<1x8x1xf32> to vector<8x1xf32>
    %471 = vector.broadcast %470 : vector<8x1xf32> to vector<8x256xf32>
    %472 = arith.addf %471, %468 : vector<8x256xf32>
    %473 = arith.maximumf %418, %472 : vector<8x256xf32>
    %c1_224 = arith.constant 1 : index
    %c64_225 = arith.constant 64 : index
    %c0_226 = arith.constant 0 : index
    %474 = vector.load %arg2[%c1_224, %c64_225, %c0_226] : memref<8x208x1xf32, #tpu.memory_space<vmem>>, vector<1x8x1xf32>
    %475 = vector.shape_cast %474 : vector<1x8x1xf32> to vector<8x1xf32>
    %476 = vector.broadcast %475 : vector<8x1xf32> to vector<8x256xf32>
    %477 = arith.addf %476, %468 : vector<8x256xf32>
    %478 = arith.maximumf %423, %477 : vector<8x256xf32>
    %c2_227 = arith.constant 2 : index
    %c64_228 = arith.constant 64 : index
    %c0_229 = arith.constant 0 : index
    %479 = vector.load %arg2[%c2_227, %c64_228, %c0_229] : memref<8x208x1xf32, #tpu.memory_space<vmem>>, vector<1x8x1xf32>
    %480 = vector.shape_cast %479 : vector<1x8x1xf32> to vector<8x1xf32>
    %481 = vector.broadcast %480 : vector<8x1xf32> to vector<8x256xf32>
    %482 = arith.addf %481, %468 : vector<8x256xf32>
    %483 = arith.maximumf %428, %482 : vector<8x256xf32>
    %c3_230 = arith.constant 3 : index
    %c64_231 = arith.constant 64 : index
    %c0_232 = arith.constant 0 : index
    %484 = vector.load %arg2[%c3_230, %c64_231, %c0_232] : memref<8x208x1xf32, #tpu.memory_space<vmem>>, vector<1x8x1xf32>
    %485 = vector.shape_cast %484 : vector<1x8x1xf32> to vector<8x1xf32>
    %486 = vector.broadcast %485 : vector<8x1xf32> to vector<8x256xf32>
    %487 = arith.addf %486, %468 : vector<8x256xf32>
    %488 = arith.maximumf %433, %487 : vector<8x256xf32>
    %c4_233 = arith.constant 4 : index
    %c64_234 = arith.constant 64 : index
    %c0_235 = arith.constant 0 : index
    %489 = vector.load %arg2[%c4_233, %c64_234, %c0_235] : memref<8x208x1xf32, #tpu.memory_space<vmem>>, vector<1x8x1xf32>
    %490 = vector.shape_cast %489 : vector<1x8x1xf32> to vector<8x1xf32>
    %491 = vector.broadcast %490 : vector<8x1xf32> to vector<8x256xf32>
    %492 = arith.addf %491, %468 : vector<8x256xf32>
    %493 = arith.maximumf %438, %492 : vector<8x256xf32>
    %c5_236 = arith.constant 5 : index
    %c64_237 = arith.constant 64 : index
    %c0_238 = arith.constant 0 : index
    %494 = vector.load %arg2[%c5_236, %c64_237, %c0_238] : memref<8x208x1xf32, #tpu.memory_space<vmem>>, vector<1x8x1xf32>
    %495 = vector.shape_cast %494 : vector<1x8x1xf32> to vector<8x1xf32>
    %496 = vector.broadcast %495 : vector<8x1xf32> to vector<8x256xf32>
    %497 = arith.addf %496, %468 : vector<8x256xf32>
    %498 = arith.maximumf %443, %497 : vector<8x256xf32>
    %c6_239 = arith.constant 6 : index
    %c64_240 = arith.constant 64 : index
    %c0_241 = arith.constant 0 : index
    %499 = vector.load %arg2[%c6_239, %c64_240, %c0_241] : memref<8x208x1xf32, #tpu.memory_space<vmem>>, vector<1x8x1xf32>
    %500 = vector.shape_cast %499 : vector<1x8x1xf32> to vector<8x1xf32>
    %501 = vector.broadcast %500 : vector<8x1xf32> to vector<8x256xf32>
    %502 = arith.addf %501, %468 : vector<8x256xf32>
    %503 = arith.maximumf %448, %502 : vector<8x256xf32>
    %c7_242 = arith.constant 7 : index
    %c64_243 = arith.constant 64 : index
    %c0_244 = arith.constant 0 : index
    %504 = vector.load %arg2[%c7_242, %c64_243, %c0_244] : memref<8x208x1xf32, #tpu.memory_space<vmem>>, vector<1x8x1xf32>
    %505 = vector.shape_cast %504 : vector<1x8x1xf32> to vector<8x1xf32>
    %506 = vector.broadcast %505 : vector<8x1xf32> to vector<8x256xf32>
    %507 = arith.addf %506, %468 : vector<8x256xf32>
    %508 = arith.maximumf %453, %507 : vector<8x256xf32>
    %cst_245 = arith.constant 7.200000e+01 : f32
    %509 = vector.broadcast %cst_245 : f32 to vector<8x256xf32>
    %510 = arith.addf %5, %509 : vector<8x256xf32>
    %511 = vector.broadcast %1 : f32 to vector<8x256xf32>
    %512 = arith.mulf %510, %511 : vector<8x256xf32>
    %513 = arith.mulf %512, %512 : vector<8x256xf32>
    %514 = arith.mulf %513, %513 : vector<8x256xf32>
    %515 = arith.mulf %514, %514 : vector<8x256xf32>
    %516 = math.absf %510 : vector<8x256xf32>
    %cst_246 = arith.constant 1.000000e+02 : f32
    %517 = vector.broadcast %cst_246 : f32 to vector<8x256xf32>
    %518 = arith.cmpf ole, %516, %517 : vector<8x256xf32>
    %519 = arith.mulf %515, %515 : vector<8x256xf32>
    %cst_247 = arith.constant 0.000000e+00 : f32
    %520 = vector.broadcast %cst_247 : f32 to vector<8x256xf32>
    %521 = arith.subf %520, %519 : vector<8x256xf32>
    %cst_248 = arith.constant 0xFF800000 : f32
    %522 = vector.broadcast %cst_248 : f32 to vector<8x256xf32>
    %523 = arith.select %518, %521, %522 : vector<8x256xi1>, vector<8x256xf32>
    %c0_249 = arith.constant 0 : index
    %c72 = arith.constant 72 : index
    %c0_250 = arith.constant 0 : index
    %524 = vector.load %arg2[%c0_249, %c72, %c0_250] : memref<8x208x1xf32, #tpu.memory_space<vmem>>, vector<1x8x1xf32>
    %525 = vector.shape_cast %524 : vector<1x8x1xf32> to vector<8x1xf32>
    %526 = vector.broadcast %525 : vector<8x1xf32> to vector<8x256xf32>
    %527 = arith.addf %526, %523 : vector<8x256xf32>
    %528 = arith.maximumf %473, %527 : vector<8x256xf32>
    %c1_251 = arith.constant 1 : index
    %c72_252 = arith.constant 72 : index
    %c0_253 = arith.constant 0 : index
    %529 = vector.load %arg2[%c1_251, %c72_252, %c0_253] : memref<8x208x1xf32, #tpu.memory_space<vmem>>, vector<1x8x1xf32>
    %530 = vector.shape_cast %529 : vector<1x8x1xf32> to vector<8x1xf32>
    %531 = vector.broadcast %530 : vector<8x1xf32> to vector<8x256xf32>
    %532 = arith.addf %531, %523 : vector<8x256xf32>
    %533 = arith.maximumf %478, %532 : vector<8x256xf32>
    %c2_254 = arith.constant 2 : index
    %c72_255 = arith.constant 72 : index
    %c0_256 = arith.constant 0 : index
    %534 = vector.load %arg2[%c2_254, %c72_255, %c0_256] : memref<8x208x1xf32, #tpu.memory_space<vmem>>, vector<1x8x1xf32>
    %535 = vector.shape_cast %534 : vector<1x8x1xf32> to vector<8x1xf32>
    %536 = vector.broadcast %535 : vector<8x1xf32> to vector<8x256xf32>
    %537 = arith.addf %536, %523 : vector<8x256xf32>
    %538 = arith.maximumf %483, %537 : vector<8x256xf32>
    %c3_257 = arith.constant 3 : index
    %c72_258 = arith.constant 72 : index
    %c0_259 = arith.constant 0 : index
    %539 = vector.load %arg2[%c3_257, %c72_258, %c0_259] : memref<8x208x1xf32, #tpu.memory_space<vmem>>, vector<1x8x1xf32>
    %540 = vector.shape_cast %539 : vector<1x8x1xf32> to vector<8x1xf32>
    %541 = vector.broadcast %540 : vector<8x1xf32> to vector<8x256xf32>
    %542 = arith.addf %541, %523 : vector<8x256xf32>
    %543 = arith.maximumf %488, %542 : vector<8x256xf32>
    %c4_260 = arith.constant 4 : index
    %c72_261 = arith.constant 72 : index
    %c0_262 = arith.constant 0 : index
    %544 = vector.load %arg2[%c4_260, %c72_261, %c0_262] : memref<8x208x1xf32, #tpu.memory_space<vmem>>, vector<1x8x1xf32>
    %545 = vector.shape_cast %544 : vector<1x8x1xf32> to vector<8x1xf32>
    %546 = vector.broadcast %545 : vector<8x1xf32> to vector<8x256xf32>
    %547 = arith.addf %546, %523 : vector<8x256xf32>
    %548 = arith.maximumf %493, %547 : vector<8x256xf32>
    %c5_263 = arith.constant 5 : index
    %c72_264 = arith.constant 72 : index
    %c0_265 = arith.constant 0 : index
    %549 = vector.load %arg2[%c5_263, %c72_264, %c0_265] : memref<8x208x1xf32, #tpu.memory_space<vmem>>, vector<1x8x1xf32>
    %550 = vector.shape_cast %549 : vector<1x8x1xf32> to vector<8x1xf32>
    %551 = vector.broadcast %550 : vector<8x1xf32> to vector<8x256xf32>
    %552 = arith.addf %551, %523 : vector<8x256xf32>
    %553 = arith.maximumf %498, %552 : vector<8x256xf32>
    %c6_266 = arith.constant 6 : index
    %c72_267 = arith.constant 72 : index
    %c0_268 = arith.constant 0 : index
    %554 = vector.load %arg2[%c6_266, %c72_267, %c0_268] : memref<8x208x1xf32, #tpu.memory_space<vmem>>, vector<1x8x1xf32>
    %555 = vector.shape_cast %554 : vector<1x8x1xf32> to vector<8x1xf32>
    %556 = vector.broadcast %555 : vector<8x1xf32> to vector<8x256xf32>
    %557 = arith.addf %556, %523 : vector<8x256xf32>
    %558 = arith.maximumf %503, %557 : vector<8x256xf32>
    %c7_269 = arith.constant 7 : index
    %c72_270 = arith.constant 72 : index
    %c0_271 = arith.constant 0 : index
    %559 = vector.load %arg2[%c7_269, %c72_270, %c0_271] : memref<8x208x1xf32, #tpu.memory_space<vmem>>, vector<1x8x1xf32>
    %560 = vector.shape_cast %559 : vector<1x8x1xf32> to vector<8x1xf32>
    %561 = vector.broadcast %560 : vector<8x1xf32> to vector<8x256xf32>
    %562 = arith.addf %561, %523 : vector<8x256xf32>
    %563 = arith.maximumf %508, %562 : vector<8x256xf32>
    %cst_272 = arith.constant 8.000000e+01 : f32
    %564 = vector.broadcast %cst_272 : f32 to vector<8x256xf32>
    %565 = arith.addf %5, %564 : vector<8x256xf32>
    %566 = vector.broadcast %1 : f32 to vector<8x256xf32>
    %567 = arith.mulf %565, %566 : vector<8x256xf32>
    %568 = arith.mulf %567, %567 : vector<8x256xf32>
    %569 = arith.mulf %568, %568 : vector<8x256xf32>
    %570 = arith.mulf %569, %569 : vector<8x256xf32>
    %571 = math.absf %565 : vector<8x256xf32>
    %cst_273 = arith.constant 1.000000e+02 : f32
    %572 = vector.broadcast %cst_273 : f32 to vector<8x256xf32>
    %573 = arith.cmpf ole, %571, %572 : vector<8x256xf32>
    %574 = arith.mulf %570, %570 : vector<8x256xf32>
    %cst_274 = arith.constant 0.000000e+00 : f32
    %575 = vector.broadcast %cst_274 : f32 to vector<8x256xf32>
    %576 = arith.subf %575, %574 : vector<8x256xf32>
    %cst_275 = arith.constant 0xFF800000 : f32
    %577 = vector.broadcast %cst_275 : f32 to vector<8x256xf32>
    %578 = arith.select %573, %576, %577 : vector<8x256xi1>, vector<8x256xf32>
    %c0_276 = arith.constant 0 : index
    %c80 = arith.constant 80 : index
    %c0_277 = arith.constant 0 : index
    %579 = vector.load %arg2[%c0_276, %c80, %c0_277] : memref<8x208x1xf32, #tpu.memory_space<vmem>>, vector<1x8x1xf32>
    %580 = vector.shape_cast %579 : vector<1x8x1xf32> to vector<8x1xf32>
    %581 = vector.broadcast %580 : vector<8x1xf32> to vector<8x256xf32>
    %582 = arith.addf %581, %578 : vector<8x256xf32>
    %583 = arith.maximumf %528, %582 : vector<8x256xf32>
    %c1_278 = arith.constant 1 : index
    %c80_279 = arith.constant 80 : index
    %c0_280 = arith.constant 0 : index
    %584 = vector.load %arg2[%c1_278, %c80_279, %c0_280] : memref<8x208x1xf32, #tpu.memory_space<vmem>>, vector<1x8x1xf32>
    %585 = vector.shape_cast %584 : vector<1x8x1xf32> to vector<8x1xf32>
    %586 = vector.broadcast %585 : vector<8x1xf32> to vector<8x256xf32>
    %587 = arith.addf %586, %578 : vector<8x256xf32>
    %588 = arith.maximumf %533, %587 : vector<8x256xf32>
    %c2_281 = arith.constant 2 : index
    %c80_282 = arith.constant 80 : index
    %c0_283 = arith.constant 0 : index
    %589 = vector.load %arg2[%c2_281, %c80_282, %c0_283] : memref<8x208x1xf32, #tpu.memory_space<vmem>>, vector<1x8x1xf32>
    %590 = vector.shape_cast %589 : vector<1x8x1xf32> to vector<8x1xf32>
    %591 = vector.broadcast %590 : vector<8x1xf32> to vector<8x256xf32>
    %592 = arith.addf %591, %578 : vector<8x256xf32>
    %593 = arith.maximumf %538, %592 : vector<8x256xf32>
    %c3_284 = arith.constant 3 : index
    %c80_285 = arith.constant 80 : index
    %c0_286 = arith.constant 0 : index
    %594 = vector.load %arg2[%c3_284, %c80_285, %c0_286] : memref<8x208x1xf32, #tpu.memory_space<vmem>>, vector<1x8x1xf32>
    %595 = vector.shape_cast %594 : vector<1x8x1xf32> to vector<8x1xf32>
    %596 = vector.broadcast %595 : vector<8x1xf32> to vector<8x256xf32>
    %597 = arith.addf %596, %578 : vector<8x256xf32>
    %598 = arith.maximumf %543, %597 : vector<8x256xf32>
    %c4_287 = arith.constant 4 : index
    %c80_288 = arith.constant 80 : index
    %c0_289 = arith.constant 0 : index
    %599 = vector.load %arg2[%c4_287, %c80_288, %c0_289] : memref<8x208x1xf32, #tpu.memory_space<vmem>>, vector<1x8x1xf32>
    %600 = vector.shape_cast %599 : vector<1x8x1xf32> to vector<8x1xf32>
    %601 = vector.broadcast %600 : vector<8x1xf32> to vector<8x256xf32>
    %602 = arith.addf %601, %578 : vector<8x256xf32>
    %603 = arith.maximumf %548, %602 : vector<8x256xf32>
    %c5_290 = arith.constant 5 : index
    %c80_291 = arith.constant 80 : index
    %c0_292 = arith.constant 0 : index
    %604 = vector.load %arg2[%c5_290, %c80_291, %c0_292] : memref<8x208x1xf32, #tpu.memory_space<vmem>>, vector<1x8x1xf32>
    %605 = vector.shape_cast %604 : vector<1x8x1xf32> to vector<8x1xf32>
    %606 = vector.broadcast %605 : vector<8x1xf32> to vector<8x256xf32>
    %607 = arith.addf %606, %578 : vector<8x256xf32>
    %608 = arith.maximumf %553, %607 : vector<8x256xf32>
    %c6_293 = arith.constant 6 : index
    %c80_294 = arith.constant 80 : index
    %c0_295 = arith.constant 0 : index
    %609 = vector.load %arg2[%c6_293, %c80_294, %c0_295] : memref<8x208x1xf32, #tpu.memory_space<vmem>>, vector<1x8x1xf32>
    %610 = vector.shape_cast %609 : vector<1x8x1xf32> to vector<8x1xf32>
    %611 = vector.broadcast %610 : vector<8x1xf32> to vector<8x256xf32>
    %612 = arith.addf %611, %578 : vector<8x256xf32>
    %613 = arith.maximumf %558, %612 : vector<8x256xf32>
    %c7_296 = arith.constant 7 : index
    %c80_297 = arith.constant 80 : index
    %c0_298 = arith.constant 0 : index
    %614 = vector.load %arg2[%c7_296, %c80_297, %c0_298] : memref<8x208x1xf32, #tpu.memory_space<vmem>>, vector<1x8x1xf32>
    %615 = vector.shape_cast %614 : vector<1x8x1xf32> to vector<8x1xf32>
    %616 = vector.broadcast %615 : vector<8x1xf32> to vector<8x256xf32>
    %617 = arith.addf %616, %578 : vector<8x256xf32>
    %618 = arith.maximumf %563, %617 : vector<8x256xf32>
    %cst_299 = arith.constant 8.800000e+01 : f32
    %619 = vector.broadcast %cst_299 : f32 to vector<8x256xf32>
    %620 = arith.addf %5, %619 : vector<8x256xf32>
    %621 = vector.broadcast %1 : f32 to vector<8x256xf32>
    %622 = arith.mulf %620, %621 : vector<8x256xf32>
    %623 = arith.mulf %622, %622 : vector<8x256xf32>
    %624 = arith.mulf %623, %623 : vector<8x256xf32>
    %625 = arith.mulf %624, %624 : vector<8x256xf32>
    %626 = math.absf %620 : vector<8x256xf32>
    %cst_300 = arith.constant 1.000000e+02 : f32
    %627 = vector.broadcast %cst_300 : f32 to vector<8x256xf32>
    %628 = arith.cmpf ole, %626, %627 : vector<8x256xf32>
    %629 = arith.mulf %625, %625 : vector<8x256xf32>
    %cst_301 = arith.constant 0.000000e+00 : f32
    %630 = vector.broadcast %cst_301 : f32 to vector<8x256xf32>
    %631 = arith.subf %630, %629 : vector<8x256xf32>
    %cst_302 = arith.constant 0xFF800000 : f32
    %632 = vector.broadcast %cst_302 : f32 to vector<8x256xf32>
    %633 = arith.select %628, %631, %632 : vector<8x256xi1>, vector<8x256xf32>
    %c0_303 = arith.constant 0 : index
    %c88 = arith.constant 88 : index
    %c0_304 = arith.constant 0 : index
    %634 = vector.load %arg2[%c0_303, %c88, %c0_304] : memref<8x208x1xf32, #tpu.memory_space<vmem>>, vector<1x8x1xf32>
    %635 = vector.shape_cast %634 : vector<1x8x1xf32> to vector<8x1xf32>
    %636 = vector.broadcast %635 : vector<8x1xf32> to vector<8x256xf32>
    %637 = arith.addf %636, %633 : vector<8x256xf32>
    %638 = arith.maximumf %583, %637 : vector<8x256xf32>
    %c1_305 = arith.constant 1 : index
    %c88_306 = arith.constant 88 : index
    %c0_307 = arith.constant 0 : index
    %639 = vector.load %arg2[%c1_305, %c88_306, %c0_307] : memref<8x208x1xf32, #tpu.memory_space<vmem>>, vector<1x8x1xf32>
    %640 = vector.shape_cast %639 : vector<1x8x1xf32> to vector<8x1xf32>
    %641 = vector.broadcast %640 : vector<8x1xf32> to vector<8x256xf32>
    %642 = arith.addf %641, %633 : vector<8x256xf32>
    %643 = arith.maximumf %588, %642 : vector<8x256xf32>
    %c2_308 = arith.constant 2 : index
    %c88_309 = arith.constant 88 : index
    %c0_310 = arith.constant 0 : index
    %644 = vector.load %arg2[%c2_308, %c88_309, %c0_310] : memref<8x208x1xf32, #tpu.memory_space<vmem>>, vector<1x8x1xf32>
    %645 = vector.shape_cast %644 : vector<1x8x1xf32> to vector<8x1xf32>
    %646 = vector.broadcast %645 : vector<8x1xf32> to vector<8x256xf32>
    %647 = arith.addf %646, %633 : vector<8x256xf32>
    %648 = arith.maximumf %593, %647 : vector<8x256xf32>
    %c3_311 = arith.constant 3 : index
    %c88_312 = arith.constant 88 : index
    %c0_313 = arith.constant 0 : index
    %649 = vector.load %arg2[%c3_311, %c88_312, %c0_313] : memref<8x208x1xf32, #tpu.memory_space<vmem>>, vector<1x8x1xf32>
    %650 = vector.shape_cast %649 : vector<1x8x1xf32> to vector<8x1xf32>
    %651 = vector.broadcast %650 : vector<8x1xf32> to vector<8x256xf32>
    %652 = arith.addf %651, %633 : vector<8x256xf32>
    %653 = arith.maximumf %598, %652 : vector<8x256xf32>
    %c4_314 = arith.constant 4 : index
    %c88_315 = arith.constant 88 : index
    %c0_316 = arith.constant 0 : index
    %654 = vector.load %arg2[%c4_314, %c88_315, %c0_316] : memref<8x208x1xf32, #tpu.memory_space<vmem>>, vector<1x8x1xf32>
    %655 = vector.shape_cast %654 : vector<1x8x1xf32> to vector<8x1xf32>
    %656 = vector.broadcast %655 : vector<8x1xf32> to vector<8x256xf32>
    %657 = arith.addf %656, %633 : vector<8x256xf32>
    %658 = arith.maximumf %603, %657 : vector<8x256xf32>
    %c5_317 = arith.constant 5 : index
    %c88_318 = arith.constant 88 : index
    %c0_319 = arith.constant 0 : index
    %659 = vector.load %arg2[%c5_317, %c88_318, %c0_319] : memref<8x208x1xf32, #tpu.memory_space<vmem>>, vector<1x8x1xf32>
    %660 = vector.shape_cast %659 : vector<1x8x1xf32> to vector<8x1xf32>
    %661 = vector.broadcast %660 : vector<8x1xf32> to vector<8x256xf32>
    %662 = arith.addf %661, %633 : vector<8x256xf32>
    %663 = arith.maximumf %608, %662 : vector<8x256xf32>
    %c6_320 = arith.constant 6 : index
    %c88_321 = arith.constant 88 : index
    %c0_322 = arith.constant 0 : index
    %664 = vector.load %arg2[%c6_320, %c88_321, %c0_322] : memref<8x208x1xf32, #tpu.memory_space<vmem>>, vector<1x8x1xf32>
    %665 = vector.shape_cast %664 : vector<1x8x1xf32> to vector<8x1xf32>
    %666 = vector.broadcast %665 : vector<8x1xf32> to vector<8x256xf32>
    %667 = arith.addf %666, %633 : vector<8x256xf32>
    %668 = arith.maximumf %613, %667 : vector<8x256xf32>
    %c7_323 = arith.constant 7 : index
    %c88_324 = arith.constant 88 : index
    %c0_325 = arith.constant 0 : index
    %669 = vector.load %arg2[%c7_323, %c88_324, %c0_325] : memref<8x208x1xf32, #tpu.memory_space<vmem>>, vector<1x8x1xf32>
    %670 = vector.shape_cast %669 : vector<1x8x1xf32> to vector<8x1xf32>
    %671 = vector.broadcast %670 : vector<8x1xf32> to vector<8x256xf32>
    %672 = arith.addf %671, %633 : vector<8x256xf32>
    %673 = arith.maximumf %618, %672 : vector<8x256xf32>
    %cst_326 = arith.constant 9.600000e+01 : f32
    %674 = vector.broadcast %cst_326 : f32 to vector<8x256xf32>
    %675 = arith.addf %5, %674 : vector<8x256xf32>
    %676 = vector.broadcast %1 : f32 to vector<8x256xf32>
    %677 = arith.mulf %675, %676 : vector<8x256xf32>
    %678 = arith.mulf %677, %677 : vector<8x256xf32>
    %679 = arith.mulf %678, %678 : vector<8x256xf32>
    %680 = arith.mulf %679, %679 : vector<8x256xf32>
    %681 = math.absf %675 : vector<8x256xf32>
    %cst_327 = arith.constant 1.000000e+02 : f32
    %682 = vector.broadcast %cst_327 : f32 to vector<8x256xf32>
    %683 = arith.cmpf ole, %681, %682 : vector<8x256xf32>
    %684 = arith.mulf %680, %680 : vector<8x256xf32>
    %cst_328 = arith.constant 0.000000e+00 : f32
    %685 = vector.broadcast %cst_328 : f32 to vector<8x256xf32>
    %686 = arith.subf %685, %684 : vector<8x256xf32>
    %cst_329 = arith.constant 0xFF800000 : f32
    %687 = vector.broadcast %cst_329 : f32 to vector<8x256xf32>
    %688 = arith.select %683, %686, %687 : vector<8x256xi1>, vector<8x256xf32>
    %c0_330 = arith.constant 0 : index
    %c96 = arith.constant 96 : index
    %c0_331 = arith.constant 0 : index
    %689 = vector.load %arg2[%c0_330, %c96, %c0_331] : memref<8x208x1xf32, #tpu.memory_space<vmem>>, vector<1x8x1xf32>
    %690 = vector.shape_cast %689 : vector<1x8x1xf32> to vector<8x1xf32>
    %691 = vector.broadcast %690 : vector<8x1xf32> to vector<8x256xf32>
    %692 = arith.addf %691, %688 : vector<8x256xf32>
    %693 = arith.maximumf %638, %692 : vector<8x256xf32>
    %c1_332 = arith.constant 1 : index
    %c96_333 = arith.constant 96 : index
    %c0_334 = arith.constant 0 : index
    %694 = vector.load %arg2[%c1_332, %c96_333, %c0_334] : memref<8x208x1xf32, #tpu.memory_space<vmem>>, vector<1x8x1xf32>
    %695 = vector.shape_cast %694 : vector<1x8x1xf32> to vector<8x1xf32>
    %696 = vector.broadcast %695 : vector<8x1xf32> to vector<8x256xf32>
    %697 = arith.addf %696, %688 : vector<8x256xf32>
    %698 = arith.maximumf %643, %697 : vector<8x256xf32>
    %c2_335 = arith.constant 2 : index
    %c96_336 = arith.constant 96 : index
    %c0_337 = arith.constant 0 : index
    %699 = vector.load %arg2[%c2_335, %c96_336, %c0_337] : memref<8x208x1xf32, #tpu.memory_space<vmem>>, vector<1x8x1xf32>
    %700 = vector.shape_cast %699 : vector<1x8x1xf32> to vector<8x1xf32>
    %701 = vector.broadcast %700 : vector<8x1xf32> to vector<8x256xf32>
    %702 = arith.addf %701, %688 : vector<8x256xf32>
    %703 = arith.maximumf %648, %702 : vector<8x256xf32>
    %c3_338 = arith.constant 3 : index
    %c96_339 = arith.constant 96 : index
    %c0_340 = arith.constant 0 : index
    %704 = vector.load %arg2[%c3_338, %c96_339, %c0_340] : memref<8x208x1xf32, #tpu.memory_space<vmem>>, vector<1x8x1xf32>
    %705 = vector.shape_cast %704 : vector<1x8x1xf32> to vector<8x1xf32>
    %706 = vector.broadcast %705 : vector<8x1xf32> to vector<8x256xf32>
    %707 = arith.addf %706, %688 : vector<8x256xf32>
    %708 = arith.maximumf %653, %707 : vector<8x256xf32>
    %c4_341 = arith.constant 4 : index
    %c96_342 = arith.constant 96 : index
    %c0_343 = arith.constant 0 : index
    %709 = vector.load %arg2[%c4_341, %c96_342, %c0_343] : memref<8x208x1xf32, #tpu.memory_space<vmem>>, vector<1x8x1xf32>
    %710 = vector.shape_cast %709 : vector<1x8x1xf32> to vector<8x1xf32>
    %711 = vector.broadcast %710 : vector<8x1xf32> to vector<8x256xf32>
    %712 = arith.addf %711, %688 : vector<8x256xf32>
    %713 = arith.maximumf %658, %712 : vector<8x256xf32>
    %c5_344 = arith.constant 5 : index
    %c96_345 = arith.constant 96 : index
    %c0_346 = arith.constant 0 : index
    %714 = vector.load %arg2[%c5_344, %c96_345, %c0_346] : memref<8x208x1xf32, #tpu.memory_space<vmem>>, vector<1x8x1xf32>
    %715 = vector.shape_cast %714 : vector<1x8x1xf32> to vector<8x1xf32>
    %716 = vector.broadcast %715 : vector<8x1xf32> to vector<8x256xf32>
    %717 = arith.addf %716, %688 : vector<8x256xf32>
    %718 = arith.maximumf %663, %717 : vector<8x256xf32>
    %c6_347 = arith.constant 6 : index
    %c96_348 = arith.constant 96 : index
    %c0_349 = arith.constant 0 : index
    %719 = vector.load %arg2[%c6_347, %c96_348, %c0_349] : memref<8x208x1xf32, #tpu.memory_space<vmem>>, vector<1x8x1xf32>
    %720 = vector.shape_cast %719 : vector<1x8x1xf32> to vector<8x1xf32>
    %721 = vector.broadcast %720 : vector<8x1xf32> to vector<8x256xf32>
    %722 = arith.addf %721, %688 : vector<8x256xf32>
    %723 = arith.maximumf %668, %722 : vector<8x256xf32>
    %c7_350 = arith.constant 7 : index
    %c96_351 = arith.constant 96 : index
    %c0_352 = arith.constant 0 : index
    %724 = vector.load %arg2[%c7_350, %c96_351, %c0_352] : memref<8x208x1xf32, #tpu.memory_space<vmem>>, vector<1x8x1xf32>
    %725 = vector.shape_cast %724 : vector<1x8x1xf32> to vector<8x1xf32>
    %726 = vector.broadcast %725 : vector<8x1xf32> to vector<8x256xf32>
    %727 = arith.addf %726, %688 : vector<8x256xf32>
    %728 = arith.maximumf %673, %727 : vector<8x256xf32>
    %cst_353 = arith.constant 1.040000e+02 : f32
    %729 = vector.broadcast %cst_353 : f32 to vector<8x256xf32>
    %730 = arith.addf %5, %729 : vector<8x256xf32>
    %731 = vector.broadcast %1 : f32 to vector<8x256xf32>
    %732 = arith.mulf %730, %731 : vector<8x256xf32>
    %733 = arith.mulf %732, %732 : vector<8x256xf32>
    %734 = arith.mulf %733, %733 : vector<8x256xf32>
    %735 = arith.mulf %734, %734 : vector<8x256xf32>
    %736 = math.absf %730 : vector<8x256xf32>
    %cst_354 = arith.constant 1.000000e+02 : f32
    %737 = vector.broadcast %cst_354 : f32 to vector<8x256xf32>
    %738 = arith.cmpf ole, %736, %737 : vector<8x256xf32>
    %739 = arith.mulf %735, %735 : vector<8x256xf32>
    %cst_355 = arith.constant 0.000000e+00 : f32
    %740 = vector.broadcast %cst_355 : f32 to vector<8x256xf32>
    %741 = arith.subf %740, %739 : vector<8x256xf32>
    %cst_356 = arith.constant 0xFF800000 : f32
    %742 = vector.broadcast %cst_356 : f32 to vector<8x256xf32>
    %743 = arith.select %738, %741, %742 : vector<8x256xi1>, vector<8x256xf32>
    %c0_357 = arith.constant 0 : index
    %c104 = arith.constant 104 : index
    %c0_358 = arith.constant 0 : index
    %744 = vector.load %arg2[%c0_357, %c104, %c0_358] : memref<8x208x1xf32, #tpu.memory_space<vmem>>, vector<1x8x1xf32>
    %745 = vector.shape_cast %744 : vector<1x8x1xf32> to vector<8x1xf32>
    %746 = vector.broadcast %745 : vector<8x1xf32> to vector<8x256xf32>
    %747 = arith.addf %746, %743 : vector<8x256xf32>
    %748 = arith.maximumf %693, %747 : vector<8x256xf32>
    %c1_359 = arith.constant 1 : index
    %c104_360 = arith.constant 104 : index
    %c0_361 = arith.constant 0 : index
    %749 = vector.load %arg2[%c1_359, %c104_360, %c0_361] : memref<8x208x1xf32, #tpu.memory_space<vmem>>, vector<1x8x1xf32>
    %750 = vector.shape_cast %749 : vector<1x8x1xf32> to vector<8x1xf32>
    %751 = vector.broadcast %750 : vector<8x1xf32> to vector<8x256xf32>
    %752 = arith.addf %751, %743 : vector<8x256xf32>
    %753 = arith.maximumf %698, %752 : vector<8x256xf32>
    %c2_362 = arith.constant 2 : index
    %c104_363 = arith.constant 104 : index
    %c0_364 = arith.constant 0 : index
    %754 = vector.load %arg2[%c2_362, %c104_363, %c0_364] : memref<8x208x1xf32, #tpu.memory_space<vmem>>, vector<1x8x1xf32>
    %755 = vector.shape_cast %754 : vector<1x8x1xf32> to vector<8x1xf32>
    %756 = vector.broadcast %755 : vector<8x1xf32> to vector<8x256xf32>
    %757 = arith.addf %756, %743 : vector<8x256xf32>
    %758 = arith.maximumf %703, %757 : vector<8x256xf32>
    %c3_365 = arith.constant 3 : index
    %c104_366 = arith.constant 104 : index
    %c0_367 = arith.constant 0 : index
    %759 = vector.load %arg2[%c3_365, %c104_366, %c0_367] : memref<8x208x1xf32, #tpu.memory_space<vmem>>, vector<1x8x1xf32>
    %760 = vector.shape_cast %759 : vector<1x8x1xf32> to vector<8x1xf32>
    %761 = vector.broadcast %760 : vector<8x1xf32> to vector<8x256xf32>
    %762 = arith.addf %761, %743 : vector<8x256xf32>
    %763 = arith.maximumf %708, %762 : vector<8x256xf32>
    %c4_368 = arith.constant 4 : index
    %c104_369 = arith.constant 104 : index
    %c0_370 = arith.constant 0 : index
    %764 = vector.load %arg2[%c4_368, %c104_369, %c0_370] : memref<8x208x1xf32, #tpu.memory_space<vmem>>, vector<1x8x1xf32>
    %765 = vector.shape_cast %764 : vector<1x8x1xf32> to vector<8x1xf32>
    %766 = vector.broadcast %765 : vector<8x1xf32> to vector<8x256xf32>
    %767 = arith.addf %766, %743 : vector<8x256xf32>
    %768 = arith.maximumf %713, %767 : vector<8x256xf32>
    %c5_371 = arith.constant 5 : index
    %c104_372 = arith.constant 104 : index
    %c0_373 = arith.constant 0 : index
    %769 = vector.load %arg2[%c5_371, %c104_372, %c0_373] : memref<8x208x1xf32, #tpu.memory_space<vmem>>, vector<1x8x1xf32>
    %770 = vector.shape_cast %769 : vector<1x8x1xf32> to vector<8x1xf32>
    %771 = vector.broadcast %770 : vector<8x1xf32> to vector<8x256xf32>
    %772 = arith.addf %771, %743 : vector<8x256xf32>
    %773 = arith.maximumf %718, %772 : vector<8x256xf32>
    %c6_374 = arith.constant 6 : index
    %c104_375 = arith.constant 104 : index
    %c0_376 = arith.constant 0 : index
    %774 = vector.load %arg2[%c6_374, %c104_375, %c0_376] : memref<8x208x1xf32, #tpu.memory_space<vmem>>, vector<1x8x1xf32>
    %775 = vector.shape_cast %774 : vector<1x8x1xf32> to vector<8x1xf32>
    %776 = vector.broadcast %775 : vector<8x1xf32> to vector<8x256xf32>
    %777 = arith.addf %776, %743 : vector<8x256xf32>
    %778 = arith.maximumf %723, %777 : vector<8x256xf32>
    %c7_377 = arith.constant 7 : index
    %c104_378 = arith.constant 104 : index
    %c0_379 = arith.constant 0 : index
    %779 = vector.load %arg2[%c7_377, %c104_378, %c0_379] : memref<8x208x1xf32, #tpu.memory_space<vmem>>, vector<1x8x1xf32>
    %780 = vector.shape_cast %779 : vector<1x8x1xf32> to vector<8x1xf32>
    %781 = vector.broadcast %780 : vector<8x1xf32> to vector<8x256xf32>
    %782 = arith.addf %781, %743 : vector<8x256xf32>
    %783 = arith.maximumf %728, %782 : vector<8x256xf32>
    %cst_380 = arith.constant 1.120000e+02 : f32
    %784 = vector.broadcast %cst_380 : f32 to vector<8x256xf32>
    %785 = arith.addf %5, %784 : vector<8x256xf32>
    %786 = vector.broadcast %1 : f32 to vector<8x256xf32>
    %787 = arith.mulf %785, %786 : vector<8x256xf32>
    %788 = arith.mulf %787, %787 : vector<8x256xf32>
    %789 = arith.mulf %788, %788 : vector<8x256xf32>
    %790 = arith.mulf %789, %789 : vector<8x256xf32>
    %791 = math.absf %785 : vector<8x256xf32>
    %cst_381 = arith.constant 1.000000e+02 : f32
    %792 = vector.broadcast %cst_381 : f32 to vector<8x256xf32>
    %793 = arith.cmpf ole, %791, %792 : vector<8x256xf32>
    %794 = arith.mulf %790, %790 : vector<8x256xf32>
    %cst_382 = arith.constant 0.000000e+00 : f32
    %795 = vector.broadcast %cst_382 : f32 to vector<8x256xf32>
    %796 = arith.subf %795, %794 : vector<8x256xf32>
    %cst_383 = arith.constant 0xFF800000 : f32
    %797 = vector.broadcast %cst_383 : f32 to vector<8x256xf32>
    %798 = arith.select %793, %796, %797 : vector<8x256xi1>, vector<8x256xf32>
    %c0_384 = arith.constant 0 : index
    %c112 = arith.constant 112 : index
    %c0_385 = arith.constant 0 : index
    %799 = vector.load %arg2[%c0_384, %c112, %c0_385] : memref<8x208x1xf32, #tpu.memory_space<vmem>>, vector<1x8x1xf32>
    %800 = vector.shape_cast %799 : vector<1x8x1xf32> to vector<8x1xf32>
    %801 = vector.broadcast %800 : vector<8x1xf32> to vector<8x256xf32>
    %802 = arith.addf %801, %798 : vector<8x256xf32>
    %803 = arith.maximumf %748, %802 : vector<8x256xf32>
    %c1_386 = arith.constant 1 : index
    %c112_387 = arith.constant 112 : index
    %c0_388 = arith.constant 0 : index
    %804 = vector.load %arg2[%c1_386, %c112_387, %c0_388] : memref<8x208x1xf32, #tpu.memory_space<vmem>>, vector<1x8x1xf32>
    %805 = vector.shape_cast %804 : vector<1x8x1xf32> to vector<8x1xf32>
    %806 = vector.broadcast %805 : vector<8x1xf32> to vector<8x256xf32>
    %807 = arith.addf %806, %798 : vector<8x256xf32>
    %808 = arith.maximumf %753, %807 : vector<8x256xf32>
    %c2_389 = arith.constant 2 : index
    %c112_390 = arith.constant 112 : index
    %c0_391 = arith.constant 0 : index
    %809 = vector.load %arg2[%c2_389, %c112_390, %c0_391] : memref<8x208x1xf32, #tpu.memory_space<vmem>>, vector<1x8x1xf32>
    %810 = vector.shape_cast %809 : vector<1x8x1xf32> to vector<8x1xf32>
    %811 = vector.broadcast %810 : vector<8x1xf32> to vector<8x256xf32>
    %812 = arith.addf %811, %798 : vector<8x256xf32>
    %813 = arith.maximumf %758, %812 : vector<8x256xf32>
    %c3_392 = arith.constant 3 : index
    %c112_393 = arith.constant 112 : index
    %c0_394 = arith.constant 0 : index
    %814 = vector.load %arg2[%c3_392, %c112_393, %c0_394] : memref<8x208x1xf32, #tpu.memory_space<vmem>>, vector<1x8x1xf32>
    %815 = vector.shape_cast %814 : vector<1x8x1xf32> to vector<8x1xf32>
    %816 = vector.broadcast %815 : vector<8x1xf32> to vector<8x256xf32>
    %817 = arith.addf %816, %798 : vector<8x256xf32>
    %818 = arith.maximumf %763, %817 : vector<8x256xf32>
    %c4_395 = arith.constant 4 : index
    %c112_396 = arith.constant 112 : index
    %c0_397 = arith.constant 0 : index
    %819 = vector.load %arg2[%c4_395, %c112_396, %c0_397] : memref<8x208x1xf32, #tpu.memory_space<vmem>>, vector<1x8x1xf32>
    %820 = vector.shape_cast %819 : vector<1x8x1xf32> to vector<8x1xf32>
    %821 = vector.broadcast %820 : vector<8x1xf32> to vector<8x256xf32>
    %822 = arith.addf %821, %798 : vector<8x256xf32>
    %823 = arith.maximumf %768, %822 : vector<8x256xf32>
    %c5_398 = arith.constant 5 : index
    %c112_399 = arith.constant 112 : index
    %c0_400 = arith.constant 0 : index
    %824 = vector.load %arg2[%c5_398, %c112_399, %c0_400] : memref<8x208x1xf32, #tpu.memory_space<vmem>>, vector<1x8x1xf32>
    %825 = vector.shape_cast %824 : vector<1x8x1xf32> to vector<8x1xf32>
    %826 = vector.broadcast %825 : vector<8x1xf32> to vector<8x256xf32>
    %827 = arith.addf %826, %798 : vector<8x256xf32>
    %828 = arith.maximumf %773, %827 : vector<8x256xf32>
    %c6_401 = arith.constant 6 : index
    %c112_402 = arith.constant 112 : index
    %c0_403 = arith.constant 0 : index
    %829 = vector.load %arg2[%c6_401, %c112_402, %c0_403] : memref<8x208x1xf32, #tpu.memory_space<vmem>>, vector<1x8x1xf32>
    %830 = vector.shape_cast %829 : vector<1x8x1xf32> to vector<8x1xf32>
    %831 = vector.broadcast %830 : vector<8x1xf32> to vector<8x256xf32>
    %832 = arith.addf %831, %798 : vector<8x256xf32>
    %833 = arith.maximumf %778, %832 : vector<8x256xf32>
    %c7_404 = arith.constant 7 : index
    %c112_405 = arith.constant 112 : index
    %c0_406 = arith.constant 0 : index
    %834 = vector.load %arg2[%c7_404, %c112_405, %c0_406] : memref<8x208x1xf32, #tpu.memory_space<vmem>>, vector<1x8x1xf32>
    %835 = vector.shape_cast %834 : vector<1x8x1xf32> to vector<8x1xf32>
    %836 = vector.broadcast %835 : vector<8x1xf32> to vector<8x256xf32>
    %837 = arith.addf %836, %798 : vector<8x256xf32>
    %838 = arith.maximumf %783, %837 : vector<8x256xf32>
    %cst_407 = arith.constant 1.200000e+02 : f32
    %839 = vector.broadcast %cst_407 : f32 to vector<8x256xf32>
    %840 = arith.addf %5, %839 : vector<8x256xf32>
    %841 = vector.broadcast %1 : f32 to vector<8x256xf32>
    %842 = arith.mulf %840, %841 : vector<8x256xf32>
    %843 = arith.mulf %842, %842 : vector<8x256xf32>
    %844 = arith.mulf %843, %843 : vector<8x256xf32>
    %845 = arith.mulf %844, %844 : vector<8x256xf32>
    %846 = math.absf %840 : vector<8x256xf32>
    %cst_408 = arith.constant 1.000000e+02 : f32
    %847 = vector.broadcast %cst_408 : f32 to vector<8x256xf32>
    %848 = arith.cmpf ole, %846, %847 : vector<8x256xf32>
    %849 = arith.mulf %845, %845 : vector<8x256xf32>
    %cst_409 = arith.constant 0.000000e+00 : f32
    %850 = vector.broadcast %cst_409 : f32 to vector<8x256xf32>
    %851 = arith.subf %850, %849 : vector<8x256xf32>
    %cst_410 = arith.constant 0xFF800000 : f32
    %852 = vector.broadcast %cst_410 : f32 to vector<8x256xf32>
    %853 = arith.select %848, %851, %852 : vector<8x256xi1>, vector<8x256xf32>
    %c0_411 = arith.constant 0 : index
    %c120 = arith.constant 120 : index
    %c0_412 = arith.constant 0 : index
    %854 = vector.load %arg2[%c0_411, %c120, %c0_412] : memref<8x208x1xf32, #tpu.memory_space<vmem>>, vector<1x8x1xf32>
    %855 = vector.shape_cast %854 : vector<1x8x1xf32> to vector<8x1xf32>
    %856 = vector.broadcast %855 : vector<8x1xf32> to vector<8x256xf32>
    %857 = arith.addf %856, %853 : vector<8x256xf32>
    %858 = arith.maximumf %803, %857 : vector<8x256xf32>
    %c1_413 = arith.constant 1 : index
    %c120_414 = arith.constant 120 : index
    %c0_415 = arith.constant 0 : index
    %859 = vector.load %arg2[%c1_413, %c120_414, %c0_415] : memref<8x208x1xf32, #tpu.memory_space<vmem>>, vector<1x8x1xf32>
    %860 = vector.shape_cast %859 : vector<1x8x1xf32> to vector<8x1xf32>
    %861 = vector.broadcast %860 : vector<8x1xf32> to vector<8x256xf32>
    %862 = arith.addf %861, %853 : vector<8x256xf32>
    %863 = arith.maximumf %808, %862 : vector<8x256xf32>
    %c2_416 = arith.constant 2 : index
    %c120_417 = arith.constant 120 : index
    %c0_418 = arith.constant 0 : index
    %864 = vector.load %arg2[%c2_416, %c120_417, %c0_418] : memref<8x208x1xf32, #tpu.memory_space<vmem>>, vector<1x8x1xf32>
    %865 = vector.shape_cast %864 : vector<1x8x1xf32> to vector<8x1xf32>
    %866 = vector.broadcast %865 : vector<8x1xf32> to vector<8x256xf32>
    %867 = arith.addf %866, %853 : vector<8x256xf32>
    %868 = arith.maximumf %813, %867 : vector<8x256xf32>
    %c3_419 = arith.constant 3 : index
    %c120_420 = arith.constant 120 : index
    %c0_421 = arith.constant 0 : index
    %869 = vector.load %arg2[%c3_419, %c120_420, %c0_421] : memref<8x208x1xf32, #tpu.memory_space<vmem>>, vector<1x8x1xf32>
    %870 = vector.shape_cast %869 : vector<1x8x1xf32> to vector<8x1xf32>
    %871 = vector.broadcast %870 : vector<8x1xf32> to vector<8x256xf32>
    %872 = arith.addf %871, %853 : vector<8x256xf32>
    %873 = arith.maximumf %818, %872 : vector<8x256xf32>
    %c4_422 = arith.constant 4 : index
    %c120_423 = arith.constant 120 : index
    %c0_424 = arith.constant 0 : index
    %874 = vector.load %arg2[%c4_422, %c120_423, %c0_424] : memref<8x208x1xf32, #tpu.memory_space<vmem>>, vector<1x8x1xf32>
    %875 = vector.shape_cast %874 : vector<1x8x1xf32> to vector<8x1xf32>
    %876 = vector.broadcast %875 : vector<8x1xf32> to vector<8x256xf32>
    %877 = arith.addf %876, %853 : vector<8x256xf32>
    %878 = arith.maximumf %823, %877 : vector<8x256xf32>
    %c5_425 = arith.constant 5 : index
    %c120_426 = arith.constant 120 : index
    %c0_427 = arith.constant 0 : index
    %879 = vector.load %arg2[%c5_425, %c120_426, %c0_427] : memref<8x208x1xf32, #tpu.memory_space<vmem>>, vector<1x8x1xf32>
    %880 = vector.shape_cast %879 : vector<1x8x1xf32> to vector<8x1xf32>
    %881 = vector.broadcast %880 : vector<8x1xf32> to vector<8x256xf32>
    %882 = arith.addf %881, %853 : vector<8x256xf32>
    %883 = arith.maximumf %828, %882 : vector<8x256xf32>
    %c6_428 = arith.constant 6 : index
    %c120_429 = arith.constant 120 : index
    %c0_430 = arith.constant 0 : index
    %884 = vector.load %arg2[%c6_428, %c120_429, %c0_430] : memref<8x208x1xf32, #tpu.memory_space<vmem>>, vector<1x8x1xf32>
    %885 = vector.shape_cast %884 : vector<1x8x1xf32> to vector<8x1xf32>
    %886 = vector.broadcast %885 : vector<8x1xf32> to vector<8x256xf32>
    %887 = arith.addf %886, %853 : vector<8x256xf32>
    %888 = arith.maximumf %833, %887 : vector<8x256xf32>
    %c7_431 = arith.constant 7 : index
    %c120_432 = arith.constant 120 : index
    %c0_433 = arith.constant 0 : index
    %889 = vector.load %arg2[%c7_431, %c120_432, %c0_433] : memref<8x208x1xf32, #tpu.memory_space<vmem>>, vector<1x8x1xf32>
    %890 = vector.shape_cast %889 : vector<1x8x1xf32> to vector<8x1xf32>
    %891 = vector.broadcast %890 : vector<8x1xf32> to vector<8x256xf32>
    %892 = arith.addf %891, %853 : vector<8x256xf32>
    %893 = arith.maximumf %838, %892 : vector<8x256xf32>
    %cst_434 = arith.constant 1.280000e+02 : f32
    %894 = vector.broadcast %cst_434 : f32 to vector<8x256xf32>
    %895 = arith.addf %5, %894 : vector<8x256xf32>
    %896 = vector.broadcast %1 : f32 to vector<8x256xf32>
    %897 = arith.mulf %895, %896 : vector<8x256xf32>
    %898 = arith.mulf %897, %897 : vector<8x256xf32>
    %899 = arith.mulf %898, %898 : vector<8x256xf32>
    %900 = arith.mulf %899, %899 : vector<8x256xf32>
    %901 = math.absf %895 : vector<8x256xf32>
    %cst_435 = arith.constant 1.000000e+02 : f32
    %902 = vector.broadcast %cst_435 : f32 to vector<8x256xf32>
    %903 = arith.cmpf ole, %901, %902 : vector<8x256xf32>
    %904 = arith.mulf %900, %900 : vector<8x256xf32>
    %cst_436 = arith.constant 0.000000e+00 : f32
    %905 = vector.broadcast %cst_436 : f32 to vector<8x256xf32>
    %906 = arith.subf %905, %904 : vector<8x256xf32>
    %cst_437 = arith.constant 0xFF800000 : f32
    %907 = vector.broadcast %cst_437 : f32 to vector<8x256xf32>
    %908 = arith.select %903, %906, %907 : vector<8x256xi1>, vector<8x256xf32>
    %c0_438 = arith.constant 0 : index
    %c128 = arith.constant 128 : index
    %c0_439 = arith.constant 0 : index
    %909 = vector.load %arg2[%c0_438, %c128, %c0_439] : memref<8x208x1xf32, #tpu.memory_space<vmem>>, vector<1x8x1xf32>
    %910 = vector.shape_cast %909 : vector<1x8x1xf32> to vector<8x1xf32>
    %911 = vector.broadcast %910 : vector<8x1xf32> to vector<8x256xf32>
    %912 = arith.addf %911, %908 : vector<8x256xf32>
    %913 = arith.maximumf %858, %912 : vector<8x256xf32>
    %c1_440 = arith.constant 1 : index
    %c128_441 = arith.constant 128 : index
    %c0_442 = arith.constant 0 : index
    %914 = vector.load %arg2[%c1_440, %c128_441, %c0_442] : memref<8x208x1xf32, #tpu.memory_space<vmem>>, vector<1x8x1xf32>
    %915 = vector.shape_cast %914 : vector<1x8x1xf32> to vector<8x1xf32>
    %916 = vector.broadcast %915 : vector<8x1xf32> to vector<8x256xf32>
    %917 = arith.addf %916, %908 : vector<8x256xf32>
    %918 = arith.maximumf %863, %917 : vector<8x256xf32>
    %c2_443 = arith.constant 2 : index
    %c128_444 = arith.constant 128 : index
    %c0_445 = arith.constant 0 : index
    %919 = vector.load %arg2[%c2_443, %c128_444, %c0_445] : memref<8x208x1xf32, #tpu.memory_space<vmem>>, vector<1x8x1xf32>
    %920 = vector.shape_cast %919 : vector<1x8x1xf32> to vector<8x1xf32>
    %921 = vector.broadcast %920 : vector<8x1xf32> to vector<8x256xf32>
    %922 = arith.addf %921, %908 : vector<8x256xf32>
    %923 = arith.maximumf %868, %922 : vector<8x256xf32>
    %c3_446 = arith.constant 3 : index
    %c128_447 = arith.constant 128 : index
    %c0_448 = arith.constant 0 : index
    %924 = vector.load %arg2[%c3_446, %c128_447, %c0_448] : memref<8x208x1xf32, #tpu.memory_space<vmem>>, vector<1x8x1xf32>
    %925 = vector.shape_cast %924 : vector<1x8x1xf32> to vector<8x1xf32>
    %926 = vector.broadcast %925 : vector<8x1xf32> to vector<8x256xf32>
    %927 = arith.addf %926, %908 : vector<8x256xf32>
    %928 = arith.maximumf %873, %927 : vector<8x256xf32>
    %c4_449 = arith.constant 4 : index
    %c128_450 = arith.constant 128 : index
    %c0_451 = arith.constant 0 : index
    %929 = vector.load %arg2[%c4_449, %c128_450, %c0_451] : memref<8x208x1xf32, #tpu.memory_space<vmem>>, vector<1x8x1xf32>
    %930 = vector.shape_cast %929 : vector<1x8x1xf32> to vector<8x1xf32>
    %931 = vector.broadcast %930 : vector<8x1xf32> to vector<8x256xf32>
    %932 = arith.addf %931, %908 : vector<8x256xf32>
    %933 = arith.maximumf %878, %932 : vector<8x256xf32>
    %c5_452 = arith.constant 5 : index
    %c128_453 = arith.constant 128 : index
    %c0_454 = arith.constant 0 : index
    %934 = vector.load %arg2[%c5_452, %c128_453, %c0_454] : memref<8x208x1xf32, #tpu.memory_space<vmem>>, vector<1x8x1xf32>
    %935 = vector.shape_cast %934 : vector<1x8x1xf32> to vector<8x1xf32>
    %936 = vector.broadcast %935 : vector<8x1xf32> to vector<8x256xf32>
    %937 = arith.addf %936, %908 : vector<8x256xf32>
    %938 = arith.maximumf %883, %937 : vector<8x256xf32>
    %c6_455 = arith.constant 6 : index
    %c128_456 = arith.constant 128 : index
    %c0_457 = arith.constant 0 : index
    %939 = vector.load %arg2[%c6_455, %c128_456, %c0_457] : memref<8x208x1xf32, #tpu.memory_space<vmem>>, vector<1x8x1xf32>
    %940 = vector.shape_cast %939 : vector<1x8x1xf32> to vector<8x1xf32>
    %941 = vector.broadcast %940 : vector<8x1xf32> to vector<8x256xf32>
    %942 = arith.addf %941, %908 : vector<8x256xf32>
    %943 = arith.maximumf %888, %942 : vector<8x256xf32>
    %c7_458 = arith.constant 7 : index
    %c128_459 = arith.constant 128 : index
    %c0_460 = arith.constant 0 : index
    %944 = vector.load %arg2[%c7_458, %c128_459, %c0_460] : memref<8x208x1xf32, #tpu.memory_space<vmem>>, vector<1x8x1xf32>
    %945 = vector.shape_cast %944 : vector<1x8x1xf32> to vector<8x1xf32>
    %946 = vector.broadcast %945 : vector<8x1xf32> to vector<8x256xf32>
    %947 = arith.addf %946, %908 : vector<8x256xf32>
    %948 = arith.maximumf %893, %947 : vector<8x256xf32>
    %cst_461 = arith.constant 1.360000e+02 : f32
    %949 = vector.broadcast %cst_461 : f32 to vector<8x256xf32>
    %950 = arith.addf %5, %949 : vector<8x256xf32>
    %951 = vector.broadcast %1 : f32 to vector<8x256xf32>
    %952 = arith.mulf %950, %951 : vector<8x256xf32>
    %953 = arith.mulf %952, %952 : vector<8x256xf32>
    %954 = arith.mulf %953, %953 : vector<8x256xf32>
    %955 = arith.mulf %954, %954 : vector<8x256xf32>
    %956 = math.absf %950 : vector<8x256xf32>
    %cst_462 = arith.constant 1.000000e+02 : f32
    %957 = vector.broadcast %cst_462 : f32 to vector<8x256xf32>
    %958 = arith.cmpf ole, %956, %957 : vector<8x256xf32>
    %959 = arith.mulf %955, %955 : vector<8x256xf32>
    %cst_463 = arith.constant 0.000000e+00 : f32
    %960 = vector.broadcast %cst_463 : f32 to vector<8x256xf32>
    %961 = arith.subf %960, %959 : vector<8x256xf32>
    %cst_464 = arith.constant 0xFF800000 : f32
    %962 = vector.broadcast %cst_464 : f32 to vector<8x256xf32>
    %963 = arith.select %958, %961, %962 : vector<8x256xi1>, vector<8x256xf32>
    %c0_465 = arith.constant 0 : index
    %c136 = arith.constant 136 : index
    %c0_466 = arith.constant 0 : index
    %964 = vector.load %arg2[%c0_465, %c136, %c0_466] : memref<8x208x1xf32, #tpu.memory_space<vmem>>, vector<1x8x1xf32>
    %965 = vector.shape_cast %964 : vector<1x8x1xf32> to vector<8x1xf32>
    %966 = vector.broadcast %965 : vector<8x1xf32> to vector<8x256xf32>
    %967 = arith.addf %966, %963 : vector<8x256xf32>
    %968 = arith.maximumf %913, %967 : vector<8x256xf32>
    %c1_467 = arith.constant 1 : index
    %c136_468 = arith.constant 136 : index
    %c0_469 = arith.constant 0 : index
    %969 = vector.load %arg2[%c1_467, %c136_468, %c0_469] : memref<8x208x1xf32, #tpu.memory_space<vmem>>, vector<1x8x1xf32>
    %970 = vector.shape_cast %969 : vector<1x8x1xf32> to vector<8x1xf32>
    %971 = vector.broadcast %970 : vector<8x1xf32> to vector<8x256xf32>
    %972 = arith.addf %971, %963 : vector<8x256xf32>
    %973 = arith.maximumf %918, %972 : vector<8x256xf32>
    %c2_470 = arith.constant 2 : index
    %c136_471 = arith.constant 136 : index
    %c0_472 = arith.constant 0 : index
    %974 = vector.load %arg2[%c2_470, %c136_471, %c0_472] : memref<8x208x1xf32, #tpu.memory_space<vmem>>, vector<1x8x1xf32>
    %975 = vector.shape_cast %974 : vector<1x8x1xf32> to vector<8x1xf32>
    %976 = vector.broadcast %975 : vector<8x1xf32> to vector<8x256xf32>
    %977 = arith.addf %976, %963 : vector<8x256xf32>
    %978 = arith.maximumf %923, %977 : vector<8x256xf32>
    %c3_473 = arith.constant 3 : index
    %c136_474 = arith.constant 136 : index
    %c0_475 = arith.constant 0 : index
    %979 = vector.load %arg2[%c3_473, %c136_474, %c0_475] : memref<8x208x1xf32, #tpu.memory_space<vmem>>, vector<1x8x1xf32>
    %980 = vector.shape_cast %979 : vector<1x8x1xf32> to vector<8x1xf32>
    %981 = vector.broadcast %980 : vector<8x1xf32> to vector<8x256xf32>
    %982 = arith.addf %981, %963 : vector<8x256xf32>
    %983 = arith.maximumf %928, %982 : vector<8x256xf32>
    %c4_476 = arith.constant 4 : index
    %c136_477 = arith.constant 136 : index
    %c0_478 = arith.constant 0 : index
    %984 = vector.load %arg2[%c4_476, %c136_477, %c0_478] : memref<8x208x1xf32, #tpu.memory_space<vmem>>, vector<1x8x1xf32>
    %985 = vector.shape_cast %984 : vector<1x8x1xf32> to vector<8x1xf32>
    %986 = vector.broadcast %985 : vector<8x1xf32> to vector<8x256xf32>
    %987 = arith.addf %986, %963 : vector<8x256xf32>
    %988 = arith.maximumf %933, %987 : vector<8x256xf32>
    %c5_479 = arith.constant 5 : index
    %c136_480 = arith.constant 136 : index
    %c0_481 = arith.constant 0 : index
    %989 = vector.load %arg2[%c5_479, %c136_480, %c0_481] : memref<8x208x1xf32, #tpu.memory_space<vmem>>, vector<1x8x1xf32>
    %990 = vector.shape_cast %989 : vector<1x8x1xf32> to vector<8x1xf32>
    %991 = vector.broadcast %990 : vector<8x1xf32> to vector<8x256xf32>
    %992 = arith.addf %991, %963 : vector<8x256xf32>
    %993 = arith.maximumf %938, %992 : vector<8x256xf32>
    %c6_482 = arith.constant 6 : index
    %c136_483 = arith.constant 136 : index
    %c0_484 = arith.constant 0 : index
    %994 = vector.load %arg2[%c6_482, %c136_483, %c0_484] : memref<8x208x1xf32, #tpu.memory_space<vmem>>, vector<1x8x1xf32>
    %995 = vector.shape_cast %994 : vector<1x8x1xf32> to vector<8x1xf32>
    %996 = vector.broadcast %995 : vector<8x1xf32> to vector<8x256xf32>
    %997 = arith.addf %996, %963 : vector<8x256xf32>
    %998 = arith.maximumf %943, %997 : vector<8x256xf32>
    %c7_485 = arith.constant 7 : index
    %c136_486 = arith.constant 136 : index
    %c0_487 = arith.constant 0 : index
    %999 = vector.load %arg2[%c7_485, %c136_486, %c0_487] : memref<8x208x1xf32, #tpu.memory_space<vmem>>, vector<1x8x1xf32>
    %1000 = vector.shape_cast %999 : vector<1x8x1xf32> to vector<8x1xf32>
    %1001 = vector.broadcast %1000 : vector<8x1xf32> to vector<8x256xf32>
    %1002 = arith.addf %1001, %963 : vector<8x256xf32>
    %1003 = arith.maximumf %948, %1002 : vector<8x256xf32>
    %cst_488 = arith.constant 1.440000e+02 : f32
    %1004 = vector.broadcast %cst_488 : f32 to vector<8x256xf32>
    %1005 = arith.addf %5, %1004 : vector<8x256xf32>
    %1006 = vector.broadcast %1 : f32 to vector<8x256xf32>
    %1007 = arith.mulf %1005, %1006 : vector<8x256xf32>
    %1008 = arith.mulf %1007, %1007 : vector<8x256xf32>
    %1009 = arith.mulf %1008, %1008 : vector<8x256xf32>
    %1010 = arith.mulf %1009, %1009 : vector<8x256xf32>
    %1011 = math.absf %1005 : vector<8x256xf32>
    %cst_489 = arith.constant 1.000000e+02 : f32
    %1012 = vector.broadcast %cst_489 : f32 to vector<8x256xf32>
    %1013 = arith.cmpf ole, %1011, %1012 : vector<8x256xf32>
    %1014 = arith.mulf %1010, %1010 : vector<8x256xf32>
    %cst_490 = arith.constant 0.000000e+00 : f32
    %1015 = vector.broadcast %cst_490 : f32 to vector<8x256xf32>
    %1016 = arith.subf %1015, %1014 : vector<8x256xf32>
    %cst_491 = arith.constant 0xFF800000 : f32
    %1017 = vector.broadcast %cst_491 : f32 to vector<8x256xf32>
    %1018 = arith.select %1013, %1016, %1017 : vector<8x256xi1>, vector<8x256xf32>
    %c0_492 = arith.constant 0 : index
    %c144 = arith.constant 144 : index
    %c0_493 = arith.constant 0 : index
    %1019 = vector.load %arg2[%c0_492, %c144, %c0_493] : memref<8x208x1xf32, #tpu.memory_space<vmem>>, vector<1x8x1xf32>
    %1020 = vector.shape_cast %1019 : vector<1x8x1xf32> to vector<8x1xf32>
    %1021 = vector.broadcast %1020 : vector<8x1xf32> to vector<8x256xf32>
    %1022 = arith.addf %1021, %1018 : vector<8x256xf32>
    %1023 = arith.maximumf %968, %1022 : vector<8x256xf32>
    %c1_494 = arith.constant 1 : index
    %c144_495 = arith.constant 144 : index
    %c0_496 = arith.constant 0 : index
    %1024 = vector.load %arg2[%c1_494, %c144_495, %c0_496] : memref<8x208x1xf32, #tpu.memory_space<vmem>>, vector<1x8x1xf32>
    %1025 = vector.shape_cast %1024 : vector<1x8x1xf32> to vector<8x1xf32>
    %1026 = vector.broadcast %1025 : vector<8x1xf32> to vector<8x256xf32>
    %1027 = arith.addf %1026, %1018 : vector<8x256xf32>
    %1028 = arith.maximumf %973, %1027 : vector<8x256xf32>
    %c2_497 = arith.constant 2 : index
    %c144_498 = arith.constant 144 : index
    %c0_499 = arith.constant 0 : index
    %1029 = vector.load %arg2[%c2_497, %c144_498, %c0_499] : memref<8x208x1xf32, #tpu.memory_space<vmem>>, vector<1x8x1xf32>
    %1030 = vector.shape_cast %1029 : vector<1x8x1xf32> to vector<8x1xf32>
    %1031 = vector.broadcast %1030 : vector<8x1xf32> to vector<8x256xf32>
    %1032 = arith.addf %1031, %1018 : vector<8x256xf32>
    %1033 = arith.maximumf %978, %1032 : vector<8x256xf32>
    %c3_500 = arith.constant 3 : index
    %c144_501 = arith.constant 144 : index
    %c0_502 = arith.constant 0 : index
    %1034 = vector.load %arg2[%c3_500, %c144_501, %c0_502] : memref<8x208x1xf32, #tpu.memory_space<vmem>>, vector<1x8x1xf32>
    %1035 = vector.shape_cast %1034 : vector<1x8x1xf32> to vector<8x1xf32>
    %1036 = vector.broadcast %1035 : vector<8x1xf32> to vector<8x256xf32>
    %1037 = arith.addf %1036, %1018 : vector<8x256xf32>
    %1038 = arith.maximumf %983, %1037 : vector<8x256xf32>
    %c4_503 = arith.constant 4 : index
    %c144_504 = arith.constant 144 : index
    %c0_505 = arith.constant 0 : index
    %1039 = vector.load %arg2[%c4_503, %c144_504, %c0_505] : memref<8x208x1xf32, #tpu.memory_space<vmem>>, vector<1x8x1xf32>
    %1040 = vector.shape_cast %1039 : vector<1x8x1xf32> to vector<8x1xf32>
    %1041 = vector.broadcast %1040 : vector<8x1xf32> to vector<8x256xf32>
    %1042 = arith.addf %1041, %1018 : vector<8x256xf32>
    %1043 = arith.maximumf %988, %1042 : vector<8x256xf32>
    %c5_506 = arith.constant 5 : index
    %c144_507 = arith.constant 144 : index
    %c0_508 = arith.constant 0 : index
    %1044 = vector.load %arg2[%c5_506, %c144_507, %c0_508] : memref<8x208x1xf32, #tpu.memory_space<vmem>>, vector<1x8x1xf32>
    %1045 = vector.shape_cast %1044 : vector<1x8x1xf32> to vector<8x1xf32>
    %1046 = vector.broadcast %1045 : vector<8x1xf32> to vector<8x256xf32>
    %1047 = arith.addf %1046, %1018 : vector<8x256xf32>
    %1048 = arith.maximumf %993, %1047 : vector<8x256xf32>
    %c6_509 = arith.constant 6 : index
    %c144_510 = arith.constant 144 : index
    %c0_511 = arith.constant 0 : index
    %1049 = vector.load %arg2[%c6_509, %c144_510, %c0_511] : memref<8x208x1xf32, #tpu.memory_space<vmem>>, vector<1x8x1xf32>
    %1050 = vector.shape_cast %1049 : vector<1x8x1xf32> to vector<8x1xf32>
    %1051 = vector.broadcast %1050 : vector<8x1xf32> to vector<8x256xf32>
    %1052 = arith.addf %1051, %1018 : vector<8x256xf32>
    %1053 = arith.maximumf %998, %1052 : vector<8x256xf32>
    %c7_512 = arith.constant 7 : index
    %c144_513 = arith.constant 144 : index
    %c0_514 = arith.constant 0 : index
    %1054 = vector.load %arg2[%c7_512, %c144_513, %c0_514] : memref<8x208x1xf32, #tpu.memory_space<vmem>>, vector<1x8x1xf32>
    %1055 = vector.shape_cast %1054 : vector<1x8x1xf32> to vector<8x1xf32>
    %1056 = vector.broadcast %1055 : vector<8x1xf32> to vector<8x256xf32>
    %1057 = arith.addf %1056, %1018 : vector<8x256xf32>
    %1058 = arith.maximumf %1003, %1057 : vector<8x256xf32>
    %cst_515 = arith.constant 1.520000e+02 : f32
    %1059 = vector.broadcast %cst_515 : f32 to vector<8x256xf32>
    %1060 = arith.addf %5, %1059 : vector<8x256xf32>
    %1061 = vector.broadcast %1 : f32 to vector<8x256xf32>
    %1062 = arith.mulf %1060, %1061 : vector<8x256xf32>
    %1063 = arith.mulf %1062, %1062 : vector<8x256xf32>
    %1064 = arith.mulf %1063, %1063 : vector<8x256xf32>
    %1065 = arith.mulf %1064, %1064 : vector<8x256xf32>
    %1066 = math.absf %1060 : vector<8x256xf32>
    %cst_516 = arith.constant 1.000000e+02 : f32
    %1067 = vector.broadcast %cst_516 : f32 to vector<8x256xf32>
    %1068 = arith.cmpf ole, %1066, %1067 : vector<8x256xf32>
    %1069 = arith.mulf %1065, %1065 : vector<8x256xf32>
    %cst_517 = arith.constant 0.000000e+00 : f32
    %1070 = vector.broadcast %cst_517 : f32 to vector<8x256xf32>
    %1071 = arith.subf %1070, %1069 : vector<8x256xf32>
    %cst_518 = arith.constant 0xFF800000 : f32
    %1072 = vector.broadcast %cst_518 : f32 to vector<8x256xf32>
    %1073 = arith.select %1068, %1071, %1072 : vector<8x256xi1>, vector<8x256xf32>
    %c0_519 = arith.constant 0 : index
    %c152 = arith.constant 152 : index
    %c0_520 = arith.constant 0 : index
    %1074 = vector.load %arg2[%c0_519, %c152, %c0_520] : memref<8x208x1xf32, #tpu.memory_space<vmem>>, vector<1x8x1xf32>
    %1075 = vector.shape_cast %1074 : vector<1x8x1xf32> to vector<8x1xf32>
    %1076 = vector.broadcast %1075 : vector<8x1xf32> to vector<8x256xf32>
    %1077 = arith.addf %1076, %1073 : vector<8x256xf32>
    %1078 = arith.maximumf %1023, %1077 : vector<8x256xf32>
    %c1_521 = arith.constant 1 : index
    %c152_522 = arith.constant 152 : index
    %c0_523 = arith.constant 0 : index
    %1079 = vector.load %arg2[%c1_521, %c152_522, %c0_523] : memref<8x208x1xf32, #tpu.memory_space<vmem>>, vector<1x8x1xf32>
    %1080 = vector.shape_cast %1079 : vector<1x8x1xf32> to vector<8x1xf32>
    %1081 = vector.broadcast %1080 : vector<8x1xf32> to vector<8x256xf32>
    %1082 = arith.addf %1081, %1073 : vector<8x256xf32>
    %1083 = arith.maximumf %1028, %1082 : vector<8x256xf32>
    %c2_524 = arith.constant 2 : index
    %c152_525 = arith.constant 152 : index
    %c0_526 = arith.constant 0 : index
    %1084 = vector.load %arg2[%c2_524, %c152_525, %c0_526] : memref<8x208x1xf32, #tpu.memory_space<vmem>>, vector<1x8x1xf32>
    %1085 = vector.shape_cast %1084 : vector<1x8x1xf32> to vector<8x1xf32>
    %1086 = vector.broadcast %1085 : vector<8x1xf32> to vector<8x256xf32>
    %1087 = arith.addf %1086, %1073 : vector<8x256xf32>
    %1088 = arith.maximumf %1033, %1087 : vector<8x256xf32>
    %c3_527 = arith.constant 3 : index
    %c152_528 = arith.constant 152 : index
    %c0_529 = arith.constant 0 : index
    %1089 = vector.load %arg2[%c3_527, %c152_528, %c0_529] : memref<8x208x1xf32, #tpu.memory_space<vmem>>, vector<1x8x1xf32>
    %1090 = vector.shape_cast %1089 : vector<1x8x1xf32> to vector<8x1xf32>
    %1091 = vector.broadcast %1090 : vector<8x1xf32> to vector<8x256xf32>
    %1092 = arith.addf %1091, %1073 : vector<8x256xf32>
    %1093 = arith.maximumf %1038, %1092 : vector<8x256xf32>
    %c4_530 = arith.constant 4 : index
    %c152_531 = arith.constant 152 : index
    %c0_532 = arith.constant 0 : index
    %1094 = vector.load %arg2[%c4_530, %c152_531, %c0_532] : memref<8x208x1xf32, #tpu.memory_space<vmem>>, vector<1x8x1xf32>
    %1095 = vector.shape_cast %1094 : vector<1x8x1xf32> to vector<8x1xf32>
    %1096 = vector.broadcast %1095 : vector<8x1xf32> to vector<8x256xf32>
    %1097 = arith.addf %1096, %1073 : vector<8x256xf32>
    %1098 = arith.maximumf %1043, %1097 : vector<8x256xf32>
    %c5_533 = arith.constant 5 : index
    %c152_534 = arith.constant 152 : index
    %c0_535 = arith.constant 0 : index
    %1099 = vector.load %arg2[%c5_533, %c152_534, %c0_535] : memref<8x208x1xf32, #tpu.memory_space<vmem>>, vector<1x8x1xf32>
    %1100 = vector.shape_cast %1099 : vector<1x8x1xf32> to vector<8x1xf32>
    %1101 = vector.broadcast %1100 : vector<8x1xf32> to vector<8x256xf32>
    %1102 = arith.addf %1101, %1073 : vector<8x256xf32>
    %1103 = arith.maximumf %1048, %1102 : vector<8x256xf32>
    %c6_536 = arith.constant 6 : index
    %c152_537 = arith.constant 152 : index
    %c0_538 = arith.constant 0 : index
    %1104 = vector.load %arg2[%c6_536, %c152_537, %c0_538] : memref<8x208x1xf32, #tpu.memory_space<vmem>>, vector<1x8x1xf32>
    %1105 = vector.shape_cast %1104 : vector<1x8x1xf32> to vector<8x1xf32>
    %1106 = vector.broadcast %1105 : vector<8x1xf32> to vector<8x256xf32>
    %1107 = arith.addf %1106, %1073 : vector<8x256xf32>
    %1108 = arith.maximumf %1053, %1107 : vector<8x256xf32>
    %c7_539 = arith.constant 7 : index
    %c152_540 = arith.constant 152 : index
    %c0_541 = arith.constant 0 : index
    %1109 = vector.load %arg2[%c7_539, %c152_540, %c0_541] : memref<8x208x1xf32, #tpu.memory_space<vmem>>, vector<1x8x1xf32>
    %1110 = vector.shape_cast %1109 : vector<1x8x1xf32> to vector<8x1xf32>
    %1111 = vector.broadcast %1110 : vector<8x1xf32> to vector<8x256xf32>
    %1112 = arith.addf %1111, %1073 : vector<8x256xf32>
    %1113 = arith.maximumf %1058, %1112 : vector<8x256xf32>
    %cst_542 = arith.constant 1.600000e+02 : f32
    %1114 = vector.broadcast %cst_542 : f32 to vector<8x256xf32>
    %1115 = arith.addf %5, %1114 : vector<8x256xf32>
    %1116 = vector.broadcast %1 : f32 to vector<8x256xf32>
    %1117 = arith.mulf %1115, %1116 : vector<8x256xf32>
    %1118 = arith.mulf %1117, %1117 : vector<8x256xf32>
    %1119 = arith.mulf %1118, %1118 : vector<8x256xf32>
    %1120 = arith.mulf %1119, %1119 : vector<8x256xf32>
    %1121 = math.absf %1115 : vector<8x256xf32>
    %cst_543 = arith.constant 1.000000e+02 : f32
    %1122 = vector.broadcast %cst_543 : f32 to vector<8x256xf32>
    %1123 = arith.cmpf ole, %1121, %1122 : vector<8x256xf32>
    %1124 = arith.mulf %1120, %1120 : vector<8x256xf32>
    %cst_544 = arith.constant 0.000000e+00 : f32
    %1125 = vector.broadcast %cst_544 : f32 to vector<8x256xf32>
    %1126 = arith.subf %1125, %1124 : vector<8x256xf32>
    %cst_545 = arith.constant 0xFF800000 : f32
    %1127 = vector.broadcast %cst_545 : f32 to vector<8x256xf32>
    %1128 = arith.select %1123, %1126, %1127 : vector<8x256xi1>, vector<8x256xf32>
    %c0_546 = arith.constant 0 : index
    %c160 = arith.constant 160 : index
    %c0_547 = arith.constant 0 : index
    %1129 = vector.load %arg2[%c0_546, %c160, %c0_547] : memref<8x208x1xf32, #tpu.memory_space<vmem>>, vector<1x8x1xf32>
    %1130 = vector.shape_cast %1129 : vector<1x8x1xf32> to vector<8x1xf32>
    %1131 = vector.broadcast %1130 : vector<8x1xf32> to vector<8x256xf32>
    %1132 = arith.addf %1131, %1128 : vector<8x256xf32>
    %1133 = arith.maximumf %1078, %1132 : vector<8x256xf32>
    %c1_548 = arith.constant 1 : index
    %c160_549 = arith.constant 160 : index
    %c0_550 = arith.constant 0 : index
    %1134 = vector.load %arg2[%c1_548, %c160_549, %c0_550] : memref<8x208x1xf32, #tpu.memory_space<vmem>>, vector<1x8x1xf32>
    %1135 = vector.shape_cast %1134 : vector<1x8x1xf32> to vector<8x1xf32>
    %1136 = vector.broadcast %1135 : vector<8x1xf32> to vector<8x256xf32>
    %1137 = arith.addf %1136, %1128 : vector<8x256xf32>
    %1138 = arith.maximumf %1083, %1137 : vector<8x256xf32>
    %c2_551 = arith.constant 2 : index
    %c160_552 = arith.constant 160 : index
    %c0_553 = arith.constant 0 : index
    %1139 = vector.load %arg2[%c2_551, %c160_552, %c0_553] : memref<8x208x1xf32, #tpu.memory_space<vmem>>, vector<1x8x1xf32>
    %1140 = vector.shape_cast %1139 : vector<1x8x1xf32> to vector<8x1xf32>
    %1141 = vector.broadcast %1140 : vector<8x1xf32> to vector<8x256xf32>
    %1142 = arith.addf %1141, %1128 : vector<8x256xf32>
    %1143 = arith.maximumf %1088, %1142 : vector<8x256xf32>
    %c3_554 = arith.constant 3 : index
    %c160_555 = arith.constant 160 : index
    %c0_556 = arith.constant 0 : index
    %1144 = vector.load %arg2[%c3_554, %c160_555, %c0_556] : memref<8x208x1xf32, #tpu.memory_space<vmem>>, vector<1x8x1xf32>
    %1145 = vector.shape_cast %1144 : vector<1x8x1xf32> to vector<8x1xf32>
    %1146 = vector.broadcast %1145 : vector<8x1xf32> to vector<8x256xf32>
    %1147 = arith.addf %1146, %1128 : vector<8x256xf32>
    %1148 = arith.maximumf %1093, %1147 : vector<8x256xf32>
    %c4_557 = arith.constant 4 : index
    %c160_558 = arith.constant 160 : index
    %c0_559 = arith.constant 0 : index
    %1149 = vector.load %arg2[%c4_557, %c160_558, %c0_559] : memref<8x208x1xf32, #tpu.memory_space<vmem>>, vector<1x8x1xf32>
    %1150 = vector.shape_cast %1149 : vector<1x8x1xf32> to vector<8x1xf32>
    %1151 = vector.broadcast %1150 : vector<8x1xf32> to vector<8x256xf32>
    %1152 = arith.addf %1151, %1128 : vector<8x256xf32>
    %1153 = arith.maximumf %1098, %1152 : vector<8x256xf32>
    %c5_560 = arith.constant 5 : index
    %c160_561 = arith.constant 160 : index
    %c0_562 = arith.constant 0 : index
    %1154 = vector.load %arg2[%c5_560, %c160_561, %c0_562] : memref<8x208x1xf32, #tpu.memory_space<vmem>>, vector<1x8x1xf32>
    %1155 = vector.shape_cast %1154 : vector<1x8x1xf32> to vector<8x1xf32>
    %1156 = vector.broadcast %1155 : vector<8x1xf32> to vector<8x256xf32>
    %1157 = arith.addf %1156, %1128 : vector<8x256xf32>
    %1158 = arith.maximumf %1103, %1157 : vector<8x256xf32>
    %c6_563 = arith.constant 6 : index
    %c160_564 = arith.constant 160 : index
    %c0_565 = arith.constant 0 : index
    %1159 = vector.load %arg2[%c6_563, %c160_564, %c0_565] : memref<8x208x1xf32, #tpu.memory_space<vmem>>, vector<1x8x1xf32>
    %1160 = vector.shape_cast %1159 : vector<1x8x1xf32> to vector<8x1xf32>
    %1161 = vector.broadcast %1160 : vector<8x1xf32> to vector<8x256xf32>
    %1162 = arith.addf %1161, %1128 : vector<8x256xf32>
    %1163 = arith.maximumf %1108, %1162 : vector<8x256xf32>
    %c7_566 = arith.constant 7 : index
    %c160_567 = arith.constant 160 : index
    %c0_568 = arith.constant 0 : index
    %1164 = vector.load %arg2[%c7_566, %c160_567, %c0_568] : memref<8x208x1xf32, #tpu.memory_space<vmem>>, vector<1x8x1xf32>
    %1165 = vector.shape_cast %1164 : vector<1x8x1xf32> to vector<8x1xf32>
    %1166 = vector.broadcast %1165 : vector<8x1xf32> to vector<8x256xf32>
    %1167 = arith.addf %1166, %1128 : vector<8x256xf32>
    %1168 = arith.maximumf %1113, %1167 : vector<8x256xf32>
    %cst_569 = arith.constant 1.680000e+02 : f32
    %1169 = vector.broadcast %cst_569 : f32 to vector<8x256xf32>
    %1170 = arith.addf %5, %1169 : vector<8x256xf32>
    %1171 = vector.broadcast %1 : f32 to vector<8x256xf32>
    %1172 = arith.mulf %1170, %1171 : vector<8x256xf32>
    %1173 = arith.mulf %1172, %1172 : vector<8x256xf32>
    %1174 = arith.mulf %1173, %1173 : vector<8x256xf32>
    %1175 = arith.mulf %1174, %1174 : vector<8x256xf32>
    %1176 = math.absf %1170 : vector<8x256xf32>
    %cst_570 = arith.constant 1.000000e+02 : f32
    %1177 = vector.broadcast %cst_570 : f32 to vector<8x256xf32>
    %1178 = arith.cmpf ole, %1176, %1177 : vector<8x256xf32>
    %1179 = arith.mulf %1175, %1175 : vector<8x256xf32>
    %cst_571 = arith.constant 0.000000e+00 : f32
    %1180 = vector.broadcast %cst_571 : f32 to vector<8x256xf32>
    %1181 = arith.subf %1180, %1179 : vector<8x256xf32>
    %cst_572 = arith.constant 0xFF800000 : f32
    %1182 = vector.broadcast %cst_572 : f32 to vector<8x256xf32>
    %1183 = arith.select %1178, %1181, %1182 : vector<8x256xi1>, vector<8x256xf32>
    %c0_573 = arith.constant 0 : index
    %c168 = arith.constant 168 : index
    %c0_574 = arith.constant 0 : index
    %1184 = vector.load %arg2[%c0_573, %c168, %c0_574] : memref<8x208x1xf32, #tpu.memory_space<vmem>>, vector<1x8x1xf32>
    %1185 = vector.shape_cast %1184 : vector<1x8x1xf32> to vector<8x1xf32>
    %1186 = vector.broadcast %1185 : vector<8x1xf32> to vector<8x256xf32>
    %1187 = arith.addf %1186, %1183 : vector<8x256xf32>
    %1188 = arith.maximumf %1133, %1187 : vector<8x256xf32>
    %c1_575 = arith.constant 1 : index
    %c168_576 = arith.constant 168 : index
    %c0_577 = arith.constant 0 : index
    %1189 = vector.load %arg2[%c1_575, %c168_576, %c0_577] : memref<8x208x1xf32, #tpu.memory_space<vmem>>, vector<1x8x1xf32>
    %1190 = vector.shape_cast %1189 : vector<1x8x1xf32> to vector<8x1xf32>
    %1191 = vector.broadcast %1190 : vector<8x1xf32> to vector<8x256xf32>
    %1192 = arith.addf %1191, %1183 : vector<8x256xf32>
    %1193 = arith.maximumf %1138, %1192 : vector<8x256xf32>
    %c2_578 = arith.constant 2 : index
    %c168_579 = arith.constant 168 : index
    %c0_580 = arith.constant 0 : index
    %1194 = vector.load %arg2[%c2_578, %c168_579, %c0_580] : memref<8x208x1xf32, #tpu.memory_space<vmem>>, vector<1x8x1xf32>
    %1195 = vector.shape_cast %1194 : vector<1x8x1xf32> to vector<8x1xf32>
    %1196 = vector.broadcast %1195 : vector<8x1xf32> to vector<8x256xf32>
    %1197 = arith.addf %1196, %1183 : vector<8x256xf32>
    %1198 = arith.maximumf %1143, %1197 : vector<8x256xf32>
    %c3_581 = arith.constant 3 : index
    %c168_582 = arith.constant 168 : index
    %c0_583 = arith.constant 0 : index
    %1199 = vector.load %arg2[%c3_581, %c168_582, %c0_583] : memref<8x208x1xf32, #tpu.memory_space<vmem>>, vector<1x8x1xf32>
    %1200 = vector.shape_cast %1199 : vector<1x8x1xf32> to vector<8x1xf32>
    %1201 = vector.broadcast %1200 : vector<8x1xf32> to vector<8x256xf32>
    %1202 = arith.addf %1201, %1183 : vector<8x256xf32>
    %1203 = arith.maximumf %1148, %1202 : vector<8x256xf32>
    %c4_584 = arith.constant 4 : index
    %c168_585 = arith.constant 168 : index
    %c0_586 = arith.constant 0 : index
    %1204 = vector.load %arg2[%c4_584, %c168_585, %c0_586] : memref<8x208x1xf32, #tpu.memory_space<vmem>>, vector<1x8x1xf32>
    %1205 = vector.shape_cast %1204 : vector<1x8x1xf32> to vector<8x1xf32>
    %1206 = vector.broadcast %1205 : vector<8x1xf32> to vector<8x256xf32>
    %1207 = arith.addf %1206, %1183 : vector<8x256xf32>
    %1208 = arith.maximumf %1153, %1207 : vector<8x256xf32>
    %c5_587 = arith.constant 5 : index
    %c168_588 = arith.constant 168 : index
    %c0_589 = arith.constant 0 : index
    %1209 = vector.load %arg2[%c5_587, %c168_588, %c0_589] : memref<8x208x1xf32, #tpu.memory_space<vmem>>, vector<1x8x1xf32>
    %1210 = vector.shape_cast %1209 : vector<1x8x1xf32> to vector<8x1xf32>
    %1211 = vector.broadcast %1210 : vector<8x1xf32> to vector<8x256xf32>
    %1212 = arith.addf %1211, %1183 : vector<8x256xf32>
    %1213 = arith.maximumf %1158, %1212 : vector<8x256xf32>
    %c6_590 = arith.constant 6 : index
    %c168_591 = arith.constant 168 : index
    %c0_592 = arith.constant 0 : index
    %1214 = vector.load %arg2[%c6_590, %c168_591, %c0_592] : memref<8x208x1xf32, #tpu.memory_space<vmem>>, vector<1x8x1xf32>
    %1215 = vector.shape_cast %1214 : vector<1x8x1xf32> to vector<8x1xf32>
    %1216 = vector.broadcast %1215 : vector<8x1xf32> to vector<8x256xf32>
    %1217 = arith.addf %1216, %1183 : vector<8x256xf32>
    %1218 = arith.maximumf %1163, %1217 : vector<8x256xf32>
    %c7_593 = arith.constant 7 : index
    %c168_594 = arith.constant 168 : index
    %c0_595 = arith.constant 0 : index
    %1219 = vector.load %arg2[%c7_593, %c168_594, %c0_595] : memref<8x208x1xf32, #tpu.memory_space<vmem>>, vector<1x8x1xf32>
    %1220 = vector.shape_cast %1219 : vector<1x8x1xf32> to vector<8x1xf32>
    %1221 = vector.broadcast %1220 : vector<8x1xf32> to vector<8x256xf32>
    %1222 = arith.addf %1221, %1183 : vector<8x256xf32>
    %1223 = arith.maximumf %1168, %1222 : vector<8x256xf32>
    %cst_596 = arith.constant 1.760000e+02 : f32
    %1224 = vector.broadcast %cst_596 : f32 to vector<8x256xf32>
    %1225 = arith.addf %5, %1224 : vector<8x256xf32>
    %1226 = vector.broadcast %1 : f32 to vector<8x256xf32>
    %1227 = arith.mulf %1225, %1226 : vector<8x256xf32>
    %1228 = arith.mulf %1227, %1227 : vector<8x256xf32>
    %1229 = arith.mulf %1228, %1228 : vector<8x256xf32>
    %1230 = arith.mulf %1229, %1229 : vector<8x256xf32>
    %1231 = math.absf %1225 : vector<8x256xf32>
    %cst_597 = arith.constant 1.000000e+02 : f32
    %1232 = vector.broadcast %cst_597 : f32 to vector<8x256xf32>
    %1233 = arith.cmpf ole, %1231, %1232 : vector<8x256xf32>
    %1234 = arith.mulf %1230, %1230 : vector<8x256xf32>
    %cst_598 = arith.constant 0.000000e+00 : f32
    %1235 = vector.broadcast %cst_598 : f32 to vector<8x256xf32>
    %1236 = arith.subf %1235, %1234 : vector<8x256xf32>
    %cst_599 = arith.constant 0xFF800000 : f32
    %1237 = vector.broadcast %cst_599 : f32 to vector<8x256xf32>
    %1238 = arith.select %1233, %1236, %1237 : vector<8x256xi1>, vector<8x256xf32>
    %c0_600 = arith.constant 0 : index
    %c176 = arith.constant 176 : index
    %c0_601 = arith.constant 0 : index
    %1239 = vector.load %arg2[%c0_600, %c176, %c0_601] : memref<8x208x1xf32, #tpu.memory_space<vmem>>, vector<1x8x1xf32>
    %1240 = vector.shape_cast %1239 : vector<1x8x1xf32> to vector<8x1xf32>
    %1241 = vector.broadcast %1240 : vector<8x1xf32> to vector<8x256xf32>
    %1242 = arith.addf %1241, %1238 : vector<8x256xf32>
    %1243 = arith.maximumf %1188, %1242 : vector<8x256xf32>
    %c1_602 = arith.constant 1 : index
    %c176_603 = arith.constant 176 : index
    %c0_604 = arith.constant 0 : index
    %1244 = vector.load %arg2[%c1_602, %c176_603, %c0_604] : memref<8x208x1xf32, #tpu.memory_space<vmem>>, vector<1x8x1xf32>
    %1245 = vector.shape_cast %1244 : vector<1x8x1xf32> to vector<8x1xf32>
    %1246 = vector.broadcast %1245 : vector<8x1xf32> to vector<8x256xf32>
    %1247 = arith.addf %1246, %1238 : vector<8x256xf32>
    %1248 = arith.maximumf %1193, %1247 : vector<8x256xf32>
    %c2_605 = arith.constant 2 : index
    %c176_606 = arith.constant 176 : index
    %c0_607 = arith.constant 0 : index
    %1249 = vector.load %arg2[%c2_605, %c176_606, %c0_607] : memref<8x208x1xf32, #tpu.memory_space<vmem>>, vector<1x8x1xf32>
    %1250 = vector.shape_cast %1249 : vector<1x8x1xf32> to vector<8x1xf32>
    %1251 = vector.broadcast %1250 : vector<8x1xf32> to vector<8x256xf32>
    %1252 = arith.addf %1251, %1238 : vector<8x256xf32>
    %1253 = arith.maximumf %1198, %1252 : vector<8x256xf32>
    %c3_608 = arith.constant 3 : index
    %c176_609 = arith.constant 176 : index
    %c0_610 = arith.constant 0 : index
    %1254 = vector.load %arg2[%c3_608, %c176_609, %c0_610] : memref<8x208x1xf32, #tpu.memory_space<vmem>>, vector<1x8x1xf32>
    %1255 = vector.shape_cast %1254 : vector<1x8x1xf32> to vector<8x1xf32>
    %1256 = vector.broadcast %1255 : vector<8x1xf32> to vector<8x256xf32>
    %1257 = arith.addf %1256, %1238 : vector<8x256xf32>
    %1258 = arith.maximumf %1203, %1257 : vector<8x256xf32>
    %c4_611 = arith.constant 4 : index
    %c176_612 = arith.constant 176 : index
    %c0_613 = arith.constant 0 : index
    %1259 = vector.load %arg2[%c4_611, %c176_612, %c0_613] : memref<8x208x1xf32, #tpu.memory_space<vmem>>, vector<1x8x1xf32>
    %1260 = vector.shape_cast %1259 : vector<1x8x1xf32> to vector<8x1xf32>
    %1261 = vector.broadcast %1260 : vector<8x1xf32> to vector<8x256xf32>
    %1262 = arith.addf %1261, %1238 : vector<8x256xf32>
    %1263 = arith.maximumf %1208, %1262 : vector<8x256xf32>
    %c5_614 = arith.constant 5 : index
    %c176_615 = arith.constant 176 : index
    %c0_616 = arith.constant 0 : index
    %1264 = vector.load %arg2[%c5_614, %c176_615, %c0_616] : memref<8x208x1xf32, #tpu.memory_space<vmem>>, vector<1x8x1xf32>
    %1265 = vector.shape_cast %1264 : vector<1x8x1xf32> to vector<8x1xf32>
    %1266 = vector.broadcast %1265 : vector<8x1xf32> to vector<8x256xf32>
    %1267 = arith.addf %1266, %1238 : vector<8x256xf32>
    %1268 = arith.maximumf %1213, %1267 : vector<8x256xf32>
    %c6_617 = arith.constant 6 : index
    %c176_618 = arith.constant 176 : index
    %c0_619 = arith.constant 0 : index
    %1269 = vector.load %arg2[%c6_617, %c176_618, %c0_619] : memref<8x208x1xf32, #tpu.memory_space<vmem>>, vector<1x8x1xf32>
    %1270 = vector.shape_cast %1269 : vector<1x8x1xf32> to vector<8x1xf32>
    %1271 = vector.broadcast %1270 : vector<8x1xf32> to vector<8x256xf32>
    %1272 = arith.addf %1271, %1238 : vector<8x256xf32>
    %1273 = arith.maximumf %1218, %1272 : vector<8x256xf32>
    %c7_620 = arith.constant 7 : index
    %c176_621 = arith.constant 176 : index
    %c0_622 = arith.constant 0 : index
    %1274 = vector.load %arg2[%c7_620, %c176_621, %c0_622] : memref<8x208x1xf32, #tpu.memory_space<vmem>>, vector<1x8x1xf32>
    %1275 = vector.shape_cast %1274 : vector<1x8x1xf32> to vector<8x1xf32>
    %1276 = vector.broadcast %1275 : vector<8x1xf32> to vector<8x256xf32>
    %1277 = arith.addf %1276, %1238 : vector<8x256xf32>
    %1278 = arith.maximumf %1223, %1277 : vector<8x256xf32>
    %cst_623 = arith.constant 1.840000e+02 : f32
    %1279 = vector.broadcast %cst_623 : f32 to vector<8x256xf32>
    %1280 = arith.addf %5, %1279 : vector<8x256xf32>
    %1281 = vector.broadcast %1 : f32 to vector<8x256xf32>
    %1282 = arith.mulf %1280, %1281 : vector<8x256xf32>
    %1283 = arith.mulf %1282, %1282 : vector<8x256xf32>
    %1284 = arith.mulf %1283, %1283 : vector<8x256xf32>
    %1285 = arith.mulf %1284, %1284 : vector<8x256xf32>
    %1286 = math.absf %1280 : vector<8x256xf32>
    %cst_624 = arith.constant 1.000000e+02 : f32
    %1287 = vector.broadcast %cst_624 : f32 to vector<8x256xf32>
    %1288 = arith.cmpf ole, %1286, %1287 : vector<8x256xf32>
    %1289 = arith.mulf %1285, %1285 : vector<8x256xf32>
    %cst_625 = arith.constant 0.000000e+00 : f32
    %1290 = vector.broadcast %cst_625 : f32 to vector<8x256xf32>
    %1291 = arith.subf %1290, %1289 : vector<8x256xf32>
    %cst_626 = arith.constant 0xFF800000 : f32
    %1292 = vector.broadcast %cst_626 : f32 to vector<8x256xf32>
    %1293 = arith.select %1288, %1291, %1292 : vector<8x256xi1>, vector<8x256xf32>
    %c0_627 = arith.constant 0 : index
    %c184 = arith.constant 184 : index
    %c0_628 = arith.constant 0 : index
    %1294 = vector.load %arg2[%c0_627, %c184, %c0_628] : memref<8x208x1xf32, #tpu.memory_space<vmem>>, vector<1x8x1xf32>
    %1295 = vector.shape_cast %1294 : vector<1x8x1xf32> to vector<8x1xf32>
    %1296 = vector.broadcast %1295 : vector<8x1xf32> to vector<8x256xf32>
    %1297 = arith.addf %1296, %1293 : vector<8x256xf32>
    %1298 = arith.maximumf %1243, %1297 : vector<8x256xf32>
    %c1_629 = arith.constant 1 : index
    %c184_630 = arith.constant 184 : index
    %c0_631 = arith.constant 0 : index
    %1299 = vector.load %arg2[%c1_629, %c184_630, %c0_631] : memref<8x208x1xf32, #tpu.memory_space<vmem>>, vector<1x8x1xf32>
    %1300 = vector.shape_cast %1299 : vector<1x8x1xf32> to vector<8x1xf32>
    %1301 = vector.broadcast %1300 : vector<8x1xf32> to vector<8x256xf32>
    %1302 = arith.addf %1301, %1293 : vector<8x256xf32>
    %1303 = arith.maximumf %1248, %1302 : vector<8x256xf32>
    %c2_632 = arith.constant 2 : index
    %c184_633 = arith.constant 184 : index
    %c0_634 = arith.constant 0 : index
    %1304 = vector.load %arg2[%c2_632, %c184_633, %c0_634] : memref<8x208x1xf32, #tpu.memory_space<vmem>>, vector<1x8x1xf32>
    %1305 = vector.shape_cast %1304 : vector<1x8x1xf32> to vector<8x1xf32>
    %1306 = vector.broadcast %1305 : vector<8x1xf32> to vector<8x256xf32>
    %1307 = arith.addf %1306, %1293 : vector<8x256xf32>
    %1308 = arith.maximumf %1253, %1307 : vector<8x256xf32>
    %c3_635 = arith.constant 3 : index
    %c184_636 = arith.constant 184 : index
    %c0_637 = arith.constant 0 : index
    %1309 = vector.load %arg2[%c3_635, %c184_636, %c0_637] : memref<8x208x1xf32, #tpu.memory_space<vmem>>, vector<1x8x1xf32>
    %1310 = vector.shape_cast %1309 : vector<1x8x1xf32> to vector<8x1xf32>
    %1311 = vector.broadcast %1310 : vector<8x1xf32> to vector<8x256xf32>
    %1312 = arith.addf %1311, %1293 : vector<8x256xf32>
    %1313 = arith.maximumf %1258, %1312 : vector<8x256xf32>
    %c4_638 = arith.constant 4 : index
    %c184_639 = arith.constant 184 : index
    %c0_640 = arith.constant 0 : index
    %1314 = vector.load %arg2[%c4_638, %c184_639, %c0_640] : memref<8x208x1xf32, #tpu.memory_space<vmem>>, vector<1x8x1xf32>
    %1315 = vector.shape_cast %1314 : vector<1x8x1xf32> to vector<8x1xf32>
    %1316 = vector.broadcast %1315 : vector<8x1xf32> to vector<8x256xf32>
    %1317 = arith.addf %1316, %1293 : vector<8x256xf32>
    %1318 = arith.maximumf %1263, %1317 : vector<8x256xf32>
    %c5_641 = arith.constant 5 : index
    %c184_642 = arith.constant 184 : index
    %c0_643 = arith.constant 0 : index
    %1319 = vector.load %arg2[%c5_641, %c184_642, %c0_643] : memref<8x208x1xf32, #tpu.memory_space<vmem>>, vector<1x8x1xf32>
    %1320 = vector.shape_cast %1319 : vector<1x8x1xf32> to vector<8x1xf32>
    %1321 = vector.broadcast %1320 : vector<8x1xf32> to vector<8x256xf32>
    %1322 = arith.addf %1321, %1293 : vector<8x256xf32>
    %1323 = arith.maximumf %1268, %1322 : vector<8x256xf32>
    %c6_644 = arith.constant 6 : index
    %c184_645 = arith.constant 184 : index
    %c0_646 = arith.constant 0 : index
    %1324 = vector.load %arg2[%c6_644, %c184_645, %c0_646] : memref<8x208x1xf32, #tpu.memory_space<vmem>>, vector<1x8x1xf32>
    %1325 = vector.shape_cast %1324 : vector<1x8x1xf32> to vector<8x1xf32>
    %1326 = vector.broadcast %1325 : vector<8x1xf32> to vector<8x256xf32>
    %1327 = arith.addf %1326, %1293 : vector<8x256xf32>
    %1328 = arith.maximumf %1273, %1327 : vector<8x256xf32>
    %c7_647 = arith.constant 7 : index
    %c184_648 = arith.constant 184 : index
    %c0_649 = arith.constant 0 : index
    %1329 = vector.load %arg2[%c7_647, %c184_648, %c0_649] : memref<8x208x1xf32, #tpu.memory_space<vmem>>, vector<1x8x1xf32>
    %1330 = vector.shape_cast %1329 : vector<1x8x1xf32> to vector<8x1xf32>
    %1331 = vector.broadcast %1330 : vector<8x1xf32> to vector<8x256xf32>
    %1332 = arith.addf %1331, %1293 : vector<8x256xf32>
    %1333 = arith.maximumf %1278, %1332 : vector<8x256xf32>
    %cst_650 = arith.constant 1.920000e+02 : f32
    %1334 = vector.broadcast %cst_650 : f32 to vector<8x256xf32>
    %1335 = arith.addf %5, %1334 : vector<8x256xf32>
    %1336 = vector.broadcast %1 : f32 to vector<8x256xf32>
    %1337 = arith.mulf %1335, %1336 : vector<8x256xf32>
    %1338 = arith.mulf %1337, %1337 : vector<8x256xf32>
    %1339 = arith.mulf %1338, %1338 : vector<8x256xf32>
    %1340 = arith.mulf %1339, %1339 : vector<8x256xf32>
    %1341 = math.absf %1335 : vector<8x256xf32>
    %cst_651 = arith.constant 1.000000e+02 : f32
    %1342 = vector.broadcast %cst_651 : f32 to vector<8x256xf32>
    %1343 = arith.cmpf ole, %1341, %1342 : vector<8x256xf32>
    %1344 = arith.mulf %1340, %1340 : vector<8x256xf32>
    %cst_652 = arith.constant 0.000000e+00 : f32
    %1345 = vector.broadcast %cst_652 : f32 to vector<8x256xf32>
    %1346 = arith.subf %1345, %1344 : vector<8x256xf32>
    %cst_653 = arith.constant 0xFF800000 : f32
    %1347 = vector.broadcast %cst_653 : f32 to vector<8x256xf32>
    %1348 = arith.select %1343, %1346, %1347 : vector<8x256xi1>, vector<8x256xf32>
    %c0_654 = arith.constant 0 : index
    %c192 = arith.constant 192 : index
    %c0_655 = arith.constant 0 : index
    %1349 = vector.load %arg2[%c0_654, %c192, %c0_655] : memref<8x208x1xf32, #tpu.memory_space<vmem>>, vector<1x8x1xf32>
    %1350 = vector.shape_cast %1349 : vector<1x8x1xf32> to vector<8x1xf32>
    %1351 = vector.broadcast %1350 : vector<8x1xf32> to vector<8x256xf32>
    %1352 = arith.addf %1351, %1348 : vector<8x256xf32>
    %1353 = arith.maximumf %1298, %1352 : vector<8x256xf32>
    %c1_656 = arith.constant 1 : index
    %c192_657 = arith.constant 192 : index
    %c0_658 = arith.constant 0 : index
    %1354 = vector.load %arg2[%c1_656, %c192_657, %c0_658] : memref<8x208x1xf32, #tpu.memory_space<vmem>>, vector<1x8x1xf32>
    %1355 = vector.shape_cast %1354 : vector<1x8x1xf32> to vector<8x1xf32>
    %1356 = vector.broadcast %1355 : vector<8x1xf32> to vector<8x256xf32>
    %1357 = arith.addf %1356, %1348 : vector<8x256xf32>
    %1358 = arith.maximumf %1303, %1357 : vector<8x256xf32>
    %c2_659 = arith.constant 2 : index
    %c192_660 = arith.constant 192 : index
    %c0_661 = arith.constant 0 : index
    %1359 = vector.load %arg2[%c2_659, %c192_660, %c0_661] : memref<8x208x1xf32, #tpu.memory_space<vmem>>, vector<1x8x1xf32>
    %1360 = vector.shape_cast %1359 : vector<1x8x1xf32> to vector<8x1xf32>
    %1361 = vector.broadcast %1360 : vector<8x1xf32> to vector<8x256xf32>
    %1362 = arith.addf %1361, %1348 : vector<8x256xf32>
    %1363 = arith.maximumf %1308, %1362 : vector<8x256xf32>
    %c3_662 = arith.constant 3 : index
    %c192_663 = arith.constant 192 : index
    %c0_664 = arith.constant 0 : index
    %1364 = vector.load %arg2[%c3_662, %c192_663, %c0_664] : memref<8x208x1xf32, #tpu.memory_space<vmem>>, vector<1x8x1xf32>
    %1365 = vector.shape_cast %1364 : vector<1x8x1xf32> to vector<8x1xf32>
    %1366 = vector.broadcast %1365 : vector<8x1xf32> to vector<8x256xf32>
    %1367 = arith.addf %1366, %1348 : vector<8x256xf32>
    %1368 = arith.maximumf %1313, %1367 : vector<8x256xf32>
    %c4_665 = arith.constant 4 : index
    %c192_666 = arith.constant 192 : index
    %c0_667 = arith.constant 0 : index
    %1369 = vector.load %arg2[%c4_665, %c192_666, %c0_667] : memref<8x208x1xf32, #tpu.memory_space<vmem>>, vector<1x8x1xf32>
    %1370 = vector.shape_cast %1369 : vector<1x8x1xf32> to vector<8x1xf32>
    %1371 = vector.broadcast %1370 : vector<8x1xf32> to vector<8x256xf32>
    %1372 = arith.addf %1371, %1348 : vector<8x256xf32>
    %1373 = arith.maximumf %1318, %1372 : vector<8x256xf32>
    %c5_668 = arith.constant 5 : index
    %c192_669 = arith.constant 192 : index
    %c0_670 = arith.constant 0 : index
    %1374 = vector.load %arg2[%c5_668, %c192_669, %c0_670] : memref<8x208x1xf32, #tpu.memory_space<vmem>>, vector<1x8x1xf32>
    %1375 = vector.shape_cast %1374 : vector<1x8x1xf32> to vector<8x1xf32>
    %1376 = vector.broadcast %1375 : vector<8x1xf32> to vector<8x256xf32>
    %1377 = arith.addf %1376, %1348 : vector<8x256xf32>
    %1378 = arith.maximumf %1323, %1377 : vector<8x256xf32>
    %c6_671 = arith.constant 6 : index
    %c192_672 = arith.constant 192 : index
    %c0_673 = arith.constant 0 : index
    %1379 = vector.load %arg2[%c6_671, %c192_672, %c0_673] : memref<8x208x1xf32, #tpu.memory_space<vmem>>, vector<1x8x1xf32>
    %1380 = vector.shape_cast %1379 : vector<1x8x1xf32> to vector<8x1xf32>
    %1381 = vector.broadcast %1380 : vector<8x1xf32> to vector<8x256xf32>
    %1382 = arith.addf %1381, %1348 : vector<8x256xf32>
    %1383 = arith.maximumf %1328, %1382 : vector<8x256xf32>
    %c7_674 = arith.constant 7 : index
    %c192_675 = arith.constant 192 : index
    %c0_676 = arith.constant 0 : index
    %1384 = vector.load %arg2[%c7_674, %c192_675, %c0_676] : memref<8x208x1xf32, #tpu.memory_space<vmem>>, vector<1x8x1xf32>
    %1385 = vector.shape_cast %1384 : vector<1x8x1xf32> to vector<8x1xf32>
    %1386 = vector.broadcast %1385 : vector<8x1xf32> to vector<8x256xf32>
    %1387 = arith.addf %1386, %1348 : vector<8x256xf32>
    %1388 = arith.maximumf %1333, %1387 : vector<8x256xf32>
    %cst_677 = arith.constant 2.000000e+02 : f32
    %1389 = vector.broadcast %cst_677 : f32 to vector<8x256xf32>
    %1390 = arith.addf %5, %1389 : vector<8x256xf32>
    %1391 = vector.broadcast %1 : f32 to vector<8x256xf32>
    %1392 = arith.mulf %1390, %1391 : vector<8x256xf32>
    %1393 = arith.mulf %1392, %1392 : vector<8x256xf32>
    %1394 = arith.mulf %1393, %1393 : vector<8x256xf32>
    %1395 = arith.mulf %1394, %1394 : vector<8x256xf32>
    %1396 = math.absf %1390 : vector<8x256xf32>
    %cst_678 = arith.constant 1.000000e+02 : f32
    %1397 = vector.broadcast %cst_678 : f32 to vector<8x256xf32>
    %1398 = arith.cmpf ole, %1396, %1397 : vector<8x256xf32>
    %1399 = arith.mulf %1395, %1395 : vector<8x256xf32>
    %cst_679 = arith.constant 0.000000e+00 : f32
    %1400 = vector.broadcast %cst_679 : f32 to vector<8x256xf32>
    %1401 = arith.subf %1400, %1399 : vector<8x256xf32>
    %cst_680 = arith.constant 0xFF800000 : f32
    %1402 = vector.broadcast %cst_680 : f32 to vector<8x256xf32>
    %1403 = arith.select %1398, %1401, %1402 : vector<8x256xi1>, vector<8x256xf32>
    %c0_681 = arith.constant 0 : index
    %c200 = arith.constant 200 : index
    %c0_682 = arith.constant 0 : index
    %1404 = vector.load %arg2[%c0_681, %c200, %c0_682] : memref<8x208x1xf32, #tpu.memory_space<vmem>>, vector<1x8x1xf32>
    %1405 = vector.shape_cast %1404 : vector<1x8x1xf32> to vector<8x1xf32>
    %1406 = vector.broadcast %1405 : vector<8x1xf32> to vector<8x256xf32>
    %1407 = arith.addf %1406, %1403 : vector<8x256xf32>
    %1408 = arith.maximumf %1353, %1407 : vector<8x256xf32>
    %c1_683 = arith.constant 1 : index
    %c200_684 = arith.constant 200 : index
    %c0_685 = arith.constant 0 : index
    %1409 = vector.load %arg2[%c1_683, %c200_684, %c0_685] : memref<8x208x1xf32, #tpu.memory_space<vmem>>, vector<1x8x1xf32>
    %1410 = vector.shape_cast %1409 : vector<1x8x1xf32> to vector<8x1xf32>
    %1411 = vector.broadcast %1410 : vector<8x1xf32> to vector<8x256xf32>
    %1412 = arith.addf %1411, %1403 : vector<8x256xf32>
    %1413 = arith.maximumf %1358, %1412 : vector<8x256xf32>
    %c2_686 = arith.constant 2 : index
    %c200_687 = arith.constant 200 : index
    %c0_688 = arith.constant 0 : index
    %1414 = vector.load %arg2[%c2_686, %c200_687, %c0_688] : memref<8x208x1xf32, #tpu.memory_space<vmem>>, vector<1x8x1xf32>
    %1415 = vector.shape_cast %1414 : vector<1x8x1xf32> to vector<8x1xf32>
    %1416 = vector.broadcast %1415 : vector<8x1xf32> to vector<8x256xf32>
    %1417 = arith.addf %1416, %1403 : vector<8x256xf32>
    %1418 = arith.maximumf %1363, %1417 : vector<8x256xf32>
    %c3_689 = arith.constant 3 : index
    %c200_690 = arith.constant 200 : index
    %c0_691 = arith.constant 0 : index
    %1419 = vector.load %arg2[%c3_689, %c200_690, %c0_691] : memref<8x208x1xf32, #tpu.memory_space<vmem>>, vector<1x8x1xf32>
    %1420 = vector.shape_cast %1419 : vector<1x8x1xf32> to vector<8x1xf32>
    %1421 = vector.broadcast %1420 : vector<8x1xf32> to vector<8x256xf32>
    %1422 = arith.addf %1421, %1403 : vector<8x256xf32>
    %1423 = arith.maximumf %1368, %1422 : vector<8x256xf32>
    %c4_692 = arith.constant 4 : index
    %c200_693 = arith.constant 200 : index
    %c0_694 = arith.constant 0 : index
    %1424 = vector.load %arg2[%c4_692, %c200_693, %c0_694] : memref<8x208x1xf32, #tpu.memory_space<vmem>>, vector<1x8x1xf32>
    %1425 = vector.shape_cast %1424 : vector<1x8x1xf32> to vector<8x1xf32>
    %1426 = vector.broadcast %1425 : vector<8x1xf32> to vector<8x256xf32>
    %1427 = arith.addf %1426, %1403 : vector<8x256xf32>
    %1428 = arith.maximumf %1373, %1427 : vector<8x256xf32>
    %c5_695 = arith.constant 5 : index
    %c200_696 = arith.constant 200 : index
    %c0_697 = arith.constant 0 : index
    %1429 = vector.load %arg2[%c5_695, %c200_696, %c0_697] : memref<8x208x1xf32, #tpu.memory_space<vmem>>, vector<1x8x1xf32>
    %1430 = vector.shape_cast %1429 : vector<1x8x1xf32> to vector<8x1xf32>
    %1431 = vector.broadcast %1430 : vector<8x1xf32> to vector<8x256xf32>
    %1432 = arith.addf %1431, %1403 : vector<8x256xf32>
    %1433 = arith.maximumf %1378, %1432 : vector<8x256xf32>
    %c6_698 = arith.constant 6 : index
    %c200_699 = arith.constant 200 : index
    %c0_700 = arith.constant 0 : index
    %1434 = vector.load %arg2[%c6_698, %c200_699, %c0_700] : memref<8x208x1xf32, #tpu.memory_space<vmem>>, vector<1x8x1xf32>
    %1435 = vector.shape_cast %1434 : vector<1x8x1xf32> to vector<8x1xf32>
    %1436 = vector.broadcast %1435 : vector<8x1xf32> to vector<8x256xf32>
    %1437 = arith.addf %1436, %1403 : vector<8x256xf32>
    %1438 = arith.maximumf %1383, %1437 : vector<8x256xf32>
    %c7_701 = arith.constant 7 : index
    %c200_702 = arith.constant 200 : index
    %c0_703 = arith.constant 0 : index
    %1439 = vector.load %arg2[%c7_701, %c200_702, %c0_703] : memref<8x208x1xf32, #tpu.memory_space<vmem>>, vector<1x8x1xf32>
    %1440 = vector.shape_cast %1439 : vector<1x8x1xf32> to vector<8x1xf32>
    %1441 = vector.broadcast %1440 : vector<8x1xf32> to vector<8x256xf32>
    %1442 = arith.addf %1441, %1403 : vector<8x256xf32>
    %1443 = arith.maximumf %1388, %1442 : vector<8x256xf32>
    %cst_704 = arith.constant dense<0xFF800000> : vector<256xf32>
    %1444 = vector.multi_reduction <maximumf>, %1408, %cst_704 [0] : vector<8x256xf32> to vector<256xf32>
    %1445 = vector.shape_cast %1444 : vector<256xf32> to vector<1x256xf32>
    %c0_705 = arith.constant 0 : index
    %c0_706 = arith.constant 0 : index
    %1446 = vector.load %arg3[%c0_705, %c0_706] : memref<8x256xf32, #tpu.memory_space<vmem>>, vector<1x256xf32>
    tpu.vector_store %arg3[%c0_705, %c0_706], %1445 {strides = array<i32>} : memref<8x256xf32, #tpu.memory_space<vmem>>, vector<1x256xf32>,
    %cst_707 = arith.constant dense<0xFF800000> : vector<256xf32>
    %1447 = vector.multi_reduction <maximumf>, %1413, %cst_707 [0] : vector<8x256xf32> to vector<256xf32>
    %1448 = vector.shape_cast %1447 : vector<256xf32> to vector<1x256xf32>
    %c1_708 = arith.constant 1 : index
    %c0_709 = arith.constant 0 : index
    %1449 = vector.load %arg3[%c1_708, %c0_709] : memref<8x256xf32, #tpu.memory_space<vmem>>, vector<1x256xf32>
    tpu.vector_store %arg3[%c1_708, %c0_709], %1448 {strides = array<i32>} : memref<8x256xf32, #tpu.memory_space<vmem>>, vector<1x256xf32>,
    %cst_710 = arith.constant dense<0xFF800000> : vector<256xf32>
    %1450 = vector.multi_reduction <maximumf>, %1418, %cst_710 [0] : vector<8x256xf32> to vector<256xf32>
    %1451 = vector.shape_cast %1450 : vector<256xf32> to vector<1x256xf32>
    %c2_711 = arith.constant 2 : index
    %c0_712 = arith.constant 0 : index
    %1452 = vector.load %arg3[%c2_711, %c0_712] : memref<8x256xf32, #tpu.memory_space<vmem>>, vector<1x256xf32>
    tpu.vector_store %arg3[%c2_711, %c0_712], %1451 {strides = array<i32>} : memref<8x256xf32, #tpu.memory_space<vmem>>, vector<1x256xf32>,
    %cst_713 = arith.constant dense<0xFF800000> : vector<256xf32>
    %1453 = vector.multi_reduction <maximumf>, %1423, %cst_713 [0] : vector<8x256xf32> to vector<256xf32>
    %1454 = vector.shape_cast %1453 : vector<256xf32> to vector<1x256xf32>
    %c3_714 = arith.constant 3 : index
    %c0_715 = arith.constant 0 : index
    %1455 = vector.load %arg3[%c3_714, %c0_715] : memref<8x256xf32, #tpu.memory_space<vmem>>, vector<1x256xf32>
    tpu.vector_store %arg3[%c3_714, %c0_715], %1454 {strides = array<i32>} : memref<8x256xf32, #tpu.memory_space<vmem>>, vector<1x256xf32>,
    %cst_716 = arith.constant dense<0xFF800000> : vector<256xf32>
    %1456 = vector.multi_reduction <maximumf>, %1428, %cst_716 [0] : vector<8x256xf32> to vector<256xf32>
    %1457 = vector.shape_cast %1456 : vector<256xf32> to vector<1x256xf32>
    %c4_717 = arith.constant 4 : index
    %c0_718 = arith.constant 0 : index
    %1458 = vector.load %arg3[%c4_717, %c0_718] : memref<8x256xf32, #tpu.memory_space<vmem>>, vector<1x256xf32>
    tpu.vector_store %arg3[%c4_717, %c0_718], %1457 {strides = array<i32>} : memref<8x256xf32, #tpu.memory_space<vmem>>, vector<1x256xf32>,
    %cst_719 = arith.constant dense<0xFF800000> : vector<256xf32>
    %1459 = vector.multi_reduction <maximumf>, %1433, %cst_719 [0] : vector<8x256xf32> to vector<256xf32>
    %1460 = vector.shape_cast %1459 : vector<256xf32> to vector<1x256xf32>
    %c5_720 = arith.constant 5 : index
    %c0_721 = arith.constant 0 : index
    %1461 = vector.load %arg3[%c5_720, %c0_721] : memref<8x256xf32, #tpu.memory_space<vmem>>, vector<1x256xf32>
    tpu.vector_store %arg3[%c5_720, %c0_721], %1460 {strides = array<i32>} : memref<8x256xf32, #tpu.memory_space<vmem>>, vector<1x256xf32>,
    %cst_722 = arith.constant dense<0xFF800000> : vector<256xf32>
    %1462 = vector.multi_reduction <maximumf>, %1438, %cst_722 [0] : vector<8x256xf32> to vector<256xf32>
    %1463 = vector.shape_cast %1462 : vector<256xf32> to vector<1x256xf32>
    %c6_723 = arith.constant 6 : index
    %c0_724 = arith.constant 0 : index
    %1464 = vector.load %arg3[%c6_723, %c0_724] : memref<8x256xf32, #tpu.memory_space<vmem>>, vector<1x256xf32>
    tpu.vector_store %arg3[%c6_723, %c0_724], %1463 {strides = array<i32>} : memref<8x256xf32, #tpu.memory_space<vmem>>, vector<1x256xf32>,
    %cst_725 = arith.constant dense<0xFF800000> : vector<256xf32>
    %1465 = vector.multi_reduction <maximumf>, %1443, %cst_725 [0] : vector<8x256xf32> to vector<256xf32>
    %1466 = vector.shape_cast %1465 : vector<256xf32> to vector<1x256xf32>
    %c7_726 = arith.constant 7 : index
    %c0_727 = arith.constant 0 : index
    %1467 = vector.load %arg3[%c7_726, %c0_727] : memref<8x256xf32, #tpu.memory_space<vmem>>, vector<1x256xf32>
    tpu.vector_store %arg3[%c7_726, %c0_727], %1466 {strides = array<i32>} : memref<8x256xf32, #tpu.memory_space<vmem>>, vector<1x256xf32>,
    return
  }
  func.func @transform_0(%arg0: i32) -> i32 {
    %c0_i32 = arith.constant 0 : i32
    %c0_i32_0 = arith.constant 0 : i32
    return %c0_i32 : i32
  }
  func.func @transform_1(%arg0: i32) -> (i32, i32, i32) {
    %c0_i32 = arith.constant 0 : i32
    %c0_i32_0 = arith.constant 0 : i32
    %c0_i32_1 = arith.constant 0 : i32
    return %arg0, %c0_i32, %c0_i32_0 : i32, i32, i32
  }
  func.func @transform_2(%arg0: i32) -> (i32, i32) {
    %c0_i32 = arith.constant 0 : i32
    %c0_i32_0 = arith.constant 0 : i32
    return %arg0, %c0_i32 : i32, i32
  }
}

</mosaic_0001>

<llo_original>
// kernel: tpu_custom_call.1
$region0: #{tpu_custom_call.1}
  #allocation0 [shape = 'u32[]', space=smem, size = 0x4, offset = 0x4, fixed_abs, tag = 'smem constant byte address 0x4 - core index']
  #allocation1 [shape = 'u32[144,128]{1,0:T(1,128)}', space=vmem, size = 0x12000, scoped, tag = 'internal scratch']
  #allocation2 [shape = 'f32[1]{0:T(128)S(6)}', space=smem, size = 0x200, scoped, tag = 'scoped memory for tpu_custom_call.1']
  %s0 = inlined_call_operand.<no memory space> [shape: f32[1], index: 0, kind: input, shape index: {}]
  %s1 = inlined_call_operand.vmem [shape: f32[8,208,1], index: 1, kind: input, shape index: {}]
  %s2 = inlined_call_operand.hbm [shape: f32[8,256], index: 2, kind: output, shape index: {}]
  %s3 = sld [smem:[#allocation0]]
  $region18: #{tpu_custom_call.1} parent=0
    _
  %s5 = ssub.s32 1, %s3
  %s6 = scalar_select 0, %s5, %s3
  %7 = sst [smem:[#allocation2]] %s0
  $region1: #{tpu_custom_call.1} parent=0
    #allocation3 [shape = 'u8[8192]{0}', space=vmem, size = 0x2000, scoped, tag = 'output window, operand 0, single buffered']
    #allocation4 [shape = 's32[1]{0}', space=sflag, size = 0x4, scoped, tag = 'scoped memory for tpu_custom_call.1']
    %8 = vsyncpa [#allocation4], 0
    // Predicated region
    $region2: #{tpu_custom_call.1} parent=1 // pred_check
      _
    $region3: #{tpu_custom_call.1} parent=1 // pred_check_branch
      %10 = sbr.rel (0) target = $region5
    $region4: #{tpu_custom_call.1} parent=1 // pred_region
      _
    $region5: #{tpu_custom_call.1} parent=1 // pred_fallthru
      _
    // Predicated region
    $region6: #{tpu_custom_call.1} parent=1 // pred_check
      _
    $region7: #{tpu_custom_call.1} parent=1 // pred_check_branch
      %12 = sbr.rel (0) target = $region9
    $region8: #{tpu_custom_call.1} parent=1 // pred_region
      _
    $region9: #{tpu_custom_call.1} parent=1 // pred_fallthru
      _
    %s13 = sld [smem:[#allocation2]]
    %v14 = vstv %s13
    %v15 = vrcp.pop %v14
    %s16 = vtos %v15
    %v17 = vlaneseq
    %v18 = vshrl.u32 %v17, 7
    %v19 = vlaneseq
    %v20 = vand.u32 %v19, 127
    %v21 = vadd.s32 %v20, 128
    %v22 = vsub.s32 %v18, %v20
    %v23 = vsub.s32 %v18, %v21
    %v24 = vcvt.s32.f32 %v22
    %v25 = vcvt.s32.f32 %v23
    %v26 = vadd.f32 %v24, 0.0
    %v27 = vadd.f32 %v25, 0.0
    %v28 = vstv %s16
    %v29 = vmul.f32 %v26, %v28
    %v30 = vmul.f32 %v27, %v28
    %v31 = vmul.f32 %v29, %v29
    %v32 = vmul.f32 %v30, %v30
    %v33 = vmul.f32 %v31, %v31
    %v34 = vmul.f32 %v32, %v32
    %v35 = vmul.f32 %v33, %v33
    %v36 = vmul.f32 %v34, %v34
    %v37 = vand.u32 2147483647, %v26
    %v38 = vand.u32 2147483647, %v27
    %vm39 = vcmp.le.f32.partialorder %v37, 100.0
    %vm40 = vcmp.le.f32.partialorder %v38, 100.0
    %v41 = vmul.f32 %v35, %v35
    %v42 = vmul.f32 %v36, %v36
    %v43 = vsub.f32 0.0, %v41
    %v44 = vsub.f32 0.0, %v42
    %v45 = vsel %vm39, %v43, -inf
    %v46 = vsel %vm40, %v44, -inf
    %v47 = vld [vmem:[%s1] sm:$0xff]
    %49 = vset.pattern.permute.xlu0 0
    %50 = vperm.xlu0 %49, %v47
    %v51 = vpop.permute.xlu0 %50
    %v53 = vadd.f32 %v51, %v45
    %v54 = vadd.f32 %v51, %v46
    %s55 = scalar_lea.vmem %s1, 208
    %v56 = vld [vmem:[%s55] sm:$0xff]
    %58 = vset.pattern.permute.xlu0 0
    %59 = vperm.xlu0 %58, %v56
    %v60 = vpop.permute.xlu0 %59
    %v62 = vadd.f32 %v60, %v45
    %v63 = vadd.f32 %v60, %v46
    %s64 = scalar_lea.vmem %s1, 416
    %v65 = vld [vmem:[%s64] sm:$0xff]
    %67 = vset.pattern.permute.xlu0 0
    %68 = vperm.xlu0 %67, %v65
    %v69 = vpop.permute.xlu0 %68
    %v71 = vadd.f32 %v69, %v45
    %v72 = vadd.f32 %v69, %v46
    %s73 = scalar_lea.vmem %s1, 624
    %v74 = vld [vmem:[%s73] sm:$0xff]
    %76 = vset.pattern.permute.xlu0 0
    %77 = vperm.xlu0 %76, %v74
    %v78 = vpop.permute.xlu0 %77
    %v80 = vadd.f32 %v78, %v45
    %v81 = vadd.f32 %v78, %v46
    %s82 = scalar_lea.vmem %s1, 832
    %v83 = vld [vmem:[%s82] sm:$0xff]
    %85 = vset.pattern.permute.xlu0 0
    %86 = vperm.xlu0 %85, %v83
    %v87 = vpop.permute.xlu0 %86
    %v89 = vadd.f32 %v87, %v45
    %v90 = vadd.f32 %v87, %v46
    %s91 = scalar_lea.vmem %s1, 1040
    %v92 = vld [vmem:[%s91] sm:$0xff]
    %94 = vset.pattern.permute.xlu0 0
    %95 = vperm.xlu0 %94, %v92
    %v96 = vpop.permute.xlu0 %95
    %v98 = vadd.f32 %v96, %v45
    %v99 = vadd.f32 %v96, %v46
    %s100 = scalar_lea.vmem %s1, 1248
    %v101 = vld [vmem:[%s100] sm:$0xff]
    %103 = vset.pattern.permute.xlu0 0
    %104 = vperm.xlu0 %103, %v101
    %v105 = vpop.permute.xlu0 %104
    %v107 = vadd.f32 %v105, %v45
    %v108 = vadd.f32 %v105, %v46
    %s109 = scalar_lea.vmem %s1, 1456
    %v110 = vld [vmem:[%s109] sm:$0xff]
    %112 = vset.pattern.permute.xlu0 0
    %113 = vperm.xlu0 %112, %v110
    %v114 = vpop.permute.xlu0 %113
    %v116 = vadd.f32 %v114, %v45
    %v117 = vadd.f32 %v114, %v46
    %v118 = vadd.f32 %v24, 8.0
    %v119 = vadd.f32 %v25, 8.0
    %v120 = vmul.f32 %v118, %v28
    %v121 = vmul.f32 %v119, %v28
    %v122 = vmul.f32 %v120, %v120
    %v123 = vmul.f32 %v121, %v121
    %v124 = vmul.f32 %v122, %v122
    %v125 = vmul.f32 %v123, %v123
    %v126 = vmul.f32 %v124, %v124
    %v127 = vmul.f32 %v125, %v125
    %v128 = vand.u32 2147483647, %v118
    %v129 = vand.u32 2147483647, %v119
    %vm130 = vcmp.le.f32.partialorder %v128, 100.0
    %vm131 = vcmp.le.f32.partialorder %v129, 100.0
    %v132 = vmul.f32 %v126, %v126
    %v133 = vmul.f32 %v127, %v127
    %v134 = vsub.f32 0.0, %v132
    %v135 = vsub.f32 0.0, %v133
    %v136 = vsel %vm130, %v134, -inf
    %v137 = vsel %vm131, %v135, -inf
    %v138 = vld [vmem:[%s1 + $0x8] sm:$0xff]
    %140 = vset.pattern.permute.xlu0 0
    %141 = vperm.xlu0 %140, %v138
    %v142 = vpop.permute.xlu0 %141
    %v144 = vadd.f32 %v142, %v136
    %v145 = vadd.f32 %v142, %v137
    %v146 = vmax.f32 %v53, %v144
    %v147 = vmax.f32 %v54, %v145
    %v148 = vld [vmem:[%s55 + $0x8] sm:$0xff]
    %150 = vset.pattern.permute.xlu0 0
    %151 = vperm.xlu0 %150, %v148
    %v152 = vpop.permute.xlu0 %151
    %v154 = vadd.f32 %v152, %v136
    %v155 = vadd.f32 %v152, %v137
    %v156 = vmax.f32 %v62, %v154
    %v157 = vmax.f32 %v63, %v155
    %v158 = vld [vmem:[%s64 + $0x8] sm:$0xff]
    %160 = vset.pattern.permute.xlu0 0
    %161 = vperm.xlu0 %160, %v158
    %v162 = vpop.permute.xlu0 %161
    %v164 = vadd.f32 %v162, %v136
    %v165 = vadd.f32 %v162, %v137
    %v166 = vmax.f32 %v71, %v164
    %v167 = vmax.f32 %v72, %v165
    %v168 = vld [vmem:[%s73 + $0x8] sm:$0xff]
    %170 = vset.pattern.permute.xlu0 0
    %171 = vperm.xlu0 %170, %v168
    %v172 = vpop.permute.xlu0 %171
    %v174 = vadd.f32 %v172, %v136
    %v175 = vadd.f32 %v172, %v137
    %v176 = vmax.f32 %v80, %v174
    %v177 = vmax.f32 %v81, %v175
    %v178 = vld [vmem:[%s82 + $0x8] sm:$0xff]
    %180 = vset.pattern.permute.xlu0 0
    %181 = vperm.xlu0 %180, %v178
    %v182 = vpop.permute.xlu0 %181
    %v184 = vadd.f32 %v182, %v136
    %v185 = vadd.f32 %v182, %v137
    %v186 = vmax.f32 %v89, %v184
    %v187 = vmax.f32 %v90, %v185
    %v188 = vld [vmem:[%s91 + $0x8] sm:$0xff]
    %190 = vset.pattern.permute.xlu0 0
    %191 = vperm.xlu0 %190, %v188
    %v192 = vpop.permute.xlu0 %191
    %v194 = vadd.f32 %v192, %v136
    %v195 = vadd.f32 %v192, %v137
    %v196 = vmax.f32 %v98, %v194
    %v197 = vmax.f32 %v99, %v195
    %v198 = vld [vmem:[%s100 + $0x8] sm:$0xff]
    %200 = vset.pattern.permute.xlu0 0
    %201 = vperm.xlu0 %200, %v198
    %v202 = vpop.permute.xlu0 %201
    %v204 = vadd.f32 %v202, %v136
    %v205 = vadd.f32 %v202, %v137
    %v206 = vmax.f32 %v107, %v204
    %v207 = vmax.f32 %v108, %v205
    %v208 = vld [vmem:[%s109 + $0x8] sm:$0xff]
    %210 = vset.pattern.permute.xlu0 0
    %211 = vperm.xlu0 %210, %v208
    %v212 = vpop.permute.xlu0 %211
    %v214 = vadd.f32 %v212, %v136
    %v215 = vadd.f32 %v212, %v137
    %v216 = vmax.f32 %v116, %v214
    %v217 = vmax.f32 %v117, %v215
    %v218 = vadd.f32 %v24, 16.0
    %v219 = vadd.f32 %v25, 16.0
    %v220 = vmul.f32 %v218, %v28
    %v221 = vmul.f32 %v219, %v28
    %v222 = vmul.f32 %v220, %v220
    %v223 = vmul.f32 %v221, %v221
    %v224 = vmul.f32 %v222, %v222
    %v225 = vmul.f32 %v223, %v223
    %v226 = vmul.f32 %v224, %v224
    %v227 = vmul.f32 %v225, %v225
    %v228 = vand.u32 2147483647, %v218
    %v229 = vand.u32 2147483647, %v219
    %vm230 = vcmp.le.f32.partialorder %v228, 100.0
    %vm231 = vcmp.le.f32.partialorder %v229, 100.0
    %v232 = vmul.f32 %v226, %v226
    %v233 = vmul.f32 %v227, %v227
    %v234 = vsub.f32 0.0, %v232
    %v235 = vsub.f32 0.0, %v233
    %v236 = vsel %vm230, %v234, -inf
    %v237 = vsel %vm231, %v235, -inf
    %v238 = vld [vmem:[%s1 + $0x10] sm:$0xff]
    %240 = vset.pattern.permute.xlu0 0
    %241 = vperm.xlu0 %240, %v238
    %v242 = vpop.permute.xlu0 %241
    %v244 = vadd.f32 %v242, %v236
    %v245 = vadd.f32 %v242, %v237
    %v246 = vmax.f32 %v146, %v244
    %v247 = vmax.f32 %v147, %v245
    %v248 = vld [vmem:[%s55 + $0x10] sm:$0xff]
    %250 = vset.pattern.permute.xlu0 0
    %251 = vperm.xlu0 %250, %v248
    %v252 = vpop.permute.xlu0 %251
    %v254 = vadd.f32 %v252, %v236
    %v255 = vadd.f32 %v252, %v237
    %v256 = vmax.f32 %v156, %v254
    %v257 = vmax.f32 %v157, %v255
    %v258 = vld [vmem:[%s64 + $0x10] sm:$0xff]
    %260 = vset.pattern.permute.xlu0 0
    %261 = vperm.xlu0 %260, %v258
    %v262 = vpop.permute.xlu0 %261
    %v264 = vadd.f32 %v262, %v236
    %v265 = vadd.f32 %v262, %v237
    %v266 = vmax.f32 %v166, %v264
    %v267 = vmax.f32 %v167, %v265
    %v268 = vld [vmem:[%s73 + $0x10] sm:$0xff]
    %270 = vset.pattern.permute.xlu0 0
    %271 = vperm.xlu0 %270, %v268
    %v272 = vpop.permute.xlu0 %271
    %v274 = vadd.f32 %v272, %v236
    %v275 = vadd.f32 %v272, %v237
    %v276 = vmax.f32 %v176, %v274
    %v277 = vmax.f32 %v177, %v275
    %v278 = vld [vmem:[%s82 + $0x10] sm:$0xff]
    %280 = vset.pattern.permute.xlu0 0
    %281 = vperm.xlu0 %280, %v278
    %v282 = vpop.permute.xlu0 %281
    %v284 = vadd.f32 %v282, %v236
    %v285 = vadd.f32 %v282, %v237
    %v286 = vmax.f32 %v186, %v284
    %v287 = vmax.f32 %v187, %v285
    %v288 = vld [vmem:[%s91 + $0x10] sm:$0xff]
    %290 = vset.pattern.permute.xlu0 0
    %291 = vperm.xlu0 %290, %v288
    %v292 = vpop.permute.xlu0 %291
    %v294 = vadd.f32 %v292, %v236
    %v295 = vadd.f32 %v292, %v237
    %v296 = vmax.f32 %v196, %v294
    %v297 = vmax.f32 %v197, %v295
    %v298 = vld [vmem:[%s100 + $0x10] sm:$0xff]
    %300 = vset.pattern.permute.xlu0 0
    %301 = vperm.xlu0 %300, %v298
    %v302 = vpop.permute.xlu0 %301
    %v304 = vadd.f32 %v302, %v236
    %v305 = vadd.f32 %v302, %v237
    %v306 = vmax.f32 %v206, %v304
    %v307 = vmax.f32 %v207, %v305
    %v308 = vld [vmem:[%s109 + $0x10] sm:$0xff]
    %310 = vset.pattern.permute.xlu0 0
    %311 = vperm.xlu0 %310, %v308
    %v312 = vpop.permute.xlu0 %311
    %v314 = vadd.f32 %v312, %v236
    %v315 = vadd.f32 %v312, %v237
    %v316 = vmax.f32 %v216, %v314
    %v317 = vmax.f32 %v217, %v315
    %v318 = vadd.f32 %v24, 24.0
    %v319 = vadd.f32 %v25, 24.0
    %v320 = vmul.f32 %v318, %v28
    %v321 = vmul.f32 %v319, %v28
    %v322 = vmul.f32 %v320, %v320
    %v323 = vmul.f32 %v321, %v321
    %v324 = vmul.f32 %v322, %v322
    %v325 = vmul.f32 %v323, %v323
    %v326 = vmul.f32 %v324, %v324
    %v327 = vmul.f32 %v325, %v325
    %v328 = vand.u32 2147483647, %v318
    %v329 = vand.u32 2147483647, %v319
    %vm330 = vcmp.le.f32.partialorder %v328, 100.0
    %vm331 = vcmp.le.f32.partialorder %v329, 100.0
    %v332 = vmul.f32 %v326, %v326
    %v333 = vmul.f32 %v327, %v327
    %v334 = vsub.f32 0.0, %v332
    %v335 = vsub.f32 0.0, %v333
    %v336 = vsel %vm330, %v334, -inf
    %v337 = vsel %vm331, %v335, -inf
    %v338 = vld [vmem:[%s1 + $0x18] sm:$0xff]
    %340 = vset.pattern.permute.xlu0 0
    %341 = vperm.xlu0 %340, %v338
    %v342 = vpop.permute.xlu0 %341
    %v344 = vadd.f32 %v342, %v336
    %v345 = vadd.f32 %v342, %v337
    %v346 = vmax.f32 %v246, %v344
    %v347 = vmax.f32 %v247, %v345
    %v348 = vld [vmem:[%s55 + $0x18] sm:$0xff]
    %350 = vset.pattern.permute.xlu0 0
    %351 = vperm.xlu0 %350, %v348
    %v352 = vpop.permute.xlu0 %351
    %v354 = vadd.f32 %v352, %v336
    %v355 = vadd.f32 %v352, %v337
    %v356 = vmax.f32 %v256, %v354
    %v357 = vmax.f32 %v257, %v355
    %v358 = vld [vmem:[%s64 + $0x18] sm:$0xff]
    %360 = vset.pattern.permute.xlu0 0
    %361 = vperm.xlu0 %360, %v358
    %v362 = vpop.permute.xlu0 %361
    %v364 = vadd.f32 %v362, %v336
    %v365 = vadd.f32 %v362, %v337
    %v366 = vmax.f32 %v266, %v364
    %v367 = vmax.f32 %v267, %v365
    %v368 = vld [vmem:[%s73 + $0x18] sm:$0xff]
    %370 = vset.pattern.permute.xlu0 0
    %371 = vperm.xlu0 %370, %v368
    %v372 = vpop.permute.xlu0 %371
    %v374 = vadd.f32 %v372, %v336
    %v375 = vadd.f32 %v372, %v337
    %v376 = vmax.f32 %v276, %v374
    %v377 = vmax.f32 %v277, %v375
    %v378 = vld [vmem:[%s82 + $0x18] sm:$0xff]
    %380 = vset.pattern.permute.xlu0 0
    %381 = vperm.xlu0 %380, %v378
    %v382 = vpop.permute.xlu0 %381
    %v384 = vadd.f32 %v382, %v336
    %v385 = vadd.f32 %v382, %v337
    %v386 = vmax.f32 %v286, %v384
    %v387 = vmax.f32 %v287, %v385
    %v388 = vld [vmem:[%s91 + $0x18] sm:$0xff]
    %390 = vset.pattern.permute.xlu0 0
    %391 = vperm.xlu0 %390, %v388
    %v392 = vpop.permute.xlu0 %391
    %v394 = vadd.f32 %v392, %v336
    %v395 = vadd.f32 %v392, %v337
    %v396 = vmax.f32 %v296, %v394
    %v397 = vmax.f32 %v297, %v395
    %v398 = vld [vmem:[%s100 + $0x18] sm:$0xff]
    %400 = vset.pattern.permute.xlu0 0
    %401 = vperm.xlu0 %400, %v398
    %v402 = vpop.permute.xlu0 %401
    %v404 = vadd.f32 %v402, %v336
    %v405 = vadd.f32 %v402, %v337
    %v406 = vmax.f32 %v306, %v404
    %v407 = vmax.f32 %v307, %v405
    %v408 = vld [vmem:[%s109 + $0x18] sm:$0xff]
    %410 = vset.pattern.permute.xlu0 0
    %411 = vperm.xlu0 %410, %v408
    %v412 = vpop.permute.xlu0 %411
    %v414 = vadd.f32 %v412, %v336
    %v415 = vadd.f32 %v412, %v337
    %v416 = vmax.f32 %v316, %v414
    %v417 = vmax.f32 %v317, %v415
    %v418 = vadd.f32 %v24, 32.0
    %v419 = vadd.f32 %v25, 32.0
    %v420 = vmul.f32 %v418, %v28
    %v421 = vmul.f32 %v419, %v28
    %v422 = vmul.f32 %v420, %v420
    %v423 = vmul.f32 %v421, %v421
    %v424 = vmul.f32 %v422, %v422
    %v425 = vmul.f32 %v423, %v423
    %v426 = vmul.f32 %v424, %v424
    %v427 = vmul.f32 %v425, %v425
    %v428 = vand.u32 2147483647, %v418
    %v429 = vand.u32 2147483647, %v419
    %vm430 = vcmp.le.f32.partialorder %v428, 100.0
    %vm431 = vcmp.le.f32.partialorder %v429, 100.0
    %v432 = vmul.f32 %v426, %v426
    %v433 = vmul.f32 %v427, %v427
    %v434 = vsub.f32 0.0, %v432
    %v435 = vsub.f32 0.0, %v433
    %v436 = vsel %vm430, %v434, -inf
    %v437 = vsel %vm431, %v435, -inf
    %v438 = vld [vmem:[%s1 + $0x20] sm:$0xff]
    %440 = vset.pattern.permute.xlu0 0
    %441 = vperm.xlu0 %440, %v438
    %v442 = vpop.permute.xlu0 %441
    %v444 = vadd.f32 %v442, %v436
    %v445 = vadd.f32 %v442, %v437
    %v446 = vmax.f32 %v346, %v444
    %v447 = vmax.f32 %v347, %v445
    %v448 = vld [vmem:[%s55 + $0x20] sm:$0xff]
    %450 = vset.pattern.permute.xlu0 0
    %451 = vperm.xlu0 %450, %v448
    %v452 = vpop.permute.xlu0 %451
    %v454 = vadd.f32 %v452, %v436
    %v455 = vadd.f32 %v452, %v437
    %v456 = vmax.f32 %v356, %v454
    %v457 = vmax.f32 %v357, %v455
    %v458 = vld [vmem:[%s64 + $0x20] sm:$0xff]
    %460 = vset.pattern.permute.xlu0 0
    %461 = vperm.xlu0 %460, %v458
    %v462 = vpop.permute.xlu0 %461
    %v464 = vadd.f32 %v462, %v436
    %v465 = vadd.f32 %v462, %v437
    %v466 = vmax.f32 %v366, %v464
    %v467 = vmax.f32 %v367, %v465
    %v468 = vld [vmem:[%s73 + $0x20] sm:$0xff]
    %470 = vset.pattern.permute.xlu0 0
    %471 = vperm.xlu0 %470, %v468
    %v472 = vpop.permute.xlu0 %471
    %v474 = vadd.f32 %v472, %v436
    %v475 = vadd.f32 %v472, %v437
    %v476 = vmax.f32 %v376, %v474
    %v477 = vmax.f32 %v377, %v475
    %v478 = vld [vmem:[%s82 + $0x20] sm:$0xff]
    %480 = vset.pattern.permute.xlu0 0
    %481 = vperm.xlu0 %480, %v478
    %v482 = vpop.permute.xlu0 %481
    %v484 = vadd.f32 %v482, %v436
    %v485 = vadd.f32 %v482, %v437
    %v486 = vmax.f32 %v386, %v484
    %v487 = vmax.f32 %v387, %v485
    %v488 = vld [vmem:[%s91 + $0x20] sm:$0xff]
    %490 = vset.pattern.permute.xlu0 0
    %491 = vperm.xlu0 %490, %v488
    %v492 = vpop.permute.xlu0 %491
    %v494 = vadd.f32 %v492, %v436
    %v495 = vadd.f32 %v492, %v437
    %v496 = vmax.f32 %v396, %v494
    %v497 = vmax.f32 %v397, %v495
    %v498 = vld [vmem:[%s100 + $0x20] sm:$0xff]
    %500 = vset.pattern.permute.xlu0 0
    %501 = vperm.xlu0 %500, %v498
    %v502 = vpop.permute.xlu0 %501
    %v504 = vadd.f32 %v502, %v436
    %v505 = vadd.f32 %v502, %v437
    %v506 = vmax.f32 %v406, %v504
    %v507 = vmax.f32 %v407, %v505
    %v508 = vld [vmem:[%s109 + $0x20] sm:$0xff]
    %510 = vset.pattern.permute.xlu0 0
    %511 = vperm.xlu0 %510, %v508
    %v512 = vpop.permute.xlu0 %511
    %v514 = vadd.f32 %v512, %v436
    %v515 = vadd.f32 %v512, %v437
    %v516 = vmax.f32 %v416, %v514
    %v517 = vmax.f32 %v417, %v515
    %v518 = vadd.f32 %v24, 40.0
    %v519 = vadd.f32 %v25, 40.0
    %v520 = vmul.f32 %v518, %v28
    %v521 = vmul.f32 %v519, %v28
    %v522 = vmul.f32 %v520, %v520
    %v523 = vmul.f32 %v521, %v521
    %v524 = vmul.f32 %v522, %v522
    %v525 = vmul.f32 %v523, %v523
    %v526 = vmul.f32 %v524, %v524
    %v527 = vmul.f32 %v525, %v525
    %v528 = vand.u32 2147483647, %v518
    %v529 = vand.u32 2147483647, %v519
    %vm530 = vcmp.le.f32.partialorder %v528, 100.0
    %vm531 = vcmp.le.f32.partialorder %v529, 100.0
    %v532 = vmul.f32 %v526, %v526
    %v533 = vmul.f32 %v527, %v527
    %v534 = vsub.f32 0.0, %v532
    %v535 = vsub.f32 0.0, %v533
    %v536 = vsel %vm530, %v534, -inf
    %v537 = vsel %vm531, %v535, -inf
    %v538 = vld [vmem:[%s1 + $0x28] sm:$0xff]
    %540 = vset.pattern.permute.xlu0 0
    %541 = vperm.xlu0 %540, %v538
    %v542 = vpop.permute.xlu0 %541
    %v544 = vadd.f32 %v542, %v536
    %v545 = vadd.f32 %v542, %v537
    %v546 = vmax.f32 %v446, %v544
    %v547 = vmax.f32 %v447, %v545
    %v548 = vld [vmem:[%s55 + $0x28] sm:$0xff]
    %550 = vset.pattern.permute.xlu0 0
    %551 = vperm.xlu0 %550, %v548
    %v552 = vpop.permute.xlu0 %551
    %v554 = vadd.f32 %v552, %v536
    %v555 = vadd.f32 %v552, %v537
    %v556 = vmax.f32 %v456, %v554
    %v557 = vmax.f32 %v457, %v555
    %v558 = vld [vmem:[%s64 + $0x28] sm:$0xff]
    %560 = vset.pattern.permute.xlu0 0
    %561 = vperm.xlu0 %560, %v558
    %v562 = vpop.permute.xlu0 %561
    %v564 = vadd.f32 %v562, %v536
    %v565 = vadd.f32 %v562, %v537
    %v566 = vmax.f32 %v466, %v564
    %v567 = vmax.f32 %v467, %v565
    %v568 = vld [vmem:[%s73 + $0x28] sm:$0xff]
    %570 = vset.pattern.permute.xlu0 0
    %571 = vperm.xlu0 %570, %v568
    %v572 = vpop.permute.xlu0 %571
    %v574 = vadd.f32 %v572, %v536
    %v575 = vadd.f32 %v572, %v537
    %v576 = vmax.f32 %v476, %v574
    %v577 = vmax.f32 %v477, %v575
    %v578 = vld [vmem:[%s82 + $0x28] sm:$0xff]
    %580 = vset.pattern.permute.xlu0 0
    %581 = vperm.xlu0 %580, %v578
    %v582 = vpop.permute.xlu0 %581
    %v584 = vadd.f32 %v582, %v536
    %v585 = vadd.f32 %v582, %v537
    %v586 = vmax.f32 %v486, %v584
    %v587 = vmax.f32 %v487, %v585
    %v588 = vld [vmem:[%s91 + $0x28] sm:$0xff]
    %590 = vset.pattern.permute.xlu0 0
    %591 = vperm.xlu0 %590, %v588
    %v592 = vpop.permute.xlu0 %591
    %v594 = vadd.f32 %v592, %v536
    %v595 = vadd.f32 %v592, %v537
    %v596 = vmax.f32 %v496, %v594
    %v597 = vmax.f32 %v497, %v595
    %v598 = vld [vmem:[%s100 + $0x28] sm:$0xff]
    %600 = vset.pattern.permute.xlu0 0
    %601 = vperm.xlu0 %600, %v598
    %v602 = vpop.permute.xlu0 %601
    %v604 = vadd.f32 %v602, %v536
    %v605 = vadd.f32 %v602, %v537
    %v606 = vmax.f32 %v506, %v604
    %v607 = vmax.f32 %v507, %v605
    %v608 = vld [vmem:[%s109 + $0x28] sm:$0xff]
    %610 = vset.pattern.permute.xlu0 0
    %611 = vperm.xlu0 %610, %v608
    %v612 = vpop.permute.xlu0 %611
    %v614 = vadd.f32 %v612, %v536
    %v615 = vadd.f32 %v612, %v537
    %v616 = vmax.f32 %v516, %v614
    %v617 = vmax.f32 %v517, %v615
    %v618 = vadd.f32 %v24, 48.0
    %v619 = vadd.f32 %v25, 48.0
    %v620 = vmul.f32 %v618, %v28
    %v621 = vmul.f32 %v619, %v28
    %v622 = vmul.f32 %v620, %v620
    %v623 = vmul.f32 %v621, %v621
    %v624 = vmul.f32 %v622, %v622
    %v625 = vmul.f32 %v623, %v623
    %v626 = vmul.f32 %v624, %v624
    %v627 = vmul.f32 %v625, %v625
    %v628 = vand.u32 2147483647, %v618
    %v629 = vand.u32 2147483647, %v619
    %vm630 = vcmp.le.f32.partialorder %v628, 100.0
    %vm631 = vcmp.le.f32.partialorder %v629, 100.0
    %v632 = vmul.f32 %v626, %v626
    %v633 = vmul.f32 %v627, %v627
    %v634 = vsub.f32 0.0, %v632
    %v635 = vsub.f32 0.0, %v633
    %v636 = vsel %vm630, %v634, -inf
    %v637 = vsel %vm631, %v635, -inf
    %v638 = vld [vmem:[%s1 + $0x30] sm:$0xff]
    %640 = vset.pattern.permute.xlu0 0
    %641 = vperm.xlu0 %640, %v638
    %v642 = vpop.permute.xlu0 %641
    %v644 = vadd.f32 %v642, %v636
    %v645 = vadd.f32 %v642, %v637
    %v646 = vmax.f32 %v546, %v644
    %v647 = vmax.f32 %v547, %v645
    %v648 = vld [vmem:[%s55 + $0x30] sm:$0xff]
    %650 = vset.pattern.permute.xlu0 0
    %651 = vperm.xlu0 %650, %v648
    %v652 = vpop.permute.xlu0 %651
    %v654 = vadd.f32 %v652, %v636
    %v655 = vadd.f32 %v652, %v637
    %v656 = vmax.f32 %v556, %v654
    %v657 = vmax.f32 %v557, %v655
    %v658 = vld [vmem:[%s64 + $0x30] sm:$0xff]
    %660 = vset.pattern.permute.xlu0 0
    %661 = vperm.xlu0 %660, %v658
    %v662 = vpop.permute.xlu0 %661
    %v664 = vadd.f32 %v662, %v636
    %v665 = vadd.f32 %v662, %v637
    %v666 = vmax.f32 %v566, %v664
    %v667 = vmax.f32 %v567, %v665
    %v668 = vld [vmem:[%s73 + $0x30] sm:$0xff]
    %670 = vset.pattern.permute.xlu0 0
    %671 = vperm.xlu0 %670, %v668
    %v672 = vpop.permute.xlu0 %671
    %v674 = vadd.f32 %v672, %v636
    %v675 = vadd.f32 %v672, %v637
    %v676 = vmax.f32 %v576, %v674
    %v677 = vmax.f32 %v577, %v675
    %v678 = vld [vmem:[%s82 + $0x30] sm:$0xff]
    %680 = vset.pattern.permute.xlu0 0
    %681 = vperm.xlu0 %680, %v678
    %v682 = vpop.permute.xlu0 %681
    %v684 = vadd.f32 %v682, %v636
    %v685 = vadd.f32 %v682, %v637
    %v686 = vmax.f32 %v586, %v684
    %v687 = vmax.f32 %v587, %v685
    %v688 = vld [vmem:[%s91 + $0x30] sm:$0xff]
    %690 = vset.pattern.permute.xlu0 0
    %691 = vperm.xlu0 %690, %v688
    %v692 = vpop.permute.xlu0 %691
    %v694 = vadd.f32 %v692, %v636
    %v695 = vadd.f32 %v692, %v637
    %v696 = vmax.f32 %v596, %v694
    %v697 = vmax.f32 %v597, %v695
    %v698 = vld [vmem:[%s100 + $0x30] sm:$0xff]
    %700 = vset.pattern.permute.xlu0 0
    %701 = vperm.xlu0 %700, %v698
    %v702 = vpop.permute.xlu0 %701
    %v704 = vadd.f32 %v702, %v636
    %v705 = vadd.f32 %v702, %v637
    %v706 = vmax.f32 %v606, %v704
    %v707 = vmax.f32 %v607, %v705
    %v708 = vld [vmem:[%s109 + $0x30] sm:$0xff]
    %710 = vset.pattern.permute.xlu0 0
    %711 = vperm.xlu0 %710, %v708
    %v712 = vpop.permute.xlu0 %711
    %v714 = vadd.f32 %v712, %v636
    %v715 = vadd.f32 %v712, %v637
    %v716 = vmax.f32 %v616, %v714
    %v717 = vmax.f32 %v617, %v715
    %v718 = vadd.f32 %v24, 56.0
    %v719 = vadd.f32 %v25, 56.0
    %v720 = vmul.f32 %v718, %v28
    %v721 = vmul.f32 %v719, %v28
    %v722 = vmul.f32 %v720, %v720
    %v723 = vmul.f32 %v721, %v721
    %v724 = vmul.f32 %v722, %v722
    %v725 = vmul.f32 %v723, %v723
    %v726 = vmul.f32 %v724, %v724
    %v727 = vmul.f32 %v725, %v725
    %v728 = vand.u32 2147483647, %v718
    %v729 = vand.u32 2147483647, %v719
    %vm730 = vcmp.le.f32.partialorder %v728, 100.0
    %vm731 = vcmp.le.f32.partialorder %v729, 100.0
    %v732 = vmul.f32 %v726, %v726
    %v733 = vmul.f32 %v727, %v727
    %v734 = vsub.f32 0.0, %v732
    %v735 = vsub.f32 0.0, %v733
    %v736 = vsel %vm730, %v734, -inf
    %v737 = vsel %vm731, %v735, -inf
    %v738 = vld [vmem:[%s1 + $0x38] sm:$0xff]
    %740 = vset.pattern.permute.xlu0 0
    %741 = vperm.xlu0 %740, %v738
    %v742 = vpop.permute.xlu0 %741
    %v744 = vadd.f32 %v742, %v736
    %v745 = vadd.f32 %v742, %v737
    %v746 = vmax.f32 %v646, %v744
    %v747 = vmax.f32 %v647, %v745
    %v748 = vld [vmem:[%s55 + $0x38] sm:$0xff]
    %750 = vset.pattern.permute.xlu0 0
    %751 = vperm.xlu0 %750, %v748
    %v752 = vpop.permute.xlu0 %751
    %v754 = vadd.f32 %v752, %v736
    %v755 = vadd.f32 %v752, %v737
    %v756 = vmax.f32 %v656, %v754
    %v757 = vmax.f32 %v657, %v755
    %v758 = vld [vmem:[%s64 + $0x38] sm:$0xff]
    %760 = vset.pattern.permute.xlu0 0
    %761 = vperm.xlu0 %760, %v758
    %v762 = vpop.permute.xlu0 %761
    %v764 = vadd.f32 %v762, %v736
    %v765 = vadd.f32 %v762, %v737
    %v766 = vmax.f32 %v666, %v764
    %v767 = vmax.f32 %v667, %v765
    %v768 = vld [vmem:[%s73 + $0x38] sm:$0xff]
    %770 = vset.pattern.permute.xlu0 0
    %771 = vperm.xlu0 %770, %v768
    %v772 = vpop.permute.xlu0 %771
    %v774 = vadd.f32 %v772, %v736
    %v775 = vadd.f32 %v772, %v737
    %v776 = vmax.f32 %v676, %v774
    %v777 = vmax.f32 %v677, %v775
    %v778 = vld [vmem:[%s82 + $0x38] sm:$0xff]
    %780 = vset.pattern.permute.xlu0 0
    %781 = vperm.xlu0 %780, %v778
    %v782 = vpop.permute.xlu0 %781
    %v784 = vadd.f32 %v782, %v736
    %v785 = vadd.f32 %v782, %v737
    %v786 = vmax.f32 %v686, %v784
    %v787 = vmax.f32 %v687, %v785
    %v788 = vld [vmem:[%s91 + $0x38] sm:$0xff]
    %790 = vset.pattern.permute.xlu0 0
    %791 = vperm.xlu0 %790, %v788
    %v792 = vpop.permute.xlu0 %791
    %v794 = vadd.f32 %v792, %v736
    %v795 = vadd.f32 %v792, %v737
    %v796 = vmax.f32 %v696, %v794
    %v797 = vmax.f32 %v697, %v795
    %v798 = vld [vmem:[%s100 + $0x38] sm:$0xff]
    %800 = vset.pattern.permute.xlu0 0
    %801 = vperm.xlu0 %800, %v798
    %v802 = vpop.permute.xlu0 %801
    %v804 = vadd.f32 %v802, %v736
    %v805 = vadd.f32 %v802, %v737
    %v806 = vmax.f32 %v706, %v804
    %v807 = vmax.f32 %v707, %v805
    %v808 = vld [vmem:[%s109 + $0x38] sm:$0xff]
    %810 = vset.pattern.permute.xlu0 0
    %811 = vperm.xlu0 %810, %v808
    %v812 = vpop.permute.xlu0 %811
    %v814 = vadd.f32 %v812, %v736
    %v815 = vadd.f32 %v812, %v737
    %v816 = vmax.f32 %v716, %v814
    %v817 = vmax.f32 %v717, %v815
    %v818 = vadd.f32 %v24, 64.0
    %v819 = vadd.f32 %v25, 64.0
    %v820 = vmul.f32 %v818, %v28
    %v821 = vmul.f32 %v819, %v28
    %v822 = vmul.f32 %v820, %v820
    %v823 = vmul.f32 %v821, %v821
    %v824 = vmul.f32 %v822, %v822
    %v825 = vmul.f32 %v823, %v823
    %v826 = vmul.f32 %v824, %v824
    %v827 = vmul.f32 %v825, %v825
    %v828 = vand.u32 2147483647, %v818
    %v829 = vand.u32 2147483647, %v819
    %vm830 = vcmp.le.f32.partialorder %v828, 100.0
    %vm831 = vcmp.le.f32.partialorder %v829, 100.0
    %v832 = vmul.f32 %v826, %v826
    %v833 = vmul.f32 %v827, %v827
    %v834 = vsub.f32 0.0, %v832
    %v835 = vsub.f32 0.0, %v833
    %v836 = vsel %vm830, %v834, -inf
    %v837 = vsel %vm831, %v835, -inf
    %v838 = vld [vmem:[%s1 + $0x40] sm:$0xff]
    %840 = vset.pattern.permute.xlu0 0
    %841 = vperm.xlu0 %840, %v838
    %v842 = vpop.permute.xlu0 %841
    %v844 = vadd.f32 %v842, %v836
    %v845 = vadd.f32 %v842, %v837
    %v846 = vmax.f32 %v746, %v844
    %v847 = vmax.f32 %v747, %v845
    %v848 = vld [vmem:[%s55 + $0x40] sm:$0xff]
    %850 = vset.pattern.permute.xlu0 0
    %851 = vperm.xlu0 %850, %v848
    %v852 = vpop.permute.xlu0 %851
    %v854 = vadd.f32 %v852, %v836
    %v855 = vadd.f32 %v852, %v837
    %v856 = vmax.f32 %v756, %v854
    %v857 = vmax.f32 %v757, %v855
    %v858 = vld [vmem:[%s64 + $0x40] sm:$0xff]
    %860 = vset.pattern.permute.xlu0 0
    %861 = vperm.xlu0 %860, %v858
    %v862 = vpop.permute.xlu0 %861
    %v864 = vadd.f32 %v862, %v836
    %v865 = vadd.f32 %v862, %v837
    %v866 = vmax.f32 %v766, %v864
    %v867 = vmax.f32 %v767, %v865
    %v868 = vld [vmem:[%s73 + $0x40] sm:$0xff]
    %870 = vset.pattern.permute.xlu0 0
    %871 = vperm.xlu0 %870, %v868
    %v872 = vpop.permute.xlu0 %871
    %v874 = vadd.f32 %v872, %v836
    %v875 = vadd.f32 %v872, %v837
    %v876 = vmax.f32 %v776, %v874
    %v877 = vmax.f32 %v777, %v875
    %v878 = vld [vmem:[%s82 + $0x40] sm:$0xff]
    %880 = vset.pattern.permute.xlu0 0
    %881 = vperm.xlu0 %880, %v878
    %v882 = vpop.permute.xlu0 %881
    %v884 = vadd.f32 %v882, %v836
    %v885 = vadd.f32 %v882, %v837
    %v886 = vmax.f32 %v786, %v884
    %v887 = vmax.f32 %v787, %v885
    %v888 = vld [vmem:[%s91 + $0x40] sm:$0xff]
    %890 = vset.pattern.permute.xlu0 0
    %891 = vperm.xlu0 %890, %v888
    %v892 = vpop.permute.xlu0 %891
    %v894 = vadd.f32 %v892, %v836
    %v895 = vadd.f32 %v892, %v837
    %v896 = vmax.f32 %v796, %v894
    %v897 = vmax.f32 %v797, %v895
    %v898 = vld [vmem:[%s100 + $0x40] sm:$0xff]
    %900 = vset.pattern.permute.xlu0 0
    %901 = vperm.xlu0 %900, %v898
    %v902 = vpop.permute.xlu0 %901
    %v904 = vadd.f32 %v902, %v836
    %v905 = vadd.f32 %v902, %v837
    %v906 = vmax.f32 %v806, %v904
    %v907 = vmax.f32 %v807, %v905
    %v908 = vld [vmem:[%s109 + $0x40] sm:$0xff]
    %910 = vset.pattern.permute.xlu0 0
    %911 = vperm.xlu0 %910, %v908
    %v912 = vpop.permute.xlu0 %911
    %v914 = vadd.f32 %v912, %v836
    %v915 = vadd.f32 %v912, %v837
    %v916 = vmax.f32 %v816, %v914
    %v917 = vmax.f32 %v817, %v915
    %v918 = vadd.f32 %v24, 72.0
    %v919 = vadd.f32 %v25, 72.0
    %v920 = vmul.f32 %v918, %v28
    %v921 = vmul.f32 %v919, %v28
    %v922 = vmul.f32 %v920, %v920
    %v923 = vmul.f32 %v921, %v921
    %v924 = vmul.f32 %v922, %v922
    %v925 = vmul.f32 %v923, %v923
    %v926 = vmul.f32 %v924, %v924
    %v927 = vmul.f32 %v925, %v925
    %v928 = vand.u32 2147483647, %v918
    %v929 = vand.u32 2147483647, %v919
    %vm930 = vcmp.le.f32.partialorder %v928, 100.0
    %vm931 = vcmp.le.f32.partialorder %v929, 100.0
    %v932 = vmul.f32 %v926, %v926
    %v933 = vmul.f32 %v927, %v927
    %v934 = vsub.f32 0.0, %v932
    %v935 = vsub.f32 0.0, %v933
    %v936 = vsel %vm930, %v934, -inf
    %v937 = vsel %vm931, %v935, -inf
    %v938 = vld [vmem:[%s1 + $0x48] sm:$0xff]
    %940 = vset.pattern.permute.xlu0 0
    %941 = vperm.xlu0 %940, %v938
    %v942 = vpop.permute.xlu0 %941
    %v944 = vadd.f32 %v942, %v936
    %v945 = vadd.f32 %v942, %v937
    %v946 = vmax.f32 %v846, %v944
    %v947 = vmax.f32 %v847, %v945
    %v948 = vld [vmem:[%s55 + $0x48] sm:$0xff]
    %950 = vset.pattern.permute.xlu0 0
    %951 = vperm.xlu0 %950, %v948
    %v952 = vpop.permute.xlu0 %951
    %v954 = vadd.f32 %v952, %v936
    %v955 = vadd.f32 %v952, %v937
    %v956 = vmax.f32 %v856, %v954
    %v957 = vmax.f32 %v857, %v955
    %v958 = vld [vmem:[%s64 + $0x48] sm:$0xff]
    %960 = vset.pattern.permute.xlu0 0
    %961 = vperm.xlu0 %960, %v958
    %v962 = vpop.permute.xlu0 %961
    %v964 = vadd.f32 %v962, %v936
    %v965 = vadd.f32 %v962, %v937
    %v966 = vmax.f32 %v866, %v964
    %v967 = vmax.f32 %v867, %v965
    %v968 = vld [vmem:[%s73 + $0x48] sm:$0xff]
    %970 = vset.pattern.permute.xlu0 0
    %971 = vperm.xlu0 %970, %v968
    %v972 = vpop.permute.xlu0 %971
    %v974 = vadd.f32 %v972, %v936
    %v975 = vadd.f32 %v972, %v937
    %v976 = vmax.f32 %v876, %v974
    %v977 = vmax.f32 %v877, %v975
    %v978 = vld [vmem:[%s82 + $0x48] sm:$0xff]
    %980 = vset.pattern.permute.xlu0 0
    %981 = vperm.xlu0 %980, %v978
    %v982 = vpop.permute.xlu0 %981
    %v984 = vadd.f32 %v982, %v936
    %v985 = vadd.f32 %v982, %v937
    %v986 = vmax.f32 %v886, %v984
    %v987 = vmax.f32 %v887, %v985
    %v988 = vld [vmem:[%s91 + $0x48] sm:$0xff]
    %990 = vset.pattern.permute.xlu0 0
    %991 = vperm.xlu0 %990, %v988
    %v992 = vpop.permute.xlu0 %991
    %v994 = vadd.f32 %v992, %v936
    %v995 = vadd.f32 %v992, %v937
    %v996 = vmax.f32 %v896, %v994
    %v997 = vmax.f32 %v897, %v995
    %v998 = vld [vmem:[%s100 + $0x48] sm:$0xff]
    %1000 = vset.pattern.permute.xlu0 0
    %1001 = vperm.xlu0 %1000, %v998
    %v1002 = vpop.permute.xlu0 %1001
    %v1004 = vadd.f32 %v1002, %v936
    %v1005 = vadd.f32 %v1002, %v937
    %v1006 = vmax.f32 %v906, %v1004
    %v1007 = vmax.f32 %v907, %v1005
    %v1008 = vld [vmem:[%s109 + $0x48] sm:$0xff]
    %1010 = vset.pattern.permute.xlu0 0
    %1011 = vperm.xlu0 %1010, %v1008
    %v1012 = vpop.permute.xlu0 %1011
    %v1014 = vadd.f32 %v1012, %v936
    %v1015 = vadd.f32 %v1012, %v937
    %v1016 = vmax.f32 %v916, %v1014
    %v1017 = vmax.f32 %v917, %v1015
    %v1018 = vadd.f32 %v24, 80.0
    %v1019 = vadd.f32 %v25, 80.0
    %v1020 = vmul.f32 %v1018, %v28
    %v1021 = vmul.f32 %v1019, %v28
    %v1022 = vmul.f32 %v1020, %v1020
    %v1023 = vmul.f32 %v1021, %v1021
    %v1024 = vmul.f32 %v1022, %v1022
    %v1025 = vmul.f32 %v1023, %v1023
    %v1026 = vmul.f32 %v1024, %v1024
    %v1027 = vmul.f32 %v1025, %v1025
    %v1028 = vand.u32 2147483647, %v1018
    %v1029 = vand.u32 2147483647, %v1019
    %vm1030 = vcmp.le.f32.partialorder %v1028, 100.0
    %vm1031 = vcmp.le.f32.partialorder %v1029, 100.0
    %v1032 = vmul.f32 %v1026, %v1026
    %v1033 = vmul.f32 %v1027, %v1027
    %v1034 = vsub.f32 0.0, %v1032
    %v1035 = vsub.f32 0.0, %v1033
    %v1036 = vsel %vm1030, %v1034, -inf
    %v1037 = vsel %vm1031, %v1035, -inf
    %v1038 = vld [vmem:[%s1 + $0x50] sm:$0xff]
    %1040 = vset.pattern.permute.xlu0 0
    %1041 = vperm.xlu0 %1040, %v1038
    %v1042 = vpop.permute.xlu0 %1041
    %v1044 = vadd.f32 %v1042, %v1036
    %v1045 = vadd.f32 %v1042, %v1037
    %v1046 = vmax.f32 %v946, %v1044
    %v1047 = vmax.f32 %v947, %v1045
    %v1048 = vld [vmem:[%s55 + $0x50] sm:$0xff]
    %1050 = vset.pattern.permute.xlu0 0
    %1051 = vperm.xlu0 %1050, %v1048
    %v1052 = vpop.permute.xlu0 %1051
    %v1054 = vadd.f32 %v1052, %v1036
    %v1055 = vadd.f32 %v1052, %v1037
    %v1056 = vmax.f32 %v956, %v1054
    %v1057 = vmax.f32 %v957, %v1055
    %v1058 = vld [vmem:[%s64 + $0x50] sm:$0xff]
    %1060 = vset.pattern.permute.xlu0 0
    %1061 = vperm.xlu0 %1060, %v1058
    %v1062 = vpop.permute.xlu0 %1061
    %v1064 = vadd.f32 %v1062, %v1036
    %v1065 = vadd.f32 %v1062, %v1037
    %v1066 = vmax.f32 %v966, %v1064
    %v1067 = vmax.f32 %v967, %v1065
    %v1068 = vld [vmem:[%s73 + $0x50] sm:$0xff]
    %1070 = vset.pattern.permute.xlu0 0
    %1071 = vperm.xlu0 %1070, %v1068
    %v1072 = vpop.permute.xlu0 %1071
    %v1074 = vadd.f32 %v1072, %v1036
    %v1075 = vadd.f32 %v1072, %v1037
    %v1076 = vmax.f32 %v976, %v1074
    %v1077 = vmax.f32 %v977, %v1075
    %v1078 = vld [vmem:[%s82 + $0x50] sm:$0xff]
    %1080 = vset.pattern.permute.xlu0 0
    %1081 = vperm.xlu0 %1080, %v1078
    %v1082 = vpop.permute.xlu0 %1081
    %v1084 = vadd.f32 %v1082, %v1036
    %v1085 = vadd.f32 %v1082, %v1037
    %v1086 = vmax.f32 %v986, %v1084
    %v1087 = vmax.f32 %v987, %v1085
    %v1088 = vld [vmem:[%s91 + $0x50] sm:$0xff]
    %1090 = vset.pattern.permute.xlu0 0
    %1091 = vperm.xlu0 %1090, %v1088
    %v1092 = vpop.permute.xlu0 %1091
    %v1094 = vadd.f32 %v1092, %v1036
    %v1095 = vadd.f32 %v1092, %v1037
    %v1096 = vmax.f32 %v996, %v1094
    %v1097 = vmax.f32 %v997, %v1095
    %v1098 = vld [vmem:[%s100 + $0x50] sm:$0xff]
    %1100 = vset.pattern.permute.xlu0 0
    %1101 = vperm.xlu0 %1100, %v1098
    %v1102 = vpop.permute.xlu0 %1101
    %v1104 = vadd.f32 %v1102, %v1036
    %v1105 = vadd.f32 %v1102, %v1037
    %v1106 = vmax.f32 %v1006, %v1104
    %v1107 = vmax.f32 %v1007, %v1105
    %v1108 = vld [vmem:[%s109 + $0x50] sm:$0xff]
    %1110 = vset.pattern.permute.xlu0 0
    %1111 = vperm.xlu0 %1110, %v1108
    %v1112 = vpop.permute.xlu0 %1111
    %v1114 = vadd.f32 %v1112, %v1036
    %v1115 = vadd.f32 %v1112, %v1037
    %v1116 = vmax.f32 %v1016, %v1114
    %v1117 = vmax.f32 %v1017, %v1115
    %v1118 = vadd.f32 %v24, 88.0
    %v1119 = vadd.f32 %v25, 88.0
    %v1120 = vmul.f32 %v1118, %v28
    %v1121 = vmul.f32 %v1119, %v28
    %v1122 = vmul.f32 %v1120, %v1120
    %v1123 = vmul.f32 %v1121, %v1121
    %v1124 = vmul.f32 %v1122, %v1122
    %v1125 = vmul.f32 %v1123, %v1123
    %v1126 = vmul.f32 %v1124, %v1124
    %v1127 = vmul.f32 %v1125, %v1125
    %v1128 = vand.u32 2147483647, %v1118
    %v1129 = vand.u32 2147483647, %v1119
    %vm1130 = vcmp.le.f32.partialorder %v1128, 100.0
    %vm1131 = vcmp.le.f32.partialorder %v1129, 100.0
    %v1132 = vmul.f32 %v1126, %v1126
    %v1133 = vmul.f32 %v1127, %v1127
    %v1134 = vsub.f32 0.0, %v1132
    %v1135 = vsub.f32 0.0, %v1133
    %v1136 = vsel %vm1130, %v1134, -inf
    %v1137 = vsel %vm1131, %v1135, -inf
    %v1138 = vld [vmem:[%s1 + $0x58] sm:$0xff]
    %1140 = vset.pattern.permute.xlu0 0
    %1141 = vperm.xlu0 %1140, %v1138
    %v1142 = vpop.permute.xlu0 %1141
    %v1144 = vadd.f32 %v1142, %v1136
    %v1145 = vadd.f32 %v1142, %v1137
    %v1146 = vmax.f32 %v1046, %v1144
    %v1147 = vmax.f32 %v1047, %v1145
    %v1148 = vld [vmem:[%s55 + $0x58] sm:$0xff]
    %1150 = vset.pattern.permute.xlu0 0
    %1151 = vperm.xlu0 %1150, %v1148
    %v1152 = vpop.permute.xlu0 %1151
    %v1154 = vadd.f32 %v1152, %v1136
    %v1155 = vadd.f32 %v1152, %v1137
    %v1156 = vmax.f32 %v1056, %v1154
    %v1157 = vmax.f32 %v1057, %v1155
    %v1158 = vld [vmem:[%s64 + $0x58] sm:$0xff]
    %1160 = vset.pattern.permute.xlu0 0
    %1161 = vperm.xlu0 %1160, %v1158
    %v1162 = vpop.permute.xlu0 %1161
    %v1164 = vadd.f32 %v1162, %v1136
    %v1165 = vadd.f32 %v1162, %v1137
    %v1166 = vmax.f32 %v1066, %v1164
    %v1167 = vmax.f32 %v1067, %v1165
    %v1168 = vld [vmem:[%s73 + $0x58] sm:$0xff]
    %1170 = vset.pattern.permute.xlu0 0
    %1171 = vperm.xlu0 %1170, %v1168
    %v1172 = vpop.permute.xlu0 %1171
    %v1174 = vadd.f32 %v1172, %v1136
    %v1175 = vadd.f32 %v1172, %v1137
    %v1176 = vmax.f32 %v1076, %v1174
    %v1177 = vmax.f32 %v1077, %v1175
    %v1178 = vld [vmem:[%s82 + $0x58] sm:$0xff]
    %1180 = vset.pattern.permute.xlu0 0
    %1181 = vperm.xlu0 %1180, %v1178
    %v1182 = vpop.permute.xlu0 %1181
    %v1184 = vadd.f32 %v1182, %v1136
    %v1185 = vadd.f32 %v1182, %v1137
    %v1186 = vmax.f32 %v1086, %v1184
    %v1187 = vmax.f32 %v1087, %v1185
    %v1188 = vld [vmem:[%s91 + $0x58] sm:$0xff]
    %1190 = vset.pattern.permute.xlu0 0
    %1191 = vperm.xlu0 %1190, %v1188
    %v1192 = vpop.permute.xlu0 %1191
    %v1194 = vadd.f32 %v1192, %v1136
    %v1195 = vadd.f32 %v1192, %v1137
    %v1196 = vmax.f32 %v1096, %v1194
    %v1197 = vmax.f32 %v1097, %v1195
    %v1198 = vld [vmem:[%s100 + $0x58] sm:$0xff]
    %1200 = vset.pattern.permute.xlu0 0
    %1201 = vperm.xlu0 %1200, %v1198
    %v1202 = vpop.permute.xlu0 %1201
    %v1204 = vadd.f32 %v1202, %v1136
    %v1205 = vadd.f32 %v1202, %v1137
    %v1206 = vmax.f32 %v1106, %v1204
    %v1207 = vmax.f32 %v1107, %v1205
    %v1208 = vld [vmem:[%s109 + $0x58] sm:$0xff]
    %1210 = vset.pattern.permute.xlu0 0
    %1211 = vperm.xlu0 %1210, %v1208
    %v1212 = vpop.permute.xlu0 %1211
    %v1214 = vadd.f32 %v1212, %v1136
    %v1215 = vadd.f32 %v1212, %v1137
    %v1216 = vmax.f32 %v1116, %v1214
    %v1217 = vmax.f32 %v1117, %v1215
    %v1218 = vadd.f32 %v24, 96.0
    %v1219 = vadd.f32 %v25, 96.0
    %v1220 = vmul.f32 %v1218, %v28
    %v1221 = vmul.f32 %v1219, %v28
    %v1222 = vmul.f32 %v1220, %v1220
    %v1223 = vmul.f32 %v1221, %v1221
    %v1224 = vmul.f32 %v1222, %v1222
    %v1225 = vmul.f32 %v1223, %v1223
    %v1226 = vmul.f32 %v1224, %v1224
    %v1227 = vmul.f32 %v1225, %v1225
    %v1228 = vand.u32 2147483647, %v1218
    %v1229 = vand.u32 2147483647, %v1219
    %vm1230 = vcmp.le.f32.partialorder %v1228, 100.0
    %vm1231 = vcmp.le.f32.partialorder %v1229, 100.0
    %v1232 = vmul.f32 %v1226, %v1226
    %v1233 = vmul.f32 %v1227, %v1227
    %v1234 = vsub.f32 0.0, %v1232
    %v1235 = vsub.f32 0.0, %v1233
    %v1236 = vsel %vm1230, %v1234, -inf
    %v1237 = vsel %vm1231, %v1235, -inf
    %v1238 = vld [vmem:[%s1 + $0x60] sm:$0xff]
    %1240 = vset.pattern.permute.xlu0 0
    %1241 = vperm.xlu0 %1240, %v1238
    %v1242 = vpop.permute.xlu0 %1241
    %v1244 = vadd.f32 %v1242, %v1236
    %v1245 = vadd.f32 %v1242, %v1237
    %v1246 = vmax.f32 %v1146, %v1244
    %v1247 = vmax.f32 %v1147, %v1245
    %v1248 = vld [vmem:[%s55 + $0x60] sm:$0xff]
    %1250 = vset.pattern.permute.xlu0 0
    %1251 = vperm.xlu0 %1250, %v1248
    %v1252 = vpop.permute.xlu0 %1251
    %v1254 = vadd.f32 %v1252, %v1236
    %v1255 = vadd.f32 %v1252, %v1237
    %v1256 = vmax.f32 %v1156, %v1254
    %v1257 = vmax.f32 %v1157, %v1255
    %v1258 = vld [vmem:[%s64 + $0x60] sm:$0xff]
    %1260 = vset.pattern.permute.xlu0 0
    %1261 = vperm.xlu0 %1260, %v1258
    %v1262 = vpop.permute.xlu0 %1261
    %v1264 = vadd.f32 %v1262, %v1236
    %v1265 = vadd.f32 %v1262, %v1237
    %v1266 = vmax.f32 %v1166, %v1264
    %v1267 = vmax.f32 %v1167, %v1265
    %v1268 = vld [vmem:[%s73 + $0x60] sm:$0xff]
    %1270 = vset.pattern.permute.xlu0 0
    %1271 = vperm.xlu0 %1270, %v1268
    %v1272 = vpop.permute.xlu0 %1271
    %v1274 = vadd.f32 %v1272, %v1236
    %v1275 = vadd.f32 %v1272, %v1237
    %v1276 = vmax.f32 %v1176, %v1274
    %v1277 = vmax.f32 %v1177, %v1275
    %v1278 = vld [vmem:[%s82 + $0x60] sm:$0xff]
    %1280 = vset.pattern.permute.xlu0 0
    %1281 = vperm.xlu0 %1280, %v1278
    %v1282 = vpop.permute.xlu0 %1281
    %v1284 = vadd.f32 %v1282, %v1236
    %v1285 = vadd.f32 %v1282, %v1237
    %v1286 = vmax.f32 %v1186, %v1284
    %v1287 = vmax.f32 %v1187, %v1285
    %v1288 = vld [vmem:[%s91 + $0x60] sm:$0xff]
    %1290 = vset.pattern.permute.xlu0 0
    %1291 = vperm.xlu0 %1290, %v1288
    %v1292 = vpop.permute.xlu0 %1291
    %v1294 = vadd.f32 %v1292, %v1236
    %v1295 = vadd.f32 %v1292, %v1237
    %v1296 = vmax.f32 %v1196, %v1294
    %v1297 = vmax.f32 %v1197, %v1295
    %v1298 = vld [vmem:[%s100 + $0x60] sm:$0xff]
    %1300 = vset.pattern.permute.xlu0 0
    %1301 = vperm.xlu0 %1300, %v1298
    %v1302 = vpop.permute.xlu0 %1301
    %v1304 = vadd.f32 %v1302, %v1236
    %v1305 = vadd.f32 %v1302, %v1237
    %v1306 = vmax.f32 %v1206, %v1304
    %v1307 = vmax.f32 %v1207, %v1305
    %v1308 = vld [vmem:[%s109 + $0x60] sm:$0xff]
    %1310 = vset.pattern.permute.xlu0 0
    %1311 = vperm.xlu0 %1310, %v1308
    %v1312 = vpop.permute.xlu0 %1311
    %v1314 = vadd.f32 %v1312, %v1236
    %v1315 = vadd.f32 %v1312, %v1237
    %v1316 = vmax.f32 %v1216, %v1314
    %v1317 = vmax.f32 %v1217, %v1315
    %v1318 = vadd.f32 %v24, 104.0
    %v1319 = vadd.f32 %v25, 104.0
    %v1320 = vmul.f32 %v1318, %v28
    %v1321 = vmul.f32 %v1319, %v28
    %v1322 = vmul.f32 %v1320, %v1320
    %v1323 = vmul.f32 %v1321, %v1321
    %v1324 = vmul.f32 %v1322, %v1322
    %v1325 = vmul.f32 %v1323, %v1323
    %v1326 = vmul.f32 %v1324, %v1324
    %v1327 = vmul.f32 %v1325, %v1325
    %v1328 = vand.u32 2147483647, %v1318
    %v1329 = vand.u32 2147483647, %v1319
    %vm1330 = vcmp.le.f32.partialorder %v1328, 100.0
    %vm1331 = vcmp.le.f32.partialorder %v1329, 100.0
    %v1332 = vmul.f32 %v1326, %v1326
    %v1333 = vmul.f32 %v1327, %v1327
    %v1334 = vsub.f32 0.0, %v1332
    %v1335 = vsub.f32 0.0, %v1333
    %v1336 = vsel %vm1330, %v1334, -inf
    %v1337 = vsel %vm1331, %v1335, -inf
    %v1338 = vld [vmem:[%s1 + $0x68] sm:$0xff]
    %1340 = vset.pattern.permute.xlu0 0
    %1341 = vperm.xlu0 %1340, %v1338
    %v1342 = vpop.permute.xlu0 %1341
    %v1344 = vadd.f32 %v1342, %v1336
    %v1345 = vadd.f32 %v1342, %v1337
    %v1346 = vmax.f32 %v1246, %v1344
    %v1347 = vmax.f32 %v1247, %v1345
    %v1348 = vld [vmem:[%s55 + $0x68] sm:$0xff]
    %1350 = vset.pattern.permute.xlu0 0
    %1351 = vperm.xlu0 %1350, %v1348
    %v1352 = vpop.permute.xlu0 %1351
    %v1354 = vadd.f32 %v1352, %v1336
    %v1355 = vadd.f32 %v1352, %v1337
    %v1356 = vmax.f32 %v1256, %v1354
    %v1357 = vmax.f32 %v1257, %v1355
    %v1358 = vld [vmem:[%s64 + $0x68] sm:$0xff]
    %1360 = vset.pattern.permute.xlu0 0
    %1361 = vperm.xlu0 %1360, %v1358
    %v1362 = vpop.permute.xlu0 %1361
    %v1364 = vadd.f32 %v1362, %v1336
    %v1365 = vadd.f32 %v1362, %v1337
    %v1366 = vmax.f32 %v1266, %v1364
    %v1367 = vmax.f32 %v1267, %v1365
    %v1368 = vld [vmem:[%s73 + $0x68] sm:$0xff]
    %1370 = vset.pattern.permute.xlu0 0
    %1371 = vperm.xlu0 %1370, %v1368
    %v1372 = vpop.permute.xlu0 %1371
    %v1374 = vadd.f32 %v1372, %v1336
    %v1375 = vadd.f32 %v1372, %v1337
    %v1376 = vmax.f32 %v1276, %v1374
    %v1377 = vmax.f32 %v1277, %v1375
    %v1378 = vld [vmem:[%s82 + $0x68] sm:$0xff]
    %1380 = vset.pattern.permute.xlu0 0
    %1381 = vperm.xlu0 %1380, %v1378
    %v1382 = vpop.permute.xlu0 %1381
    %v1384 = vadd.f32 %v1382, %v1336
    %v1385 = vadd.f32 %v1382, %v1337
    %v1386 = vmax.f32 %v1286, %v1384
    %v1387 = vmax.f32 %v1287, %v1385
    %v1388 = vld [vmem:[%s91 + $0x68] sm:$0xff]
    %1390 = vset.pattern.permute.xlu0 0
    %1391 = vperm.xlu0 %1390, %v1388
    %v1392 = vpop.permute.xlu0 %1391
    %v1394 = vadd.f32 %v1392, %v1336
    %v1395 = vadd.f32 %v1392, %v1337
    %v1396 = vmax.f32 %v1296, %v1394
    %v1397 = vmax.f32 %v1297, %v1395
    %v1398 = vld [vmem:[%s100 + $0x68] sm:$0xff]
    %1400 = vset.pattern.permute.xlu0 0
    %1401 = vperm.xlu0 %1400, %v1398
    %v1402 = vpop.permute.xlu0 %1401
    %v1404 = vadd.f32 %v1402, %v1336
    %v1405 = vadd.f32 %v1402, %v1337
    %v1406 = vmax.f32 %v1306, %v1404
    %v1407 = vmax.f32 %v1307, %v1405
    %v1408 = vld [vmem:[%s109 + $0x68] sm:$0xff]
    %1410 = vset.pattern.permute.xlu0 0
    %1411 = vperm.xlu0 %1410, %v1408
    %v1412 = vpop.permute.xlu0 %1411
    %v1414 = vadd.f32 %v1412, %v1336
    %v1415 = vadd.f32 %v1412, %v1337
    %v1416 = vmax.f32 %v1316, %v1414
    %v1417 = vmax.f32 %v1317, %v1415
    %v1418 = vadd.f32 %v24, 112.0
    %v1419 = vadd.f32 %v25, 112.0
    %v1420 = vmul.f32 %v1418, %v28
    %v1421 = vmul.f32 %v1419, %v28
    %v1422 = vmul.f32 %v1420, %v1420
    %v1423 = vmul.f32 %v1421, %v1421
    %v1424 = vmul.f32 %v1422, %v1422
    %v1425 = vmul.f32 %v1423, %v1423
    %v1426 = vmul.f32 %v1424, %v1424
    %v1427 = vmul.f32 %v1425, %v1425
    %v1428 = vand.u32 2147483647, %v1418
    %v1429 = vand.u32 2147483647, %v1419
    %vm1430 = vcmp.le.f32.partialorder %v1428, 100.0
    %vm1431 = vcmp.le.f32.partialorder %v1429, 100.0
    %v1432 = vmul.f32 %v1426, %v1426
    %v1433 = vmul.f32 %v1427, %v1427
    %v1434 = vsub.f32 0.0, %v1432
    %v1435 = vsub.f32 0.0, %v1433
    %v1436 = vsel %vm1430, %v1434, -inf
    %v1437 = vsel %vm1431, %v1435, -inf
    %v1438 = vld [vmem:[%s1 + $0x70] sm:$0xff]
    %1440 = vset.pattern.permute.xlu0 0
    %1441 = vperm.xlu0 %1440, %v1438
    %v1442 = vpop.permute.xlu0 %1441
    %v1444 = vadd.f32 %v1442, %v1436
    %v1445 = vadd.f32 %v1442, %v1437
    %v1446 = vmax.f32 %v1346, %v1444
    %v1447 = vmax.f32 %v1347, %v1445
    %v1448 = vld [vmem:[%s55 + $0x70] sm:$0xff]
    %1450 = vset.pattern.permute.xlu0 0
    %1451 = vperm.xlu0 %1450, %v1448
    %v1452 = vpop.permute.xlu0 %1451
    %v1454 = vadd.f32 %v1452, %v1436
    %v1455 = vadd.f32 %v1452, %v1437
    %v1456 = vmax.f32 %v1356, %v1454
    %v1457 = vmax.f32 %v1357, %v1455
    %v1458 = vld [vmem:[%s64 + $0x70] sm:$0xff]
    %1460 = vset.pattern.permute.xlu0 0
    %1461 = vperm.xlu0 %1460, %v1458
    %v1462 = vpop.permute.xlu0 %1461
    %v1464 = vadd.f32 %v1462, %v1436
    %v1465 = vadd.f32 %v1462, %v1437
    %v1466 = vmax.f32 %v1366, %v1464
    %v1467 = vmax.f32 %v1367, %v1465
    %v1468 = vld [vmem:[%s73 + $0x70] sm:$0xff]
    %1470 = vset.pattern.permute.xlu0 0
    %1471 = vperm.xlu0 %1470, %v1468
    %v1472 = vpop.permute.xlu0 %1471
    %v1474 = vadd.f32 %v1472, %v1436
    %v1475 = vadd.f32 %v1472, %v1437
    %v1476 = vmax.f32 %v1376, %v1474
    %v1477 = vmax.f32 %v1377, %v1475
    %v1478 = vld [vmem:[%s82 + $0x70] sm:$0xff]
    %1480 = vset.pattern.permute.xlu0 0
    %1481 = vperm.xlu0 %1480, %v1478
    %v1482 = vpop.permute.xlu0 %1481
    %v1484 = vadd.f32 %v1482, %v1436
    %v1485 = vadd.f32 %v1482, %v1437
    %v1486 = vmax.f32 %v1386, %v1484
    %v1487 = vmax.f32 %v1387, %v1485
    %v1488 = vld [vmem:[%s91 + $0x70] sm:$0xff]
    %1490 = vset.pattern.permute.xlu0 0
    %1491 = vperm.xlu0 %1490, %v1488
    %v1492 = vpop.permute.xlu0 %1491
    %v1494 = vadd.f32 %v1492, %v1436
    %v1495 = vadd.f32 %v1492, %v1437
    %v1496 = vmax.f32 %v1396, %v1494
    %v1497 = vmax.f32 %v1397, %v1495
    %v1498 = vld [vmem:[%s100 + $0x70] sm:$0xff]
    %1500 = vset.pattern.permute.xlu0 0
    %1501 = vperm.xlu0 %1500, %v1498
    %v1502 = vpop.permute.xlu0 %1501
    %v1504 = vadd.f32 %v1502, %v1436
    %v1505 = vadd.f32 %v1502, %v1437
    %v1506 = vmax.f32 %v1406, %v1504
    %v1507 = vmax.f32 %v1407, %v1505
    %v1508 = vld [vmem:[%s109 + $0x70] sm:$0xff]
    %1510 = vset.pattern.permute.xlu0 0
    %1511 = vperm.xlu0 %1510, %v1508
    %v1512 = vpop.permute.xlu0 %1511
    %v1514 = vadd.f32 %v1512, %v1436
    %v1515 = vadd.f32 %v1512, %v1437
    %v1516 = vmax.f32 %v1416, %v1514
    %v1517 = vmax.f32 %v1417, %v1515
    %v1518 = vadd.f32 %v24, 120.0
    %v1519 = vadd.f32 %v25, 120.0
    %v1520 = vmul.f32 %v1518, %v28
    %v1521 = vmul.f32 %v1519, %v28
    %v1522 = vmul.f32 %v1520, %v1520
    %v1523 = vmul.f32 %v1521, %v1521
    %v1524 = vmul.f32 %v1522, %v1522
    %v1525 = vmul.f32 %v1523, %v1523
    %v1526 = vmul.f32 %v1524, %v1524
    %v1527 = vmul.f32 %v1525, %v1525
    %v1528 = vand.u32 2147483647, %v1518
    %v1529 = vand.u32 2147483647, %v1519
    %vm1530 = vcmp.le.f32.partialorder %v1528, 100.0
    %vm1531 = vcmp.le.f32.partialorder %v1529, 100.0
    %v1532 = vmul.f32 %v1526, %v1526
    %v1533 = vmul.f32 %v1527, %v1527
    %v1534 = vsub.f32 0.0, %v1532
    %v1535 = vsub.f32 0.0, %v1533
    %v1536 = vsel %vm1530, %v1534, -inf
    %v1537 = vsel %vm1531, %v1535, -inf
    %v1538 = vld [vmem:[%s1 + $0x78] sm:$0xff]
    %1540 = vset.pattern.permute.xlu0 0
    %1541 = vperm.xlu0 %1540, %v1538
    %v1542 = vpop.permute.xlu0 %1541
    %v1544 = vadd.f32 %v1542, %v1536
    %v1545 = vadd.f32 %v1542, %v1537
    %v1546 = vmax.f32 %v1446, %v1544
    %v1547 = vmax.f32 %v1447, %v1545
    %v1548 = vld [vmem:[%s55 + $0x78] sm:$0xff]
    %1550 = vset.pattern.permute.xlu0 0
    %1551 = vperm.xlu0 %1550, %v1548
    %v1552 = vpop.permute.xlu0 %1551
    %v1554 = vadd.f32 %v1552, %v1536
    %v1555 = vadd.f32 %v1552, %v1537
    %v1556 = vmax.f32 %v1456, %v1554
    %v1557 = vmax.f32 %v1457, %v1555
    %v1558 = vld [vmem:[%s64 + $0x78] sm:$0xff]
    %1560 = vset.pattern.permute.xlu0 0
    %1561 = vperm.xlu0 %1560, %v1558
    %v1562 = vpop.permute.xlu0 %1561
    %v1564 = vadd.f32 %v1562, %v1536
    %v1565 = vadd.f32 %v1562, %v1537
    %v1566 = vmax.f32 %v1466, %v1564
    %v1567 = vmax.f32 %v1467, %v1565
    %v1568 = vld [vmem:[%s73 + $0x78] sm:$0xff]
    %1570 = vset.pattern.permute.xlu0 0
    %1571 = vperm.xlu0 %1570, %v1568
    %v1572 = vpop.permute.xlu0 %1571
    %v1574 = vadd.f32 %v1572, %v1536
    %v1575 = vadd.f32 %v1572, %v1537
    %v1576 = vmax.f32 %v1476, %v1574
    %v1577 = vmax.f32 %v1477, %v1575
    %v1578 = vld [vmem:[%s82 + $0x78] sm:$0xff]
    %1580 = vset.pattern.permute.xlu0 0
    %1581 = vperm.xlu0 %1580, %v1578
    %v1582 = vpop.permute.xlu0 %1581
    %v1584 = vadd.f32 %v1582, %v1536
    %v1585 = vadd.f32 %v1582, %v1537
    %v1586 = vmax.f32 %v1486, %v1584
    %v1587 = vmax.f32 %v1487, %v1585
    %v1588 = vld [vmem:[%s91 + $0x78] sm:$0xff]
    %1590 = vset.pattern.permute.xlu0 0
    %1591 = vperm.xlu0 %1590, %v1588
    %v1592 = vpop.permute.xlu0 %1591
    %v1594 = vadd.f32 %v1592, %v1536
    %v1595 = vadd.f32 %v1592, %v1537
    %v1596 = vmax.f32 %v1496, %v1594
    %v1597 = vmax.f32 %v1497, %v1595
    %v1598 = vld [vmem:[%s100 + $0x78] sm:$0xff]
    %1600 = vset.pattern.permute.xlu0 0
    %1601 = vperm.xlu0 %1600, %v1598
    %v1602 = vpop.permute.xlu0 %1601
    %v1604 = vadd.f32 %v1602, %v1536
    %v1605 = vadd.f32 %v1602, %v1537
    %v1606 = vmax.f32 %v1506, %v1604
    %v1607 = vmax.f32 %v1507, %v1605
    %v1608 = vld [vmem:[%s109 + $0x78] sm:$0xff]
    %1610 = vset.pattern.permute.xlu0 0
    %1611 = vperm.xlu0 %1610, %v1608
    %v1612 = vpop.permute.xlu0 %1611
    %v1614 = vadd.f32 %v1612, %v1536
    %v1615 = vadd.f32 %v1612, %v1537
    %v1616 = vmax.f32 %v1516, %v1614
    %v1617 = vmax.f32 %v1517, %v1615
    %v1618 = vadd.f32 %v24, 128.0
    %v1619 = vadd.f32 %v25, 128.0
    %v1620 = vmul.f32 %v1618, %v28
    %v1621 = vmul.f32 %v1619, %v28
    %v1622 = vmul.f32 %v1620, %v1620
    %v1623 = vmul.f32 %v1621, %v1621
    %v1624 = vmul.f32 %v1622, %v1622
    %v1625 = vmul.f32 %v1623, %v1623
    %v1626 = vmul.f32 %v1624, %v1624
    %v1627 = vmul.f32 %v1625, %v1625
    %v1628 = vand.u32 2147483647, %v1618
    %v1629 = vand.u32 2147483647, %v1619
    %vm1630 = vcmp.le.f32.partialorder %v1628, 100.0
    %vm1631 = vcmp.le.f32.partialorder %v1629, 100.0
    %v1632 = vmul.f32 %v1626, %v1626
    %v1633 = vmul.f32 %v1627, %v1627
    %v1634 = vsub.f32 0.0, %v1632
    %v1635 = vsub.f32 0.0, %v1633
    %v1636 = vsel %vm1630, %v1634, -inf
    %v1637 = vsel %vm1631, %v1635, -inf
    %v1638 = vld [vmem:[%s1 + $0x80] sm:$0xff]
    %1640 = vset.pattern.permute.xlu0 0
    %1641 = vperm.xlu0 %1640, %v1638
    %v1642 = vpop.permute.xlu0 %1641
    %v1644 = vadd.f32 %v1642, %v1636
    %v1645 = vadd.f32 %v1642, %v1637
    %v1646 = vmax.f32 %v1546, %v1644
    %v1647 = vmax.f32 %v1547, %v1645
    %v1648 = vld [vmem:[%s55 + $0x80] sm:$0xff]
    %1650 = vset.pattern.permute.xlu0 0
    %1651 = vperm.xlu0 %1650, %v1648
    %v1652 = vpop.permute.xlu0 %1651
    %v1654 = vadd.f32 %v1652, %v1636
    %v1655 = vadd.f32 %v1652, %v1637
    %v1656 = vmax.f32 %v1556, %v1654
    %v1657 = vmax.f32 %v1557, %v1655
    %v1658 = vld [vmem:[%s64 + $0x80] sm:$0xff]
    %1660 = vset.pattern.permute.xlu0 0
    %1661 = vperm.xlu0 %1660, %v1658
    %v1662 = vpop.permute.xlu0 %1661
    %v1664 = vadd.f32 %v1662, %v1636
    %v1665 = vadd.f32 %v1662, %v1637
    %v1666 = vmax.f32 %v1566, %v1664
    %v1667 = vmax.f32 %v1567, %v1665
    %v1668 = vld [vmem:[%s73 + $0x80] sm:$0xff]
    %1670 = vset.pattern.permute.xlu0 0
    %1671 = vperm.xlu0 %1670, %v1668
    %v1672 = vpop.permute.xlu0 %1671
    %v1674 = vadd.f32 %v1672, %v1636
    %v1675 = vadd.f32 %v1672, %v1637
    %v1676 = vmax.f32 %v1576, %v1674
    %v1677 = vmax.f32 %v1577, %v1675
    %v1678 = vld [vmem:[%s82 + $0x80] sm:$0xff]
    %1680 = vset.pattern.permute.xlu0 0
    %1681 = vperm.xlu0 %1680, %v1678
    %v1682 = vpop.permute.xlu0 %1681
    %v1684 = vadd.f32 %v1682, %v1636
    %v1685 = vadd.f32 %v1682, %v1637
    %v1686 = vmax.f32 %v1586, %v1684
    %v1687 = vmax.f32 %v1587, %v1685
    %v1688 = vld [vmem:[%s91 + $0x80] sm:$0xff]
    %1690 = vset.pattern.permute.xlu0 0
    %1691 = vperm.xlu0 %1690, %v1688
    %v1692 = vpop.permute.xlu0 %1691
    %v1694 = vadd.f32 %v1692, %v1636
    %v1695 = vadd.f32 %v1692, %v1637
    %v1696 = vmax.f32 %v1596, %v1694
    %v1697 = vmax.f32 %v1597, %v1695
    %v1698 = vld [vmem:[%s100 + $0x80] sm:$0xff]
    %1700 = vset.pattern.permute.xlu0 0
    %1701 = vperm.xlu0 %1700, %v1698
    %v1702 = vpop.permute.xlu0 %1701
    %v1704 = vadd.f32 %v1702, %v1636
    %v1705 = vadd.f32 %v1702, %v1637
    %v1706 = vmax.f32 %v1606, %v1704
    %v1707 = vmax.f32 %v1607, %v1705
    %v1708 = vld [vmem:[%s109 + $0x80] sm:$0xff]
    %1710 = vset.pattern.permute.xlu0 0
    %1711 = vperm.xlu0 %1710, %v1708
    %v1712 = vpop.permute.xlu0 %1711
    %v1714 = vadd.f32 %v1712, %v1636
    %v1715 = vadd.f32 %v1712, %v1637
    %v1716 = vmax.f32 %v1616, %v1714
    %v1717 = vmax.f32 %v1617, %v1715
    %v1718 = vadd.f32 %v24, 136.0
    %v1719 = vadd.f32 %v25, 136.0
    %v1720 = vmul.f32 %v1718, %v28
    %v1721 = vmul.f32 %v1719, %v28
    %v1722 = vmul.f32 %v1720, %v1720
    %v1723 = vmul.f32 %v1721, %v1721
    %v1724 = vmul.f32 %v1722, %v1722
    %v1725 = vmul.f32 %v1723, %v1723
    %v1726 = vmul.f32 %v1724, %v1724
    %v1727 = vmul.f32 %v1725, %v1725
    %v1728 = vand.u32 2147483647, %v1718
    %v1729 = vand.u32 2147483647, %v1719
    %vm1730 = vcmp.le.f32.partialorder %v1728, 100.0
    %vm1731 = vcmp.le.f32.partialorder %v1729, 100.0
    %v1732 = vmul.f32 %v1726, %v1726
    %v1733 = vmul.f32 %v1727, %v1727
    %v1734 = vsub.f32 0.0, %v1732
    %v1735 = vsub.f32 0.0, %v1733
    %v1736 = vsel %vm1730, %v1734, -inf
    %v1737 = vsel %vm1731, %v1735, -inf
    %v1738 = vld [vmem:[%s1 + $0x88] sm:$0xff]
    %1740 = vset.pattern.permute.xlu0 0
    %1741 = vperm.xlu0 %1740, %v1738
    %v1742 = vpop.permute.xlu0 %1741
    %v1744 = vadd.f32 %v1742, %v1736
    %v1745 = vadd.f32 %v1742, %v1737
    %v1746 = vmax.f32 %v1646, %v1744
    %v1747 = vmax.f32 %v1647, %v1745
    %v1748 = vld [vmem:[%s55 + $0x88] sm:$0xff]
    %1750 = vset.pattern.permute.xlu0 0
    %1751 = vperm.xlu0 %1750, %v1748
    %v1752 = vpop.permute.xlu0 %1751
    %v1754 = vadd.f32 %v1752, %v1736
    %v1755 = vadd.f32 %v1752, %v1737
    %v1756 = vmax.f32 %v1656, %v1754
    %v1757 = vmax.f32 %v1657, %v1755
    %v1758 = vld [vmem:[%s64 + $0x88] sm:$0xff]
    %1760 = vset.pattern.permute.xlu0 0
    %1761 = vperm.xlu0 %1760, %v1758
    %v1762 = vpop.permute.xlu0 %1761
    %v1764 = vadd.f32 %v1762, %v1736
    %v1765 = vadd.f32 %v1762, %v1737
    %v1766 = vmax.f32 %v1666, %v1764
    %v1767 = vmax.f32 %v1667, %v1765
    %v1768 = vld [vmem:[%s73 + $0x88] sm:$0xff]
    %1770 = vset.pattern.permute.xlu0 0
    %1771 = vperm.xlu0 %1770, %v1768
    %v1772 = vpop.permute.xlu0 %1771
    %v1774 = vadd.f32 %v1772, %v1736
    %v1775 = vadd.f32 %v1772, %v1737
    %v1776 = vmax.f32 %v1676, %v1774
    %v1777 = vmax.f32 %v1677, %v1775
    %v1778 = vld [vmem:[%s82 + $0x88] sm:$0xff]
    %1780 = vset.pattern.permute.xlu0 0
    %1781 = vperm.xlu0 %1780, %v1778
    %v1782 = vpop.permute.xlu0 %1781
    %v1784 = vadd.f32 %v1782, %v1736
    %v1785 = vadd.f32 %v1782, %v1737
    %v1786 = vmax.f32 %v1686, %v1784
    %v1787 = vmax.f32 %v1687, %v1785
    %v1788 = vld [vmem:[%s91 + $0x88] sm:$0xff]
    %1790 = vset.pattern.permute.xlu0 0
    %1791 = vperm.xlu0 %1790, %v1788
    %v1792 = vpop.permute.xlu0 %1791
    %v1794 = vadd.f32 %v1792, %v1736
    %v1795 = vadd.f32 %v1792, %v1737
    %v1796 = vmax.f32 %v1696, %v1794
    %v1797 = vmax.f32 %v1697, %v1795
    %v1798 = vld [vmem:[%s100 + $0x88] sm:$0xff]
    %1800 = vset.pattern.permute.xlu0 0
    %1801 = vperm.xlu0 %1800, %v1798
    %v1802 = vpop.permute.xlu0 %1801
    %v1804 = vadd.f32 %v1802, %v1736
    %v1805 = vadd.f32 %v1802, %v1737
    %v1806 = vmax.f32 %v1706, %v1804
    %v1807 = vmax.f32 %v1707, %v1805
    %v1808 = vld [vmem:[%s109 + $0x88] sm:$0xff]
    %1810 = vset.pattern.permute.xlu0 0
    %1811 = vperm.xlu0 %1810, %v1808
    %v1812 = vpop.permute.xlu0 %1811
    %v1814 = vadd.f32 %v1812, %v1736
    %v1815 = vadd.f32 %v1812, %v1737
    %v1816 = vmax.f32 %v1716, %v1814
    %v1817 = vmax.f32 %v1717, %v1815
    %v1818 = vadd.f32 %v24, 144.0
    %v1819 = vadd.f32 %v25, 144.0
    %v1820 = vmul.f32 %v1818, %v28
    %v1821 = vmul.f32 %v1819, %v28
    %v1822 = vmul.f32 %v1820, %v1820
    %v1823 = vmul.f32 %v1821, %v1821
    %v1824 = vmul.f32 %v1822, %v1822
    %v1825 = vmul.f32 %v1823, %v1823
    %v1826 = vmul.f32 %v1824, %v1824
    %v1827 = vmul.f32 %v1825, %v1825
    %v1828 = vand.u32 2147483647, %v1818
    %v1829 = vand.u32 2147483647, %v1819
    %vm1830 = vcmp.le.f32.partialorder %v1828, 100.0
    %vm1831 = vcmp.le.f32.partialorder %v1829, 100.0
    %v1832 = vmul.f32 %v1826, %v1826
    %v1833 = vmul.f32 %v1827, %v1827
    %v1834 = vsub.f32 0.0, %v1832
    %v1835 = vsub.f32 0.0, %v1833
    %v1836 = vsel %vm1830, %v1834, -inf
    %v1837 = vsel %vm1831, %v1835, -inf
    %v1838 = vld [vmem:[%s1 + $0x90] sm:$0xff]
    %1840 = vset.pattern.permute.xlu0 0
    %1841 = vperm.xlu0 %1840, %v1838
    %v1842 = vpop.permute.xlu0 %1841
    %v1844 = vadd.f32 %v1842, %v1836
    %v1845 = vadd.f32 %v1842, %v1837
    %v1846 = vmax.f32 %v1746, %v1844
    %v1847 = vmax.f32 %v1747, %v1845
    %v1848 = vld [vmem:[%s55 + $0x90] sm:$0xff]
    %1850 = vset.pattern.permute.xlu0 0
    %1851 = vperm.xlu0 %1850, %v1848
    %v1852 = vpop.permute.xlu0 %1851
    %v1854 = vadd.f32 %v1852, %v1836
    %v1855 = vadd.f32 %v1852, %v1837
    %v1856 = vmax.f32 %v1756, %v1854
    %v1857 = vmax.f32 %v1757, %v1855
    %v1858 = vld [vmem:[%s64 + $0x90] sm:$0xff]
    %1860 = vset.pattern.permute.xlu0 0
    %1861 = vperm.xlu0 %1860, %v1858
    %v1862 = vpop.permute.xlu0 %1861
    %v1864 = vadd.f32 %v1862, %v1836
    %v1865 = vadd.f32 %v1862, %v1837
    %v1866 = vmax.f32 %v1766, %v1864
    %v1867 = vmax.f32 %v1767, %v1865
    %v1868 = vld [vmem:[%s73 + $0x90] sm:$0xff]
    %1870 = vset.pattern.permute.xlu0 0
    %1871 = vperm.xlu0 %1870, %v1868
    %v1872 = vpop.permute.xlu0 %1871
    %v1874 = vadd.f32 %v1872, %v1836
    %v1875 = vadd.f32 %v1872, %v1837
    %v1876 = vmax.f32 %v1776, %v1874
    %v1877 = vmax.f32 %v1777, %v1875
    %v1878 = vld [vmem:[%s82 + $0x90] sm:$0xff]
    %1880 = vset.pattern.permute.xlu0 0
    %1881 = vperm.xlu0 %1880, %v1878
    %v1882 = vpop.permute.xlu0 %1881
    %v1884 = vadd.f32 %v1882, %v1836
    %v1885 = vadd.f32 %v1882, %v1837
    %v1886 = vmax.f32 %v1786, %v1884
    %v1887 = vmax.f32 %v1787, %v1885
    %v1888 = vld [vmem:[%s91 + $0x90] sm:$0xff]
    %1890 = vset.pattern.permute.xlu0 0
    %1891 = vperm.xlu0 %1890, %v1888
    %v1892 = vpop.permute.xlu0 %1891
    %v1894 = vadd.f32 %v1892, %v1836
    %v1895 = vadd.f32 %v1892, %v1837
    %v1896 = vmax.f32 %v1796, %v1894
    %v1897 = vmax.f32 %v1797, %v1895
    %v1898 = vld [vmem:[%s100 + $0x90] sm:$0xff]
    %1900 = vset.pattern.permute.xlu0 0
    %1901 = vperm.xlu0 %1900, %v1898
    %v1902 = vpop.permute.xlu0 %1901
    %v1904 = vadd.f32 %v1902, %v1836
    %v1905 = vadd.f32 %v1902, %v1837
    %v1906 = vmax.f32 %v1806, %v1904
    %v1907 = vmax.f32 %v1807, %v1905
    %v1908 = vld [vmem:[%s109 + $0x90] sm:$0xff]
    %1910 = vset.pattern.permute.xlu0 0
    %1911 = vperm.xlu0 %1910, %v1908
    %v1912 = vpop.permute.xlu0 %1911
    %v1914 = vadd.f32 %v1912, %v1836
    %v1915 = vadd.f32 %v1912, %v1837
    %v1916 = vmax.f32 %v1816, %v1914
    %v1917 = vmax.f32 %v1817, %v1915
    %v1918 = vadd.f32 %v24, 152.0
    %v1919 = vadd.f32 %v25, 152.0
    %v1920 = vmul.f32 %v1918, %v28
    %v1921 = vmul.f32 %v1919, %v28
    %v1922 = vmul.f32 %v1920, %v1920
    %v1923 = vmul.f32 %v1921, %v1921
    %v1924 = vmul.f32 %v1922, %v1922
    %v1925 = vmul.f32 %v1923, %v1923
    %v1926 = vmul.f32 %v1924, %v1924
    %v1927 = vmul.f32 %v1925, %v1925
    %v1928 = vand.u32 2147483647, %v1918
    %v1929 = vand.u32 2147483647, %v1919
    %vm1930 = vcmp.le.f32.partialorder %v1928, 100.0
    %vm1931 = vcmp.le.f32.partialorder %v1929, 100.0
    %v1932 = vmul.f32 %v1926, %v1926
    %v1933 = vmul.f32 %v1927, %v1927
    %v1934 = vsub.f32 0.0, %v1932
    %v1935 = vsub.f32 0.0, %v1933
    %v1936 = vsel %vm1930, %v1934, -inf
    %v1937 = vsel %vm1931, %v1935, -inf
    %v1938 = vld [vmem:[%s1 + $0x98] sm:$0xff]
    %1940 = vset.pattern.permute.xlu0 0
    %1941 = vperm.xlu0 %1940, %v1938
    %v1942 = vpop.permute.xlu0 %1941
    %v1944 = vadd.f32 %v1942, %v1936
    %v1945 = vadd.f32 %v1942, %v1937
    %v1946 = vmax.f32 %v1846, %v1944
    %v1947 = vmax.f32 %v1847, %v1945
    %v1948 = vld [vmem:[%s55 + $0x98] sm:$0xff]
    %1950 = vset.pattern.permute.xlu0 0
    %1951 = vperm.xlu0 %1950, %v1948
    %v1952 = vpop.permute.xlu0 %1951
    %v1954 = vadd.f32 %v1952, %v1936
    %v1955 = vadd.f32 %v1952, %v1937
    %v1956 = vmax.f32 %v1856, %v1954
    %v1957 = vmax.f32 %v1857, %v1955
    %v1958 = vld [vmem:[%s64 + $0x98] sm:$0xff]
    %1960 = vset.pattern.permute.xlu0 0
    %1961 = vperm.xlu0 %1960, %v1958
    %v1962 = vpop.permute.xlu0 %1961
    %v1964 = vadd.f32 %v1962, %v1936
    %v1965 = vadd.f32 %v1962, %v1937
    %v1966 = vmax.f32 %v1866, %v1964
    %v1967 = vmax.f32 %v1867, %v1965
    %v1968 = vld [vmem:[%s73 + $0x98] sm:$0xff]
    %1970 = vset.pattern.permute.xlu0 0
    %1971 = vperm.xlu0 %1970, %v1968
    %v1972 = vpop.permute.xlu0 %1971
    %v1974 = vadd.f32 %v1972, %v1936
    %v1975 = vadd.f32 %v1972, %v1937
    %v1976 = vmax.f32 %v1876, %v1974
    %v1977 = vmax.f32 %v1877, %v1975
    %v1978 = vld [vmem:[%s82 + $0x98] sm:$0xff]
    %1980 = vset.pattern.permute.xlu0 0
    %1981 = vperm.xlu0 %1980, %v1978
    %v1982 = vpop.permute.xlu0 %1981
    %v1984 = vadd.f32 %v1982, %v1936
    %v1985 = vadd.f32 %v1982, %v1937
    %v1986 = vmax.f32 %v1886, %v1984
    %v1987 = vmax.f32 %v1887, %v1985
    %v1988 = vld [vmem:[%s91 + $0x98] sm:$0xff]
    %1990 = vset.pattern.permute.xlu0 0
    %1991 = vperm.xlu0 %1990, %v1988
    %v1992 = vpop.permute.xlu0 %1991
    %v1994 = vadd.f32 %v1992, %v1936
    %v1995 = vadd.f32 %v1992, %v1937
    %v1996 = vmax.f32 %v1896, %v1994
    %v1997 = vmax.f32 %v1897, %v1995
    %v1998 = vld [vmem:[%s100 + $0x98] sm:$0xff]
    %2000 = vset.pattern.permute.xlu0 0
    %2001 = vperm.xlu0 %2000, %v1998
    %v2002 = vpop.permute.xlu0 %2001
    %v2004 = vadd.f32 %v2002, %v1936
    %v2005 = vadd.f32 %v2002, %v1937
    %v2006 = vmax.f32 %v1906, %v2004
    %v2007 = vmax.f32 %v1907, %v2005
    %v2008 = vld [vmem:[%s109 + $0x98] sm:$0xff]
    %2010 = vset.pattern.permute.xlu0 0
    %2011 = vperm.xlu0 %2010, %v2008
    %v2012 = vpop.permute.xlu0 %2011
    %v2014 = vadd.f32 %v2012, %v1936
    %v2015 = vadd.f32 %v2012, %v1937
    %v2016 = vmax.f32 %v1916, %v2014
    %v2017 = vmax.f32 %v1917, %v2015
    %v2018 = vadd.f32 %v24, 160.0
    %v2019 = vadd.f32 %v25, 160.0
    %v2020 = vmul.f32 %v2018, %v28
    %v2021 = vmul.f32 %v2019, %v28
    %v2022 = vmul.f32 %v2020, %v2020
    %v2023 = vmul.f32 %v2021, %v2021
    %v2024 = vmul.f32 %v2022, %v2022
    %v2025 = vmul.f32 %v2023, %v2023
    %v2026 = vmul.f32 %v2024, %v2024
    %v2027 = vmul.f32 %v2025, %v2025
    %v2028 = vand.u32 2147483647, %v2018
    %v2029 = vand.u32 2147483647, %v2019
    %vm2030 = vcmp.le.f32.partialorder %v2028, 100.0
    %vm2031 = vcmp.le.f32.partialorder %v2029, 100.0
    %v2032 = vmul.f32 %v2026, %v2026
    %v2033 = vmul.f32 %v2027, %v2027
    %v2034 = vsub.f32 0.0, %v2032
    %v2035 = vsub.f32 0.0, %v2033
    %v2036 = vsel %vm2030, %v2034, -inf
    %v2037 = vsel %vm2031, %v2035, -inf
    %v2038 = vld [vmem:[%s1 + $0xa0] sm:$0xff]
    %2040 = vset.pattern.permute.xlu0 0
    %2041 = vperm.xlu0 %2040, %v2038
    %v2042 = vpop.permute.xlu0 %2041
    %v2044 = vadd.f32 %v2042, %v2036
    %v2045 = vadd.f32 %v2042, %v2037
    %v2046 = vmax.f32 %v1946, %v2044
    %v2047 = vmax.f32 %v1947, %v2045
    %v2048 = vld [vmem:[%s55 + $0xa0] sm:$0xff]
    %2050 = vset.pattern.permute.xlu0 0
    %2051 = vperm.xlu0 %2050, %v2048
    %v2052 = vpop.permute.xlu0 %2051
    %v2054 = vadd.f32 %v2052, %v2036
    %v2055 = vadd.f32 %v2052, %v2037
    %v2056 = vmax.f32 %v1956, %v2054
    %v2057 = vmax.f32 %v1957, %v2055
    %v2058 = vld [vmem:[%s64 + $0xa0] sm:$0xff]
    %2060 = vset.pattern.permute.xlu0 0
    %2061 = vperm.xlu0 %2060, %v2058
    %v2062 = vpop.permute.xlu0 %2061
    %v2064 = vadd.f32 %v2062, %v2036
    %v2065 = vadd.f32 %v2062, %v2037
    %v2066 = vmax.f32 %v1966, %v2064
    %v2067 = vmax.f32 %v1967, %v2065
    %v2068 = vld [vmem:[%s73 + $0xa0] sm:$0xff]
    %2070 = vset.pattern.permute.xlu0 0
    %2071 = vperm.xlu0 %2070, %v2068
    %v2072 = vpop.permute.xlu0 %2071
    %v2074 = vadd.f32 %v2072, %v2036
    %v2075 = vadd.f32 %v2072, %v2037
    %v2076 = vmax.f32 %v1976, %v2074
    %v2077 = vmax.f32 %v1977, %v2075
    %v2078 = vld [vmem:[%s82 + $0xa0] sm:$0xff]
    %2080 = vset.pattern.permute.xlu0 0
    %2081 = vperm.xlu0 %2080, %v2078
    %v2082 = vpop.permute.xlu0 %2081
    %v2084 = vadd.f32 %v2082, %v2036
    %v2085 = vadd.f32 %v2082, %v2037
    %v2086 = vmax.f32 %v1986, %v2084
    %v2087 = vmax.f32 %v1987, %v2085
    %v2088 = vld [vmem:[%s91 + $0xa0] sm:$0xff]
    %2090 = vset.pattern.permute.xlu0 0
    %2091 = vperm.xlu0 %2090, %v2088
    %v2092 = vpop.permute.xlu0 %2091
    %v2094 = vadd.f32 %v2092, %v2036
    %v2095 = vadd.f32 %v2092, %v2037
    %v2096 = vmax.f32 %v1996, %v2094
    %v2097 = vmax.f32 %v1997, %v2095
    %v2098 = vld [vmem:[%s100 + $0xa0] sm:$0xff]
    %2100 = vset.pattern.permute.xlu0 0
    %2101 = vperm.xlu0 %2100, %v2098
    %v2102 = vpop.permute.xlu0 %2101
    %v2104 = vadd.f32 %v2102, %v2036
    %v2105 = vadd.f32 %v2102, %v2037
    %v2106 = vmax.f32 %v2006, %v2104
    %v2107 = vmax.f32 %v2007, %v2105
    %v2108 = vld [vmem:[%s109 + $0xa0] sm:$0xff]
    %2110 = vset.pattern.permute.xlu0 0
    %2111 = vperm.xlu0 %2110, %v2108
    %v2112 = vpop.permute.xlu0 %2111
    %v2114 = vadd.f32 %v2112, %v2036
    %v2115 = vadd.f32 %v2112, %v2037
    %v2116 = vmax.f32 %v2016, %v2114
    %v2117 = vmax.f32 %v2017, %v2115
    %v2118 = vadd.f32 %v24, 168.0
    %v2119 = vadd.f32 %v25, 168.0
    %v2120 = vmul.f32 %v2118, %v28
    %v2121 = vmul.f32 %v2119, %v28
    %v2122 = vmul.f32 %v2120, %v2120
    %v2123 = vmul.f32 %v2121, %v2121
    %v2124 = vmul.f32 %v2122, %v2122
    %v2125 = vmul.f32 %v2123, %v2123
    %v2126 = vmul.f32 %v2124, %v2124
    %v2127 = vmul.f32 %v2125, %v2125
    %v2128 = vand.u32 2147483647, %v2118
    %v2129 = vand.u32 2147483647, %v2119
    %vm2130 = vcmp.le.f32.partialorder %v2128, 100.0
    %vm2131 = vcmp.le.f32.partialorder %v2129, 100.0
    %v2132 = vmul.f32 %v2126, %v2126
    %v2133 = vmul.f32 %v2127, %v2127
    %v2134 = vsub.f32 0.0, %v2132
    %v2135 = vsub.f32 0.0, %v2133
    %v2136 = vsel %vm2130, %v2134, -inf
    %v2137 = vsel %vm2131, %v2135, -inf
    %v2138 = vld [vmem:[%s1 + $0xa8] sm:$0xff]
    %2140 = vset.pattern.permute.xlu0 0
    %2141 = vperm.xlu0 %2140, %v2138
    %v2142 = vpop.permute.xlu0 %2141
    %v2144 = vadd.f32 %v2142, %v2136
    %v2145 = vadd.f32 %v2142, %v2137
    %v2146 = vmax.f32 %v2046, %v2144
    %v2147 = vmax.f32 %v2047, %v2145
    %v2148 = vld [vmem:[%s55 + $0xa8] sm:$0xff]
    %2150 = vset.pattern.permute.xlu0 0
    %2151 = vperm.xlu0 %2150, %v2148
    %v2152 = vpop.permute.xlu0 %2151
    %v2154 = vadd.f32 %v2152, %v2136
    %v2155 = vadd.f32 %v2152, %v2137
    %v2156 = vmax.f32 %v2056, %v2154
    %v2157 = vmax.f32 %v2057, %v2155
    %v2158 = vld [vmem:[%s64 + $0xa8] sm:$0xff]
    %2160 = vset.pattern.permute.xlu0 0
    %2161 = vperm.xlu0 %2160, %v2158
    %v2162 = vpop.permute.xlu0 %2161
    %v2164 = vadd.f32 %v2162, %v2136
    %v2165 = vadd.f32 %v2162, %v2137
    %v2166 = vmax.f32 %v2066, %v2164
    %v2167 = vmax.f32 %v2067, %v2165
    %v2168 = vld [vmem:[%s73 + $0xa8] sm:$0xff]
    %2170 = vset.pattern.permute.xlu0 0
    %2171 = vperm.xlu0 %2170, %v2168
    %v2172 = vpop.permute.xlu0 %2171
    %v2174 = vadd.f32 %v2172, %v2136
    %v2175 = vadd.f32 %v2172, %v2137
    %v2176 = vmax.f32 %v2076, %v2174
    %v2177 = vmax.f32 %v2077, %v2175
    %v2178 = vld [vmem:[%s82 + $0xa8] sm:$0xff]
    %2180 = vset.pattern.permute.xlu0 0
    %2181 = vperm.xlu0 %2180, %v2178
    %v2182 = vpop.permute.xlu0 %2181
    %v2184 = vadd.f32 %v2182, %v2136
    %v2185 = vadd.f32 %v2182, %v2137
    %v2186 = vmax.f32 %v2086, %v2184
    %v2187 = vmax.f32 %v2087, %v2185
    %v2188 = vld [vmem:[%s91 + $0xa8] sm:$0xff]
    %2190 = vset.pattern.permute.xlu0 0
    %2191 = vperm.xlu0 %2190, %v2188
    %v2192 = vpop.permute.xlu0 %2191
    %v2194 = vadd.f32 %v2192, %v2136
    %v2195 = vadd.f32 %v2192, %v2137
    %v2196 = vmax.f32 %v2096, %v2194
    %v2197 = vmax.f32 %v2097, %v2195
    %v2198 = vld [vmem:[%s100 + $0xa8] sm:$0xff]
    %2200 = vset.pattern.permute.xlu0 0
    %2201 = vperm.xlu0 %2200, %v2198
    %v2202 = vpop.permute.xlu0 %2201
    %v2204 = vadd.f32 %v2202, %v2136
    %v2205 = vadd.f32 %v2202, %v2137
    %v2206 = vmax.f32 %v2106, %v2204
    %v2207 = vmax.f32 %v2107, %v2205
    %v2208 = vld [vmem:[%s109 + $0xa8] sm:$0xff]
    %2210 = vset.pattern.permute.xlu0 0
    %2211 = vperm.xlu0 %2210, %v2208
    %v2212 = vpop.permute.xlu0 %2211
    %v2214 = vadd.f32 %v2212, %v2136
    %v2215 = vadd.f32 %v2212, %v2137
    %v2216 = vmax.f32 %v2116, %v2214
    %v2217 = vmax.f32 %v2117, %v2215
    %v2218 = vadd.f32 %v24, 176.0
    %v2219 = vadd.f32 %v25, 176.0
    %v2220 = vmul.f32 %v2218, %v28
    %v2221 = vmul.f32 %v2219, %v28
    %v2222 = vmul.f32 %v2220, %v2220
    %v2223 = vmul.f32 %v2221, %v2221
    %v2224 = vmul.f32 %v2222, %v2222
    %v2225 = vmul.f32 %v2223, %v2223
    %v2226 = vmul.f32 %v2224, %v2224
    %v2227 = vmul.f32 %v2225, %v2225
    %v2228 = vand.u32 2147483647, %v2218
    %v2229 = vand.u32 2147483647, %v2219
    %vm2230 = vcmp.le.f32.partialorder %v2228, 100.0
    %vm2231 = vcmp.le.f32.partialorder %v2229, 100.0
    %v2232 = vmul.f32 %v2226, %v2226
    %v2233 = vmul.f32 %v2227, %v2227
    %v2234 = vsub.f32 0.0, %v2232
    %v2235 = vsub.f32 0.0, %v2233
    %v2236 = vsel %vm2230, %v2234, -inf
    %v2237 = vsel %vm2231, %v2235, -inf
    %v2238 = vld [vmem:[%s1 + $0xb0] sm:$0xff]
    %2240 = vset.pattern.permute.xlu0 0
    %2241 = vperm.xlu0 %2240, %v2238
    %v2242 = vpop.permute.xlu0 %2241
    %v2244 = vadd.f32 %v2242, %v2236
    %v2245 = vadd.f32 %v2242, %v2237
    %v2246 = vmax.f32 %v2146, %v2244
    %v2247 = vmax.f32 %v2147, %v2245
    %v2248 = vld [vmem:[%s55 + $0xb0] sm:$0xff]
    %2250 = vset.pattern.permute.xlu0 0
    %2251 = vperm.xlu0 %2250, %v2248
    %v2252 = vpop.permute.xlu0 %2251
    %v2254 = vadd.f32 %v2252, %v2236
    %v2255 = vadd.f32 %v2252, %v2237
    %v2256 = vmax.f32 %v2156, %v2254
    %v2257 = vmax.f32 %v2157, %v2255
    %v2258 = vld [vmem:[%s64 + $0xb0] sm:$0xff]
    %2260 = vset.pattern.permute.xlu0 0
    %2261 = vperm.xlu0 %2260, %v2258
    %v2262 = vpop.permute.xlu0 %2261
    %v2264 = vadd.f32 %v2262, %v2236
    %v2265 = vadd.f32 %v2262, %v2237
    %v2266 = vmax.f32 %v2166, %v2264
    %v2267 = vmax.f32 %v2167, %v2265
    %v2268 = vld [vmem:[%s73 + $0xb0] sm:$0xff]
    %2270 = vset.pattern.permute.xlu0 0
    %2271 = vperm.xlu0 %2270, %v2268
    %v2272 = vpop.permute.xlu0 %2271
    %v2274 = vadd.f32 %v2272, %v2236
    %v2275 = vadd.f32 %v2272, %v2237
    %v2276 = vmax.f32 %v2176, %v2274
    %v2277 = vmax.f32 %v2177, %v2275
    %v2278 = vld [vmem:[%s82 + $0xb0] sm:$0xff]
    %2280 = vset.pattern.permute.xlu0 0
    %2281 = vperm.xlu0 %2280, %v2278
    %v2282 = vpop.permute.xlu0 %2281
    %v2284 = vadd.f32 %v2282, %v2236
    %v2285 = vadd.f32 %v2282, %v2237
    %v2286 = vmax.f32 %v2186, %v2284
    %v2287 = vmax.f32 %v2187, %v2285
    %v2288 = vld [vmem:[%s91 + $0xb0] sm:$0xff]
    %2290 = vset.pattern.permute.xlu0 0
    %2291 = vperm.xlu0 %2290, %v2288
    %v2292 = vpop.permute.xlu0 %2291
    %v2294 = vadd.f32 %v2292, %v2236
    %v2295 = vadd.f32 %v2292, %v2237
    %v2296 = vmax.f32 %v2196, %v2294
    %v2297 = vmax.f32 %v2197, %v2295
    %v2298 = vld [vmem:[%s100 + $0xb0] sm:$0xff]
    %2300 = vset.pattern.permute.xlu0 0
    %2301 = vperm.xlu0 %2300, %v2298
    %v2302 = vpop.permute.xlu0 %2301
    %v2304 = vadd.f32 %v2302, %v2236
    %v2305 = vadd.f32 %v2302, %v2237
    %v2306 = vmax.f32 %v2206, %v2304
    %v2307 = vmax.f32 %v2207, %v2305
    %v2308 = vld [vmem:[%s109 + $0xb0] sm:$0xff]
    %2310 = vset.pattern.permute.xlu0 0
    %2311 = vperm.xlu0 %2310, %v2308
    %v2312 = vpop.permute.xlu0 %2311
    %v2314 = vadd.f32 %v2312, %v2236
    %v2315 = vadd.f32 %v2312, %v2237
    %v2316 = vmax.f32 %v2216, %v2314
    %v2317 = vmax.f32 %v2217, %v2315
    %v2318 = vadd.f32 %v24, 184.0
    %v2319 = vadd.f32 %v25, 184.0
    %v2320 = vmul.f32 %v2318, %v28
    %v2321 = vmul.f32 %v2319, %v28
    %v2322 = vmul.f32 %v2320, %v2320
    %v2323 = vmul.f32 %v2321, %v2321
    %v2324 = vmul.f32 %v2322, %v2322
    %v2325 = vmul.f32 %v2323, %v2323
    %v2326 = vmul.f32 %v2324, %v2324
    %v2327 = vmul.f32 %v2325, %v2325
    %v2328 = vand.u32 2147483647, %v2318
    %v2329 = vand.u32 2147483647, %v2319
    %vm2330 = vcmp.le.f32.partialorder %v2328, 100.0
    %vm2331 = vcmp.le.f32.partialorder %v2329, 100.0
    %v2332 = vmul.f32 %v2326, %v2326
    %v2333 = vmul.f32 %v2327, %v2327
    %v2334 = vsub.f32 0.0, %v2332
    %v2335 = vsub.f32 0.0, %v2333
    %v2336 = vsel %vm2330, %v2334, -inf
    %v2337 = vsel %vm2331, %v2335, -inf
    %v2338 = vld [vmem:[%s1 + $0xb8] sm:$0xff]
    %2340 = vset.pattern.permute.xlu0 0
    %2341 = vperm.xlu0 %2340, %v2338
    %v2342 = vpop.permute.xlu0 %2341
    %v2344 = vadd.f32 %v2342, %v2336
    %v2345 = vadd.f32 %v2342, %v2337
    %v2346 = vmax.f32 %v2246, %v2344
    %v2347 = vmax.f32 %v2247, %v2345
    %v2348 = vld [vmem:[%s55 + $0xb8] sm:$0xff]
    %2350 = vset.pattern.permute.xlu0 0
    %2351 = vperm.xlu0 %2350, %v2348
    %v2352 = vpop.permute.xlu0 %2351
    %v2354 = vadd.f32 %v2352, %v2336
    %v2355 = vadd.f32 %v2352, %v2337
    %v2356 = vmax.f32 %v2256, %v2354
    %v2357 = vmax.f32 %v2257, %v2355
    %v2358 = vld [vmem:[%s64 + $0xb8] sm:$0xff]
    %2360 = vset.pattern.permute.xlu0 0
    %2361 = vperm.xlu0 %2360, %v2358
    %v2362 = vpop.permute.xlu0 %2361
    %v2364 = vadd.f32 %v2362, %v2336
    %v2365 = vadd.f32 %v2362, %v2337
    %v2366 = vmax.f32 %v2266, %v2364
    %v2367 = vmax.f32 %v2267, %v2365
    %v2368 = vld [vmem:[%s73 + $0xb8] sm:$0xff]
    %2370 = vset.pattern.permute.xlu0 0
    %2371 = vperm.xlu0 %2370, %v2368
    %v2372 = vpop.permute.xlu0 %2371
    %v2374 = vadd.f32 %v2372, %v2336
    %v2375 = vadd.f32 %v2372, %v2337
    %v2376 = vmax.f32 %v2276, %v2374
    %v2377 = vmax.f32 %v2277, %v2375
    %v2378 = vld [vmem:[%s82 + $0xb8] sm:$0xff]
    %2380 = vset.pattern.permute.xlu0 0
    %2381 = vperm.xlu0 %2380, %v2378
    %v2382 = vpop.permute.xlu0 %2381
    %v2384 = vadd.f32 %v2382, %v2336
    %v2385 = vadd.f32 %v2382, %v2337
    %v2386 = vmax.f32 %v2286, %v2384
    %v2387 = vmax.f32 %v2287, %v2385
    %v2388 = vld [vmem:[%s91 + $0xb8] sm:$0xff]
    %2390 = vset.pattern.permute.xlu0 0
    %2391 = vperm.xlu0 %2390, %v2388
    %v2392 = vpop.permute.xlu0 %2391
    %v2394 = vadd.f32 %v2392, %v2336
    %v2395 = vadd.f32 %v2392, %v2337
    %v2396 = vmax.f32 %v2296, %v2394
    %v2397 = vmax.f32 %v2297, %v2395
    %v2398 = vld [vmem:[%s100 + $0xb8] sm:$0xff]
    %2400 = vset.pattern.permute.xlu0 0
    %2401 = vperm.xlu0 %2400, %v2398
    %v2402 = vpop.permute.xlu0 %2401
    %v2404 = vadd.f32 %v2402, %v2336
    %v2405 = vadd.f32 %v2402, %v2337
    %v2406 = vmax.f32 %v2306, %v2404
    %v2407 = vmax.f32 %v2307, %v2405
    %v2408 = vld [vmem:[%s109 + $0xb8] sm:$0xff]
    %2410 = vset.pattern.permute.xlu0 0
    %2411 = vperm.xlu0 %2410, %v2408
    %v2412 = vpop.permute.xlu0 %2411
    %v2414 = vadd.f32 %v2412, %v2336
    %v2415 = vadd.f32 %v2412, %v2337
    %v2416 = vmax.f32 %v2316, %v2414
    %v2417 = vmax.f32 %v2317, %v2415
    %v2418 = vadd.f32 %v24, 192.0
    %v2419 = vadd.f32 %v25, 192.0
    %v2420 = vmul.f32 %v2418, %v28
    %v2421 = vmul.f32 %v2419, %v28
    %v2422 = vmul.f32 %v2420, %v2420
    %v2423 = vmul.f32 %v2421, %v2421
    %v2424 = vmul.f32 %v2422, %v2422
    %v2425 = vmul.f32 %v2423, %v2423
    %v2426 = vmul.f32 %v2424, %v2424
    %v2427 = vmul.f32 %v2425, %v2425
    %v2428 = vand.u32 2147483647, %v2418
    %v2429 = vand.u32 2147483647, %v2419
    %vm2430 = vcmp.le.f32.partialorder %v2428, 100.0
    %vm2431 = vcmp.le.f32.partialorder %v2429, 100.0
    %v2432 = vmul.f32 %v2426, %v2426
    %v2433 = vmul.f32 %v2427, %v2427
    %v2434 = vsub.f32 0.0, %v2432
    %v2435 = vsub.f32 0.0, %v2433
    %v2436 = vsel %vm2430, %v2434, -inf
    %v2437 = vsel %vm2431, %v2435, -inf
    %v2438 = vld [vmem:[%s1 + $0xc0] sm:$0xff]
    %2440 = vset.pattern.permute.xlu0 0
    %2441 = vperm.xlu0 %2440, %v2438
    %v2442 = vpop.permute.xlu0 %2441
    %v2444 = vadd.f32 %v2442, %v2436
    %v2445 = vadd.f32 %v2442, %v2437
    %v2446 = vmax.f32 %v2346, %v2444
    %v2447 = vmax.f32 %v2347, %v2445
    %v2448 = vld [vmem:[%s55 + $0xc0] sm:$0xff]
    %2450 = vset.pattern.permute.xlu0 0
    %2451 = vperm.xlu0 %2450, %v2448
    %v2452 = vpop.permute.xlu0 %2451
    %v2454 = vadd.f32 %v2452, %v2436
    %v2455 = vadd.f32 %v2452, %v2437
    %v2456 = vmax.f32 %v2356, %v2454
    %v2457 = vmax.f32 %v2357, %v2455
    %v2458 = vld [vmem:[%s64 + $0xc0] sm:$0xff]
    %2460 = vset.pattern.permute.xlu0 0
    %2461 = vperm.xlu0 %2460, %v2458
    %v2462 = vpop.permute.xlu0 %2461
    %v2464 = vadd.f32 %v2462, %v2436
    %v2465 = vadd.f32 %v2462, %v2437
    %v2466 = vmax.f32 %v2366, %v2464
    %v2467 = vmax.f32 %v2367, %v2465
    %v2468 = vld [vmem:[%s73 + $0xc0] sm:$0xff]
    %2470 = vset.pattern.permute.xlu0 0
    %2471 = vperm.xlu0 %2470, %v2468
    %v2472 = vpop.permute.xlu0 %2471
    %v2474 = vadd.f32 %v2472, %v2436
    %v2475 = vadd.f32 %v2472, %v2437
    %v2476 = vmax.f32 %v2376, %v2474
    %v2477 = vmax.f32 %v2377, %v2475
    %v2478 = vld [vmem:[%s82 + $0xc0] sm:$0xff]
    %2480 = vset.pattern.permute.xlu0 0
    %2481 = vperm.xlu0 %2480, %v2478
    %v2482 = vpop.permute.xlu0 %2481
    %v2484 = vadd.f32 %v2482, %v2436
    %v2485 = vadd.f32 %v2482, %v2437
    %v2486 = vmax.f32 %v2386, %v2484
    %v2487 = vmax.f32 %v2387, %v2485
    %v2488 = vld [vmem:[%s91 + $0xc0] sm:$0xff]
    %2490 = vset.pattern.permute.xlu0 0
    %2491 = vperm.xlu0 %2490, %v2488
    %v2492 = vpop.permute.xlu0 %2491
    %v2494 = vadd.f32 %v2492, %v2436
    %v2495 = vadd.f32 %v2492, %v2437
    %v2496 = vmax.f32 %v2396, %v2494
    %v2497 = vmax.f32 %v2397, %v2495
    %v2498 = vld [vmem:[%s100 + $0xc0] sm:$0xff]
    %2500 = vset.pattern.permute.xlu0 0
    %2501 = vperm.xlu0 %2500, %v2498
    %v2502 = vpop.permute.xlu0 %2501
    %v2504 = vadd.f32 %v2502, %v2436
    %v2505 = vadd.f32 %v2502, %v2437
    %v2506 = vmax.f32 %v2406, %v2504
    %v2507 = vmax.f32 %v2407, %v2505
    %v2508 = vld [vmem:[%s109 + $0xc0] sm:$0xff]
    %2510 = vset.pattern.permute.xlu0 0
    %2511 = vperm.xlu0 %2510, %v2508
    %v2512 = vpop.permute.xlu0 %2511
    %v2514 = vadd.f32 %v2512, %v2436
    %v2515 = vadd.f32 %v2512, %v2437
    %v2516 = vmax.f32 %v2416, %v2514
    %v2517 = vmax.f32 %v2417, %v2515
    %v2518 = vadd.f32 %v24, 200.0
    %v2519 = vadd.f32 %v25, 200.0
    %v2520 = vmul.f32 %v2518, %v28
    %v2521 = vmul.f32 %v2519, %v28
    %v2522 = vmul.f32 %v2520, %v2520
    %v2523 = vmul.f32 %v2521, %v2521
    %v2524 = vmul.f32 %v2522, %v2522
    %v2525 = vmul.f32 %v2523, %v2523
    %v2526 = vmul.f32 %v2524, %v2524
    %v2527 = vmul.f32 %v2525, %v2525
    %v2528 = vand.u32 2147483647, %v2518
    %v2529 = vand.u32 2147483647, %v2519
    %vm2530 = vcmp.le.f32.partialorder %v2528, 100.0
    %vm2531 = vcmp.le.f32.partialorder %v2529, 100.0
    %v2532 = vmul.f32 %v2526, %v2526
    %v2533 = vmul.f32 %v2527, %v2527
    %v2534 = vsub.f32 0.0, %v2532
    %v2535 = vsub.f32 0.0, %v2533
    %v2536 = vsel %vm2530, %v2534, -inf
    %v2537 = vsel %vm2531, %v2535, -inf
    %v2538 = vld [vmem:[%s1 + $0xc8] sm:$0xff]
    %2540 = vset.pattern.permute.xlu0 0
    %2541 = vperm.xlu0 %2540, %v2538
    %v2542 = vpop.permute.xlu0 %2541
    %v2544 = vadd.f32 %v2542, %v2536
    %v2545 = vadd.f32 %v2542, %v2537
    %v2546 = vmax.f32 %v2446, %v2544
    %v2547 = vmax.f32 %v2447, %v2545
    %v2548 = vld [vmem:[%s55 + $0xc8] sm:$0xff]
    %2550 = vset.pattern.permute.xlu0 0
    %2551 = vperm.xlu0 %2550, %v2548
    %v2552 = vpop.permute.xlu0 %2551
    %v2554 = vadd.f32 %v2552, %v2536
    %v2555 = vadd.f32 %v2552, %v2537
    %v2556 = vmax.f32 %v2456, %v2554
    %v2557 = vmax.f32 %v2457, %v2555
    %v2558 = vld [vmem:[%s64 + $0xc8] sm:$0xff]
    %2560 = vset.pattern.permute.xlu0 0
    %2561 = vperm.xlu0 %2560, %v2558
    %v2562 = vpop.permute.xlu0 %2561
    %v2564 = vadd.f32 %v2562, %v2536
    %v2565 = vadd.f32 %v2562, %v2537
    %v2566 = vmax.f32 %v2466, %v2564
    %v2567 = vmax.f32 %v2467, %v2565
    %v2568 = vld [vmem:[%s73 + $0xc8] sm:$0xff]
    %2570 = vset.pattern.permute.xlu0 0
    %2571 = vperm.xlu0 %2570, %v2568
    %v2572 = vpop.permute.xlu0 %2571
    %v2574 = vadd.f32 %v2572, %v2536
    %v2575 = vadd.f32 %v2572, %v2537
    %v2576 = vmax.f32 %v2476, %v2574
    %v2577 = vmax.f32 %v2477, %v2575
    %v2578 = vld [vmem:[%s82 + $0xc8] sm:$0xff]
    %2580 = vset.pattern.permute.xlu0 0
    %2581 = vperm.xlu0 %2580, %v2578
    %v2582 = vpop.permute.xlu0 %2581
    %v2584 = vadd.f32 %v2582, %v2536
    %v2585 = vadd.f32 %v2582, %v2537
    %v2586 = vmax.f32 %v2486, %v2584
    %v2587 = vmax.f32 %v2487, %v2585
    %v2588 = vld [vmem:[%s91 + $0xc8] sm:$0xff]
    %2590 = vset.pattern.permute.xlu0 0
    %2591 = vperm.xlu0 %2590, %v2588
    %v2592 = vpop.permute.xlu0 %2591
    %v2594 = vadd.f32 %v2592, %v2536
    %v2595 = vadd.f32 %v2592, %v2537
    %v2596 = vmax.f32 %v2496, %v2594
    %v2597 = vmax.f32 %v2497, %v2595
    %v2598 = vld [vmem:[%s100 + $0xc8] sm:$0xff]
    %2600 = vset.pattern.permute.xlu0 0
    %2601 = vperm.xlu0 %2600, %v2598
    %v2602 = vpop.permute.xlu0 %2601
    %v2604 = vadd.f32 %v2602, %v2536
    %v2605 = vadd.f32 %v2602, %v2537
    %v2606 = vmax.f32 %v2506, %v2604
    %v2607 = vmax.f32 %v2507, %v2605
    %v2608 = vld [vmem:[%s109 + $0xc8] sm:$0xff]
    %2610 = vset.pattern.permute.xlu0 0
    %2611 = vperm.xlu0 %2610, %v2608
    %v2612 = vpop.permute.xlu0 %2611
    %v2614 = vadd.f32 %v2612, %v2536
    %v2615 = vadd.f32 %v2612, %v2537
    %v2616 = vmax.f32 %v2516, %v2614
    %v2617 = vmax.f32 %v2517, %v2615
    %v2618 = vrot.slane %v2546, 4
    %v2619 = vmax.f32 %v2546, %v2618
    %v2620 = vrot.slane %v2619, 2
    %v2621 = vmax.f32 %v2619, %v2620
    %v2622 = vrot.slane %v2621, 1
    %v2623 = vmax.f32 %v2621, %v2622
    %v2624 = vrot.slane %v2547, 4
    %v2625 = vmax.f32 %v2547, %v2624
    %v2626 = vrot.slane %v2625, 2
    %v2627 = vmax.f32 %v2625, %v2626
    %v2628 = vrot.slane %v2627, 1
    %v2629 = vmax.f32 %v2627, %v2628
    %v2632 = vcombine.low %v2623, %v2629
    %v2634 = vunpack.c.l.s4 1966171168
    %v2635 = vunpack.c.0.s8 %v2634
    %v2636 = vlaneseq
    %v2637 = vshrl.u32 %v2636, 7
    %v2638 = vsub.s32 %v2635, %v2637
    %v2639 = vrot.slane %v2632, %v2638
    %v2641 = vunpack.c.l.s4 1966171168
    %v2642 = vunpack.c.0.s8 %v2641
    %v2643 = vlaneseq
    %v2644 = vshrl.u32 %v2643, 7
    %v2645 = vsub.s32 %v2642, %v2644
    %v2646 = vrot.slane %v2639, %v2645
    %v2648 = vlaneseq
    %vm2649 = vcmp.ge.s32.totalorder %v2648, 0
    %vm2650 = vcmp.lt.s32.totalorder %v2648, 256
    %vm2651 = vmand %vm2649, %vm2650
    %2652 = vst.msk [vmem:[#allocation3] ss:$8 sm:$0x3] %vm2651, %v2646
    %2653 = vst.msk [vmem:[#allocation3] ss:$8 sm:$0x0] %vm2651, %v2646
    %v2654 = vrot.slane %v2556, 4
    %v2655 = vmax.f32 %v2556, %v2654
    %v2656 = vrot.slane %v2655, 2
    %v2657 = vmax.f32 %v2655, %v2656
    %v2658 = vrot.slane %v2657, 1
    %v2659 = vmax.f32 %v2657, %v2658
    %v2660 = vrot.slane %v2557, 4
    %v2661 = vmax.f32 %v2557, %v2660
    %v2662 = vrot.slane %v2661, 2
    %v2663 = vmax.f32 %v2661, %v2662
    %v2664 = vrot.slane %v2663, 1
    %v2665 = vmax.f32 %v2663, %v2664
    %v2668 = vcombine.low %v2659, %v2665
    %v2670 = vunpack.c.l.s4 1966171168
    %v2671 = vunpack.c.0.s8 %v2670
    %v2672 = vlaneseq
    %v2673 = vshrl.u32 %v2672, 7
    %v2674 = vsub.s32 %v2671, %v2673
    %v2675 = vrot.slane %v2668, %v2674
    %v2677 = vunpack.c.l.s4 1966171168
    %v2678 = vunpack.c.0.s8 %v2677
    %v2679 = vlaneseq
    %v2680 = vshrl.u32 %v2679, 7
    %v2681 = vsub.s32 %v2678, %v2680
    %v2682 = vrot.slane %v2675, %v2681
    %s2684 = scalar_lea.vmem [#allocation3], 1
    %2685 = vst.msk [vmem:[%s2684] ss:$8 sm:$0x3] %vm2651, %v2682
    %2686 = vst.msk [vmem:[%s2684] ss:$8 sm:$0x0] %vm2651, %v2682
    %v2687 = vrot.slane %v2566, 4
    %v2688 = vmax.f32 %v2566, %v2687
    %v2689 = vrot.slane %v2688, 2
    %v2690 = vmax.f32 %v2688, %v2689
    %v2691 = vrot.slane %v2690, 1
    %v2692 = vmax.f32 %v2690, %v2691
    %v2693 = vrot.slane %v2567, 4
    %v2694 = vmax.f32 %v2567, %v2693
    %v2695 = vrot.slane %v2694, 2
    %v2696 = vmax.f32 %v2694, %v2695
    %v2697 = vrot.slane %v2696, 1
    %v2698 = vmax.f32 %v2696, %v2697
    %v2701 = vcombine.low %v2692, %v2698
    %v2703 = vunpack.c.l.s4 1966171168
    %v2704 = vunpack.c.0.s8 %v2703
    %v2705 = vlaneseq
    %v2706 = vshrl.u32 %v2705, 7
    %v2707 = vsub.s32 %v2704, %v2706
    %v2708 = vrot.slane %v2701, %v2707
    %v2710 = vunpack.c.l.s4 1966171168
    %v2711 = vunpack.c.0.s8 %v2710
    %v2712 = vlaneseq
    %v2713 = vshrl.u32 %v2712, 7
    %v2714 = vsub.s32 %v2711, %v2713
    %v2715 = vrot.slane %v2708, %v2714
    %s2717 = scalar_lea.vmem [#allocation3], 2
    %2718 = vst.msk [vmem:[%s2717] ss:$8 sm:$0x3] %vm2651, %v2715
    %2719 = vst.msk [vmem:[%s2717] ss:$8 sm:$0x0] %vm2651, %v2715
    %v2720 = vrot.slane %v2576, 4
    %v2721 = vmax.f32 %v2576, %v2720
    %v2722 = vrot.slane %v2721, 2
    %v2723 = vmax.f32 %v2721, %v2722
    %v2724 = vrot.slane %v2723, 1
    %v2725 = vmax.f32 %v2723, %v2724
    %v2726 = vrot.slane %v2577, 4
    %v2727 = vmax.f32 %v2577, %v2726
    %v2728 = vrot.slane %v2727, 2
    %v2729 = vmax.f32 %v2727, %v2728
    %v2730 = vrot.slane %v2729, 1
    %v2731 = vmax.f32 %v2729, %v2730
    %v2734 = vcombine.low %v2725, %v2731
    %v2736 = vunpack.c.l.s4 1966171168
    %v2737 = vunpack.c.0.s8 %v2736
    %v2738 = vlaneseq
    %v2739 = vshrl.u32 %v2738, 7
    %v2740 = vsub.s32 %v2737, %v2739
    %v2741 = vrot.slane %v2734, %v2740
    %v2743 = vunpack.c.l.s4 1966171168
    %v2744 = vunpack.c.0.s8 %v2743
    %v2745 = vlaneseq
    %v2746 = vshrl.u32 %v2745, 7
    %v2747 = vsub.s32 %v2744, %v2746
    %v2748 = vrot.slane %v2741, %v2747
    %s2750 = scalar_lea.vmem [#allocation3], 3
    %2751 = vst.msk [vmem:[%s2750] ss:$8 sm:$0x3] %vm2651, %v2748
    %2752 = vst.msk [vmem:[%s2750] ss:$8 sm:$0x0] %vm2651, %v2748
    %v2753 = vrot.slane %v2586, 4
    %v2754 = vmax.f32 %v2586, %v2753
    %v2755 = vrot.slane %v2754, 2
    %v2756 = vmax.f32 %v2754, %v2755
    %v2757 = vrot.slane %v2756, 1
    %v2758 = vmax.f32 %v2756, %v2757
    %v2759 = vrot.slane %v2587, 4
    %v2760 = vmax.f32 %v2587, %v2759
    %v2761 = vrot.slane %v2760, 2
    %v2762 = vmax.f32 %v2760, %v2761
    %v2763 = vrot.slane %v2762, 1
    %v2764 = vmax.f32 %v2762, %v2763
    %v2767 = vcombine.low %v2758, %v2764
    %v2769 = vunpack.c.l.s4 1966171168
    %v2770 = vunpack.c.0.s8 %v2769
    %v2771 = vlaneseq
    %v2772 = vshrl.u32 %v2771, 7
    %v2773 = vsub.s32 %v2770, %v2772
    %v2774 = vrot.slane %v2767, %v2773
    %v2776 = vunpack.c.l.s4 1966171168
    %v2777 = vunpack.c.0.s8 %v2776
    %v2778 = vlaneseq
    %v2779 = vshrl.u32 %v2778, 7
    %v2780 = vsub.s32 %v2777, %v2779
    %v2781 = vrot.slane %v2774, %v2780
    %s2783 = scalar_lea.vmem [#allocation3], 4
    %2784 = vst.msk [vmem:[%s2783] ss:$8 sm:$0x3] %vm2651, %v2781
    %2785 = vst.msk [vmem:[%s2783] ss:$8 sm:$0x0] %vm2651, %v2781
    %v2786 = vrot.slane %v2596, 4
    %v2787 = vmax.f32 %v2596, %v2786
    %v2788 = vrot.slane %v2787, 2
    %v2789 = vmax.f32 %v2787, %v2788
    %v2790 = vrot.slane %v2789, 1
    %v2791 = vmax.f32 %v2789, %v2790
    %v2792 = vrot.slane %v2597, 4
    %v2793 = vmax.f32 %v2597, %v2792
    %v2794 = vrot.slane %v2793, 2
    %v2795 = vmax.f32 %v2793, %v2794
    %v2796 = vrot.slane %v2795, 1
    %v2797 = vmax.f32 %v2795, %v2796
    %v2800 = vcombine.low %v2791, %v2797
    %v2802 = vunpack.c.l.s4 1966171168
    %v2803 = vunpack.c.0.s8 %v2802
    %v2804 = vlaneseq
    %v2805 = vshrl.u32 %v2804, 7
    %v2806 = vsub.s32 %v2803, %v2805
    %v2807 = vrot.slane %v2800, %v2806
    %v2809 = vunpack.c.l.s4 1966171168
    %v2810 = vunpack.c.0.s8 %v2809
    %v2811 = vlaneseq
    %v2812 = vshrl.u32 %v2811, 7
    %v2813 = vsub.s32 %v2810, %v2812
    %v2814 = vrot.slane %v2807, %v2813
    %s2816 = scalar_lea.vmem [#allocation3], 5
    %2817 = vst.msk [vmem:[%s2816] ss:$8 sm:$0x3] %vm2651, %v2814
    %2818 = vst.msk [vmem:[%s2816] ss:$8 sm:$0x0] %vm2651, %v2814
    %v2819 = vrot.slane %v2606, 4
    %v2820 = vmax.f32 %v2606, %v2819
    %v2821 = vrot.slane %v2820, 2
    %v2822 = vmax.f32 %v2820, %v2821
    %v2823 = vrot.slane %v2822, 1
    %v2824 = vmax.f32 %v2822, %v2823
    %v2825 = vrot.slane %v2607, 4
    %v2826 = vmax.f32 %v2607, %v2825
    %v2827 = vrot.slane %v2826, 2
    %v2828 = vmax.f32 %v2826, %v2827
    %v2829 = vrot.slane %v2828, 1
    %v2830 = vmax.f32 %v2828, %v2829
    %v2833 = vcombine.low %v2824, %v2830
    %v2835 = vunpack.c.l.s4 1966171168
    %v2836 = vunpack.c.0.s8 %v2835
    %v2837 = vlaneseq
    %v2838 = vshrl.u32 %v2837, 7
    %v2839 = vsub.s32 %v2836, %v2838
    %v2840 = vrot.slane %v2833, %v2839
    %v2842 = vunpack.c.l.s4 1966171168
    %v2843 = vunpack.c.0.s8 %v2842
    %v2844 = vlaneseq
    %v2845 = vshrl.u32 %v2844, 7
    %v2846 = vsub.s32 %v2843, %v2845
    %v2847 = vrot.slane %v2840, %v2846
    %s2849 = scalar_lea.vmem [#allocation3], 6
    %2850 = vst.msk [vmem:[%s2849] ss:$8 sm:$0x3] %vm2651, %v2847
    %2851 = vst.msk [vmem:[%s2849] ss:$8 sm:$0x0] %vm2651, %v2847
    %v2852 = vrot.slane %v2616, 4
    %v2853 = vmax.f32 %v2616, %v2852
    %v2854 = vrot.slane %v2853, 2
    %v2855 = vmax.f32 %v2853, %v2854
    %v2856 = vrot.slane %v2855, 1
    %v2857 = vmax.f32 %v2855, %v2856
    %v2858 = vrot.slane %v2617, 4
    %v2859 = vmax.f32 %v2617, %v2858
    %v2860 = vrot.slane %v2859, 2
    %v2861 = vmax.f32 %v2859, %v2860
    %v2862 = vrot.slane %v2861, 1
    %v2863 = vmax.f32 %v2861, %v2862
    %v2866 = vcombine.low %v2857, %v2863
    %v2868 = vunpack.c.l.s4 1966171168
    %v2869 = vunpack.c.0.s8 %v2868
    %v2870 = vlaneseq
    %v2871 = vshrl.u32 %v2870, 7
    %v2872 = vsub.s32 %v2869, %v2871
    %v2873 = vrot.slane %v2866, %v2872
    %v2875 = vunpack.c.l.s4 1966171168
    %v2876 = vunpack.c.0.s8 %v2875
    %v2877 = vlaneseq
    %v2878 = vshrl.u32 %v2877, 7
    %v2879 = vsub.s32 %v2876, %v2878
    %v2880 = vrot.slane %v2873, %v2879
    %s2882 = scalar_lea.vmem [#allocation3], 7
    %2883 = vst.msk [vmem:[%s2882] ss:$8 sm:$0x3] %vm2651, %v2880
    %2884 = vst.msk [vmem:[%s2882] ss:$8 sm:$0x0] %vm2651, %v2880
    // Predicated region
    $region10: #{tpu_custom_call.1} parent=1 // pred_check
      _
    $region11: #{tpu_custom_call.1} parent=1 // pred_check_branch
      %2886 = sbr.rel (0) target = $region13
    $region12: #{tpu_custom_call.1} parent=1 // pred_region
      %s2888 = ssub.s32 256, 256
      %2889 = vsyncadd [#allocation4], %s2888
      %s2891 = sshll.u32 [#allocation3], 4
      %s2892 = int_to_ptr.vmem [resolvable:$true] %s2891
      %2894 = dma.vmem_to_hbm [thread:$0]  %s2892, 256, %s2, [#allocation4]
    $region13: #{tpu_custom_call.1} parent=1 // pred_fallthru
      _
    // Predicated region
    $region14: #{tpu_custom_call.1} parent=1 // pred_check
      _
    $region15: #{tpu_custom_call.1} parent=1 // pred_check_branch
      %2896 = sbr.rel (0) target = $region17
    $region16: #{tpu_custom_call.1} parent=1 // pred_region
      %2897 = dma.done [#allocation4], 256
    $region17: #{tpu_custom_call.1} parent=1 // pred_fallthru
      _
    %2898 = vsyncpa [#allocation4], 1

</llo_original>
